<compile_context>
chip_gen: v5e
topology: v5e:2x2
jax: 0.10.0
libtpu: 0.0.40
codegen_flags: <defaults>
</compile_context>

<pallas_src>
import jax
import jax.numpy as jnp
from jax import lax
from jax.experimental import pallas as pl
from jax.experimental.pallas import tpu as pltpu

NUM_STAGES = 6


def _loss_kernel(*refs):
    """refs = 6 paf preds, 6 heat preds, paf_tgt, paf_msk, heat_tgt, heat_msk, out."""
    paf_preds = refs[0:NUM_STAGES]
    heat_preds = refs[NUM_STAGES:2 * NUM_STAGES]
    paf_tgt_ref, paf_msk_ref, heat_tgt_ref, heat_msk_ref = refs[
        2 * NUM_STAGES:2 * NUM_STAGES + 4]
    out_ref = refs[-1]

    # ---- paf region (this batch slice) ----
    pm = paf_msk_ref[...]
    pgt = paf_tgt_ref[...] * pm                  # gt = target * mask, hoisted
    acc = None
    for pred_ref in paf_preds:                   # 6 stages, target/mask loaded once
        d = pred_ref[...] * pm - pgt             # matches reference exactly
        acc = d * d if acc is None else acc + d * d
    paf_sse = jnp.sum(acc)

    # ---- heat region (this batch slice) ----
    hm = heat_msk_ref[...]
    hgt = heat_tgt_ref[...] * hm
    acc = None
    for pred_ref in heat_preds:
        d = pred_ref[...] * hm - hgt
        acc = d * d if acc is None else acc + d * d
    heat_sse = jnp.sum(acc)

    # Vectorized construction of the (1, 8, 128) output tile:
    #   [0,0,0] = paf SSE, [0,0,1] = heat SSE, rest = 0.
    sub = lax.broadcasted_iota(jnp.int32, (1, 8, 128), 1)
    lane = lax.broadcasted_iota(jnp.int32, (1, 8, 128), 2)
    tile = jnp.where((sub == 0) & (lane == 0), paf_sse, 0.0)
    tile = jnp.where((sub == 0) & (lane == 1), heat_sse, tile)
    out_ref[...] = tile


def _flat3(x):
    # (B, C, H, W) -> (B, C, H*W): contiguous collapse, free (bitcast) under jit.
    x = x.astype(jnp.float32)
    return x.reshape(x.shape[0], x.shape[1], -1)


@jax.jit
def openpose_loss(saved_for_loss, heatmap_target, heat_mask, paf_target, paf_mask):
    """Matches OpenPoseLoss.forward (f32 scalar result)."""
    B = paf_target.shape[0]
    paf_c = paf_target.shape[1]
    heat_c = heatmap_target.shape[1]
    S = paf_target.shape[-2] * paf_target.shape[-1]

    paf_preds = [_flat3(saved_for_loss[2 * i]) for i in range(NUM_STAGES)]
    heat_preds = [_flat3(saved_for_loss[2 * i + 1]) for i in range(NUM_STAGES)]
    ptgt, pmsk = _flat3(paf_target), _flat3(paf_mask)
    htgt, hmsk = _flat3(heatmap_target), _flat3(heat_mask)

    # Per-batch blocks with full (C, H*W) trailing extents: no HBM padding,
    # no staging copy, auto double-buffered across the batch grid.
    paf_spec = pl.BlockSpec((1, paf_c, S), lambda b: (b, 0, 0))
    heat_spec = pl.BlockSpec((1, heat_c, S), lambda b: (b, 0, 0))

    out = pl.pallas_call(
        _loss_kernel,
        out_shape=jax.ShapeDtypeStruct((B, 8, 128), jnp.float32),
        grid_spec=pltpu.PrefetchScalarGridSpec(
            num_scalar_prefetch=0,
            grid=(B,),
            in_specs=([paf_spec] * NUM_STAGES
                      + [heat_spec] * NUM_STAGES
                      + [paf_spec, paf_spec, heat_spec, heat_spec]),
            out_specs=pl.BlockSpec((1, 8, 128), lambda b: (b, 0, 0)),
        ),
        compiler_params=pltpu.CompilerParams(
            dimension_semantics=("parallel",)),
    )(*paf_preds, *heat_preds, ptgt, pmsk, htgt, hmsk)

    # sum_i SS_i / N == sum_i MSE_i (same denominator N per stage, per region).
    n_paf = paf_target.size          # = B * C_paf * H * W  (MSE 'mean' denom)
    n_heat = heatmap_target.size
    return jnp.sum(out[:, 0, 0]) / n_paf + jnp.sum(out[:, 0, 1]) / n_heat


def _ref_loss(saved_for_loss, heatmap_target, heat_mask, paf_target, paf_mask):
    total = jnp.float32(0.0)
    for i in range(NUM_STAGES):
        pred1 = saved_for_loss[2 * i] * paf_mask
        gt1 = paf_target.astype(jnp.float32) * paf_mask
        pred2 = saved_for_loss[2 * i + 1] * heat_mask
        gt2 = heatmap_target.astype(jnp.float32) * heat_mask
        total += jnp.mean((pred1 - gt1) ** 2) + jnp.mean((pred2 - gt2) ** 2)
    return total


if __name__ == "__main__":
    # Shapes implied by the module docstring: heatmaps [B,19,46,46], pafs [B,38,46,46].
    B, HM_C, PAF_C, H, W = 2, 19, 38, 46, 46
    key = jax.random.PRNGKey(0)
    keys = jax.random.split(key, 16)

    # OpenPoseLoss has no parameters; these mimic the 6-stage network outputs.
    saved_for_loss = []
    for i in range(NUM_STAGES):
        saved_for_loss.append(
            jax.random.normal(keys[2 * i], (B, PAF_C, H, W), jnp.float32))
        saved_for_loss.append(
            jax.random.normal(keys[2 * i + 1], (B, HM_C, H, W), jnp.float32))

    heatmap_target = jax.random.normal(keys[12], (B, HM_C, H, W), jnp.float32)
    paf_target = jax.random.normal(keys[13], (B, PAF_C, H, W), jnp.float32)
    heat_mask = jax.random.bernoulli(keys[14], 0.8, (B, HM_C, H, W)).astype(jnp.float32)
    paf_mask = jax.random.bernoulli(keys[15], 0.8, (B, PAF_C, H, W)).astype(jnp.float32)

    loss = openpose_loss(saved_for_loss, heatmap_target, heat_mask,
                         paf_target, paf_mask)
    loss = jax.block_until_ready(loss)

    ref = jax.block_until_ready(
        _ref_loss(saved_for_loss, heatmap_target, heat_mask,
                  paf_target, paf_mask))

    assert jnp.allclose(loss, ref, rtol=1e-5, atol=1e-5), (loss, ref)
    print("KERNEL_OK")
</pallas_src>

<mosaic_0001>
module attributes {stable_mosaic.version = 11 : i64} {
  func.func @_loss_kernel(%arg0: i32, %arg1: memref<1x38x2116xf32, #tpu.memory_space<vmem>>, %arg2: memref<1x38x2116xf32, #tpu.memory_space<vmem>>, %arg3: memref<1x38x2116xf32, #tpu.memory_space<vmem>>, %arg4: memref<1x38x2116xf32, #tpu.memory_space<vmem>>, %arg5: memref<1x38x2116xf32, #tpu.memory_space<vmem>>, %arg6: memref<1x38x2116xf32, #tpu.memory_space<vmem>>, %arg7: memref<1x19x2116xf32, #tpu.memory_space<vmem>>, %arg8: memref<1x19x2116xf32, #tpu.memory_space<vmem>>, %arg9: memref<1x19x2116xf32, #tpu.memory_space<vmem>>, %arg10: memref<1x19x2116xf32, #tpu.memory_space<vmem>>, %arg11: memref<1x19x2116xf32, #tpu.memory_space<vmem>>, %arg12: memref<1x19x2116xf32, #tpu.memory_space<vmem>>, %arg13: memref<1x38x2116xf32, #tpu.memory_space<vmem>>, %arg14: memref<1x38x2116xf32, #tpu.memory_space<vmem>>, %arg15: memref<1x19x2116xf32, #tpu.memory_space<vmem>>, %arg16: memref<1x19x2116xf32, #tpu.memory_space<vmem>>, %arg17: memref<1x8x128xf32, #tpu.memory_space<vmem>>) attributes {dimension_semantics = [#tpu.dimension_semantics<parallel>], iteration_bounds = array<i64: 2>, scalar_prefetch = 0 : i64, scratch_operands = 0 : i64, tpu.core_type = #tpu.core_type<tc>, window_params = [{transform_indices = @transform_0, window_bounds = array<i64: 1, 38, 2116>}, {transform_indices = @transform_1, window_bounds = array<i64: 1, 38, 2116>}, {transform_indices = @transform_2, window_bounds = array<i64: 1, 38, 2116>}, {transform_indices = @transform_3, window_bounds = array<i64: 1, 38, 2116>}, {transform_indices = @transform_4, window_bounds = array<i64: 1, 38, 2116>}, {transform_indices = @transform_5, window_bounds = array<i64: 1, 38, 2116>}, {transform_indices = @transform_6, window_bounds = array<i64: 1, 19, 2116>}, {transform_indices = @transform_7, window_bounds = array<i64: 1, 19, 2116>}, {transform_indices = @transform_8, window_bounds = array<i64: 1, 19, 2116>}, {transform_indices = @transform_9, window_bounds = array<i64: 1, 19, 2116>}, {transform_indices = @transform_10, window_bounds = array<i64: 1, 19, 2116>}, {transform_indices = @transform_11, window_bounds = array<i64: 1, 19, 2116>}, {transform_indices = @transform_12, window_bounds = array<i64: 1, 38, 2116>}, {transform_indices = @transform_13, window_bounds = array<i64: 1, 38, 2116>}, {transform_indices = @transform_14, window_bounds = array<i64: 1, 19, 2116>}, {transform_indices = @transform_15, window_bounds = array<i64: 1, 19, 2116>}, {transform_indices = @transform_16, window_bounds = array<i64: 1, 8, 128>}]} {
    %c0 = arith.constant 0 : index
    %c0_0 = arith.constant 0 : index
    %c0_1 = arith.constant 0 : index
    %0 = vector.load %arg14[%c0, %c0_0, %c0_1] : memref<1x38x2116xf32, #tpu.memory_space<vmem>>, vector<1x38x2116xf32>
    %c0_2 = arith.constant 0 : index
    %c0_3 = arith.constant 0 : index
    %c0_4 = arith.constant 0 : index
    %1 = vector.load %arg13[%c0_2, %c0_3, %c0_4] : memref<1x38x2116xf32, #tpu.memory_space<vmem>>, vector<1x38x2116xf32>
    %2 = arith.mulf %1, %0 : vector<1x38x2116xf32>
    %c0_5 = arith.constant 0 : index
    %c0_6 = arith.constant 0 : index
    %c0_7 = arith.constant 0 : index
    %3 = vector.load %arg1[%c0_5, %c0_6, %c0_7] : memref<1x38x2116xf32, #tpu.memory_space<vmem>>, vector<1x38x2116xf32>
    %4 = arith.mulf %3, %0 : vector<1x38x2116xf32>
    %5 = arith.subf %4, %2 : vector<1x38x2116xf32>
    %6 = arith.mulf %5, %5 : vector<1x38x2116xf32>
    %c0_8 = arith.constant 0 : index
    %c0_9 = arith.constant 0 : index
    %c0_10 = arith.constant 0 : index
    %7 = vector.load %arg2[%c0_8, %c0_9, %c0_10] : memref<1x38x2116xf32, #tpu.memory_space<vmem>>, vector<1x38x2116xf32>
    %8 = arith.mulf %7, %0 : vector<1x38x2116xf32>
    %9 = arith.subf %8, %2 : vector<1x38x2116xf32>
    %10 = arith.mulf %9, %9 : vector<1x38x2116xf32>
    %11 = arith.addf %6, %10 : vector<1x38x2116xf32>
    %c0_11 = arith.constant 0 : index
    %c0_12 = arith.constant 0 : index
    %c0_13 = arith.constant 0 : index
    %12 = vector.load %arg3[%c0_11, %c0_12, %c0_13] : memref<1x38x2116xf32, #tpu.memory_space<vmem>>, vector<1x38x2116xf32>
    %13 = arith.mulf %12, %0 : vector<1x38x2116xf32>
    %14 = arith.subf %13, %2 : vector<1x38x2116xf32>
    %15 = arith.mulf %14, %14 : vector<1x38x2116xf32>
    %16 = arith.addf %11, %15 : vector<1x38x2116xf32>
    %c0_14 = arith.constant 0 : index
    %c0_15 = arith.constant 0 : index
    %c0_16 = arith.constant 0 : index
    %17 = vector.load %arg4[%c0_14, %c0_15, %c0_16] : memref<1x38x2116xf32, #tpu.memory_space<vmem>>, vector<1x38x2116xf32>
    %18 = arith.mulf %17, %0 : vector<1x38x2116xf32>
    %19 = arith.subf %18, %2 : vector<1x38x2116xf32>
    %20 = arith.mulf %19, %19 : vector<1x38x2116xf32>
    %21 = arith.addf %16, %20 : vector<1x38x2116xf32>
    %c0_17 = arith.constant 0 : index
    %c0_18 = arith.constant 0 : index
    %c0_19 = arith.constant 0 : index
    %22 = vector.load %arg5[%c0_17, %c0_18, %c0_19] : memref<1x38x2116xf32, #tpu.memory_space<vmem>>, vector<1x38x2116xf32>
    %23 = arith.mulf %22, %0 : vector<1x38x2116xf32>
    %24 = arith.subf %23, %2 : vector<1x38x2116xf32>
    %25 = arith.mulf %24, %24 : vector<1x38x2116xf32>
    %26 = arith.addf %21, %25 : vector<1x38x2116xf32>
    %c0_20 = arith.constant 0 : index
    %c0_21 = arith.constant 0 : index
    %c0_22 = arith.constant 0 : index
    %27 = vector.load %arg6[%c0_20, %c0_21, %c0_22] : memref<1x38x2116xf32, #tpu.memory_space<vmem>>, vector<1x38x2116xf32>
    %28 = arith.mulf %27, %0 : vector<1x38x2116xf32>
    %29 = arith.subf %28, %2 : vector<1x38x2116xf32>
    %30 = arith.mulf %29, %29 : vector<1x38x2116xf32>
    %31 = arith.addf %26, %30 : vector<1x38x2116xf32>
    %32 = vector.shape_cast %31 : vector<1x38x2116xf32> to vector<1x1x38x2116xf32>
    %cst = arith.constant dense<0.000000e+00> : vector<1xf32>
    %33 = vector.multi_reduction <add>, %32, %cst [1, 2, 3] : vector<1x1x38x2116xf32> to vector<1xf32>
    %34 = vector.shape_cast %33 : vector<1xf32> to vector<1x1x1x1xf32>
    %35 = vector.extract %34[0, 0, 0, 0] : f32 from vector<1x1x1x1xf32>
    %c0_23 = arith.constant 0 : index
    %c0_24 = arith.constant 0 : index
    %c0_25 = arith.constant 0 : index
    %36 = vector.load %arg16[%c0_23, %c0_24, %c0_25] : memref<1x19x2116xf32, #tpu.memory_space<vmem>>, vector<1x19x2116xf32>
    %c0_26 = arith.constant 0 : index
    %c0_27 = arith.constant 0 : index
    %c0_28 = arith.constant 0 : index
    %37 = vector.load %arg15[%c0_26, %c0_27, %c0_28] : memref<1x19x2116xf32, #tpu.memory_space<vmem>>, vector<1x19x2116xf32>
    %38 = arith.mulf %37, %36 : vector<1x19x2116xf32>
    %c0_29 = arith.constant 0 : index
    %c0_30 = arith.constant 0 : index
    %c0_31 = arith.constant 0 : index
    %39 = vector.load %arg7[%c0_29, %c0_30, %c0_31] : memref<1x19x2116xf32, #tpu.memory_space<vmem>>, vector<1x19x2116xf32>
    %40 = arith.mulf %39, %36 : vector<1x19x2116xf32>
    %41 = arith.subf %40, %38 : vector<1x19x2116xf32>
    %42 = arith.mulf %41, %41 : vector<1x19x2116xf32>
    %c0_32 = arith.constant 0 : index
    %c0_33 = arith.constant 0 : index
    %c0_34 = arith.constant 0 : index
    %43 = vector.load %arg8[%c0_32, %c0_33, %c0_34] : memref<1x19x2116xf32, #tpu.memory_space<vmem>>, vector<1x19x2116xf32>
    %44 = arith.mulf %43, %36 : vector<1x19x2116xf32>
    %45 = arith.subf %44, %38 : vector<1x19x2116xf32>
    %46 = arith.mulf %45, %45 : vector<1x19x2116xf32>
    %47 = arith.addf %42, %46 : vector<1x19x2116xf32>
    %c0_35 = arith.constant 0 : index
    %c0_36 = arith.constant 0 : index
    %c0_37 = arith.constant 0 : index
    %48 = vector.load %arg9[%c0_35, %c0_36, %c0_37] : memref<1x19x2116xf32, #tpu.memory_space<vmem>>, vector<1x19x2116xf32>
    %49 = arith.mulf %48, %36 : vector<1x19x2116xf32>
    %50 = arith.subf %49, %38 : vector<1x19x2116xf32>
    %51 = arith.mulf %50, %50 : vector<1x19x2116xf32>
    %52 = arith.addf %47, %51 : vector<1x19x2116xf32>
    %c0_38 = arith.constant 0 : index
    %c0_39 = arith.constant 0 : index
    %c0_40 = arith.constant 0 : index
    %53 = vector.load %arg10[%c0_38, %c0_39, %c0_40] : memref<1x19x2116xf32, #tpu.memory_space<vmem>>, vector<1x19x2116xf32>
    %54 = arith.mulf %53, %36 : vector<1x19x2116xf32>
    %55 = arith.subf %54, %38 : vector<1x19x2116xf32>
    %56 = arith.mulf %55, %55 : vector<1x19x2116xf32>
    %57 = arith.addf %52, %56 : vector<1x19x2116xf32>
    %c0_41 = arith.constant 0 : index
    %c0_42 = arith.constant 0 : index
    %c0_43 = arith.constant 0 : index
    %58 = vector.load %arg11[%c0_41, %c0_42, %c0_43] : memref<1x19x2116xf32, #tpu.memory_space<vmem>>, vector<1x19x2116xf32>
    %59 = arith.mulf %58, %36 : vector<1x19x2116xf32>
    %60 = arith.subf %59, %38 : vector<1x19x2116xf32>
    %61 = arith.mulf %60, %60 : vector<1x19x2116xf32>
    %62 = arith.addf %57, %61 : vector<1x19x2116xf32>
    %c0_44 = arith.constant 0 : index
    %c0_45 = arith.constant 0 : index
    %c0_46 = arith.constant 0 : index
    %63 = vector.load %arg12[%c0_44, %c0_45, %c0_46] : memref<1x19x2116xf32, #tpu.memory_space<vmem>>, vector<1x19x2116xf32>
    %64 = arith.mulf %63, %36 : vector<1x19x2116xf32>
    %65 = arith.subf %64, %38 : vector<1x19x2116xf32>
    %66 = arith.mulf %65, %65 : vector<1x19x2116xf32>
    %67 = arith.addf %62, %66 : vector<1x19x2116xf32>
    %68 = vector.shape_cast %67 : vector<1x19x2116xf32> to vector<1x1x19x2116xf32>
    %cst_47 = arith.constant dense<0.000000e+00> : vector<1xf32>
    %69 = vector.multi_reduction <add>, %68, %cst_47 [1, 2, 3] : vector<1x1x19x2116xf32> to vector<1xf32>
    %70 = vector.shape_cast %69 : vector<1xf32> to vector<1x1x1x1xf32>
    %71 = vector.extract %70[0, 0, 0, 0] : f32 from vector<1x1x1x1xf32>
    %72 = tpu.iota {dimensions = array<i32: 1>} : vector<1x8x128xi32>
    %73 = tpu.iota {dimensions = array<i32: 2>} : vector<1x8x128xi32>
    %c0_i32 = arith.constant 0 : i32
    %74 = vector.broadcast %c0_i32 : i32 to vector<1x8x128xi32>
    %75 = arith.cmpi eq, %72, %74 : vector<1x8x128xi32>
    %c0_i32_48 = arith.constant 0 : i32
    %76 = vector.broadcast %c0_i32_48 : i32 to vector<1x8x128xi32>
    %77 = arith.cmpi eq, %73, %76 : vector<1x8x128xi32>
    %78 = arith.andi %75, %77 : vector<1x8x128xi1>
    %cst_49 = arith.constant 0.000000e+00 : f32
    %79 = vector.broadcast %35 : f32 to vector<1x8x128xf32>
    %80 = vector.broadcast %cst_49 : f32 to vector<1x8x128xf32>
    %81 = arith.select %78, %79, %80 : vector<1x8x128xi1>, vector<1x8x128xf32>
    %c0_i32_50 = arith.constant 0 : i32
    %82 = vector.broadcast %c0_i32_50 : i32 to vector<1x8x128xi32>
    %83 = arith.cmpi eq, %72, %82 : vector<1x8x128xi32>
    %c1_i32 = arith.constant 1 : i32
    %84 = vector.broadcast %c1_i32 : i32 to vector<1x8x128xi32>
    %85 = arith.cmpi eq, %73, %84 : vector<1x8x128xi32>
    %86 = arith.andi %83, %85 : vector<1x8x128xi1>
    %87 = vector.broadcast %71 : f32 to vector<1x8x128xf32>
    %88 = arith.select %86, %87, %81 : vector<1x8x128xi1>, vector<1x8x128xf32>
    %c0_51 = arith.constant 0 : index
    %c0_52 = arith.constant 0 : index
    %c0_53 = arith.constant 0 : index
    %89 = vector.load %arg17[%c0_51, %c0_52, %c0_53] : memref<1x8x128xf32, #tpu.memory_space<vmem>>, vector<1x8x128xf32>
    tpu.vector_store %arg17[%c0_51, %c0_52, %c0_53], %88 {strides = array<i32>} : memref<1x8x128xf32, #tpu.memory_space<vmem>>, vector<1x8x128xf32>,
    return
  }
  func.func @transform_0(%arg0: i32) -> (i32, i32, i32) {
    %c0_i32 = arith.constant 0 : i32
    %c0_i32_0 = arith.constant 0 : i32
    %c0_i32_1 = arith.constant 0 : i32
    return %arg0, %c0_i32, %c0_i32_0 : i32, i32, i32
  }
  func.func @transform_1(%arg0: i32) -> (i32, i32, i32) {
    %c0_i32 = arith.constant 0 : i32
    %c0_i32_0 = arith.constant 0 : i32
    %c0_i32_1 = arith.constant 0 : i32
    return %arg0, %c0_i32, %c0_i32_0 : i32, i32, i32
  }
  func.func @transform_2(%arg0: i32) -> (i32, i32, i32) {
    %c0_i32 = arith.constant 0 : i32
    %c0_i32_0 = arith.constant 0 : i32
    %c0_i32_1 = arith.constant 0 : i32
    return %arg0, %c0_i32, %c0_i32_0 : i32, i32, i32
  }
  func.func @transform_3(%arg0: i32) -> (i32, i32, i32) {
    %c0_i32 = arith.constant 0 : i32
    %c0_i32_0 = arith.constant 0 : i32
    %c0_i32_1 = arith.constant 0 : i32
    return %arg0, %c0_i32, %c0_i32_0 : i32, i32, i32
  }
  func.func @transform_4(%arg0: i32) -> (i32, i32, i32) {
    %c0_i32 = arith.constant 0 : i32
    %c0_i32_0 = arith.constant 0 : i32
    %c0_i32_1 = arith.constant 0 : i32
    return %arg0, %c0_i32, %c0_i32_0 : i32, i32, i32
  }
  func.func @transform_5(%arg0: i32) -> (i32, i32, i32) {
    %c0_i32 = arith.constant 0 : i32
    %c0_i32_0 = arith.constant 0 : i32
    %c0_i32_1 = arith.constant 0 : i32
    return %arg0, %c0_i32, %c0_i32_0 : i32, i32, i32
  }
  func.func @transform_6(%arg0: i32) -> (i32, i32, i32) {
    %c0_i32 = arith.constant 0 : i32
    %c0_i32_0 = arith.constant 0 : i32
    %c0_i32_1 = arith.constant 0 : i32
    return %arg0, %c0_i32, %c0_i32_0 : i32, i32, i32
  }
  func.func @transform_7(%arg0: i32) -> (i32, i32, i32) {
    %c0_i32 = arith.constant 0 : i32
    %c0_i32_0 = arith.constant 0 : i32
    %c0_i32_1 = arith.constant 0 : i32
    return %arg0, %c0_i32, %c0_i32_0 : i32, i32, i32
  }
  func.func @transform_8(%arg0: i32) -> (i32, i32, i32) {
    %c0_i32 = arith.constant 0 : i32
    %c0_i32_0 = arith.constant 0 : i32
    %c0_i32_1 = arith.constant 0 : i32
    return %arg0, %c0_i32, %c0_i32_0 : i32, i32, i32
  }
  func.func @transform_9(%arg0: i32) -> (i32, i32, i32) {
    %c0_i32 = arith.constant 0 : i32
    %c0_i32_0 = arith.constant 0 : i32
    %c0_i32_1 = arith.constant 0 : i32
    return %arg0, %c0_i32, %c0_i32_0 : i32, i32, i32
  }
  func.func @transform_10(%arg0: i32) -> (i32, i32, i32) {
    %c0_i32 = arith.constant 0 : i32
    %c0_i32_0 = arith.constant 0 : i32
    %c0_i32_1 = arith.constant 0 : i32
    return %arg0, %c0_i32, %c0_i32_0 : i32, i32, i32
  }
  func.func @transform_11(%arg0: i32) -> (i32, i32, i32) {
    %c0_i32 = arith.constant 0 : i32
    %c0_i32_0 = arith.constant 0 : i32
    %c0_i32_1 = arith.constant 0 : i32
    return %arg0, %c0_i32, %c0_i32_0 : i32, i32, i32
  }
  func.func @transform_12(%arg0: i32) -> (i32, i32, i32) {
    %c0_i32 = arith.constant 0 : i32
    %c0_i32_0 = arith.constant 0 : i32
    %c0_i32_1 = arith.constant 0 : i32
    return %arg0, %c0_i32, %c0_i32_0 : i32, i32, i32
  }
  func.func @transform_13(%arg0: i32) -> (i32, i32, i32) {
    %c0_i32 = arith.constant 0 : i32
    %c0_i32_0 = arith.constant 0 : i32
    %c0_i32_1 = arith.constant 0 : i32
    return %arg0, %c0_i32, %c0_i32_0 : i32, i32, i32
  }
  func.func @transform_14(%arg0: i32) -> (i32, i32, i32) {
    %c0_i32 = arith.constant 0 : i32
    %c0_i32_0 = arith.constant 0 : i32
    %c0_i32_1 = arith.constant 0 : i32
    return %arg0, %c0_i32, %c0_i32_0 : i32, i32, i32
  }
  func.func @transform_15(%arg0: i32) -> (i32, i32, i32) {
    %c0_i32 = arith.constant 0 : i32
    %c0_i32_0 = arith.constant 0 : i32
    %c0_i32_1 = arith.constant 0 : i32
    return %arg0, %c0_i32, %c0_i32_0 : i32, i32, i32
  }
  func.func @transform_16(%arg0: i32) -> (i32, i32, i32) {
    %c0_i32 = arith.constant 0 : i32
    %c0_i32_0 = arith.constant 0 : i32
    %c0_i32_1 = arith.constant 0 : i32
    return %arg0, %c0_i32, %c0_i32_0 : i32, i32, i32
  }
}

</mosaic_0001>

<llo_original>
// kernel: openpose_loss.1
$region0: #{openpose_loss.1}
  #allocation0 [shape = 'u32[]', space=smem, size = 0x4, offset = 0x4, fixed_abs, tag = 'smem constant byte address 0x4 - core index']
  #allocation1 [shape = 'u32[72,128]{1,0:T(1,128)}', space=vmem, size = 0x9000, scoped, tag = 'internal scratch']
  %s0 = inlined_call_operand.vmem [shape: f32[2,38,2116], index: 0, kind: input, shape index: {}]
  %s1 = inlined_call_operand.vmem [shape: f32[2,38,2116], index: 1, kind: input, shape index: {}]
  %s2 = inlined_call_operand.vmem [shape: f32[2,38,2116], index: 2, kind: input, shape index: {}]
  %s3 = inlined_call_operand.vmem [shape: f32[2,38,2116], index: 3, kind: input, shape index: {}]
  %s4 = inlined_call_operand.vmem [shape: f32[2,38,2116], index: 4, kind: input, shape index: {}]
  %s5 = inlined_call_operand.vmem [shape: f32[2,38,2116], index: 5, kind: input, shape index: {}]
  %s6 = inlined_call_operand.vmem [shape: f32[2,19,2116], index: 6, kind: input, shape index: {}]
  %s7 = inlined_call_operand.vmem [shape: f32[2,19,2116], index: 7, kind: input, shape index: {}]
  %s8 = inlined_call_operand.vmem [shape: f32[2,19,2116], index: 8, kind: input, shape index: {}]
  %s9 = inlined_call_operand.vmem [shape: f32[2,19,2116], index: 9, kind: input, shape index: {}]
  %s10 = inlined_call_operand.vmem [shape: f32[2,19,2116], index: 10, kind: input, shape index: {}]
  %s11 = inlined_call_operand.vmem [shape: f32[2,19,2116], index: 11, kind: input, shape index: {}]
  %s12 = inlined_call_operand.vmem [shape: f32[2,38,2116], index: 12, kind: input, shape index: {}]
  %s13 = inlined_call_operand.vmem [shape: f32[2,38,2116], index: 13, kind: input, shape index: {}]
  %s14 = inlined_call_operand.vmem [shape: f32[2,19,2116], index: 14, kind: input, shape index: {}]
  %s15 = inlined_call_operand.vmem [shape: f32[2,19,2116], index: 15, kind: input, shape index: {}]
  %s16 = inlined_call_operand.vmem [shape: f32[2,8,128], index: 16, kind: output, shape index: {}]
  %s17 = sld [smem:[#allocation0]]
  $region97: #{openpose_loss.1} parent=0
    _
  %s19 = ssub.s32 1, %s17
  %s20 = scalar_select 0, %s19, %s17
  loop: start=0, step=1, limit=4
  $region2: #{openpose_loss.1} parent=0 // loop_pre_header
    _
  $region3: #{openpose_loss.1} parent=0 // loop_header
    %s22 = sphi 0, %s26
    %p23 = scmp.ge.s32.totalorder %s22, 4
    %s32 = sphi 0, %s34
    %s35 = sphi 0, %s32
    %s36 = sphi 0, %s35
    %s52 = sphi 0, %s36
    %s58 = sphi 0, %s60
    %s61 = sphi 0, %s58
    %s62 = sphi 0, %s61
    %s78 = sphi 0, %s62
    %s84 = sphi 0, %s86
    %s87 = sphi 0, %s84
    %s88 = sphi 0, %s87
    %s104 = sphi 0, %s88
    %s110 = sphi 0, %s112
    %s113 = sphi 0, %s110
    %s114 = sphi 0, %s113
    %s130 = sphi 0, %s114
    %s136 = sphi 0, %s138
    %s139 = sphi 0, %s136
    %s140 = sphi 0, %s139
    %s156 = sphi 0, %s140
    %s162 = sphi 0, %s164
    %s165 = sphi 0, %s162
    %s166 = sphi 0, %s165
    %s182 = sphi 0, %s166
    %s188 = sphi 0, %s190
    %s191 = sphi 0, %s188
    %s192 = sphi 0, %s191
    %s208 = sphi 0, %s192
    %s214 = sphi 0, %s216
    %s217 = sphi 0, %s214
    %s218 = sphi 0, %s217
    %s234 = sphi 0, %s218
    %s240 = sphi 0, %s242
    %s243 = sphi 0, %s240
    %s244 = sphi 0, %s243
    %s260 = sphi 0, %s244
    %s266 = sphi 0, %s268
    %s269 = sphi 0, %s266
    %s270 = sphi 0, %s269
    %s286 = sphi 0, %s270
    %s292 = sphi 0, %s294
    %s295 = sphi 0, %s292
    %s296 = sphi 0, %s295
    %s312 = sphi 0, %s296
    %s318 = sphi 0, %s320
    %s321 = sphi 0, %s318
    %s322 = sphi 0, %s321
    %s338 = sphi 0, %s322
    %s344 = sphi 0, %s346
    %s347 = sphi 0, %s344
    %s348 = sphi 0, %s347
    %s364 = sphi 0, %s348
    %s370 = sphi 0, %s372
    %s373 = sphi 0, %s370
    %s374 = sphi 0, %s373
    %s390 = sphi 0, %s374
    %s396 = sphi 0, %s398
    %s399 = sphi 0, %s396
    %s400 = sphi 0, %s399
    %s416 = sphi 0, %s400
    %s422 = sphi 0, %s424
    %s425 = sphi 0, %s422
    %s426 = sphi 0, %s425
    %s442 = sphi 0, %s426
    %s448 = sphi 0, %s450
    %s451 = sphi 0, %s448
    %s452 = sphi 0, %s451
    %s468 = sphi 0, %s452
  $region4: #{openpose_loss.1} parent=0 // loop_header_branch
    %25 = sbr.rel (%p23) target = $region8
  $region5: #{openpose_loss.1} parent=0 // loop_body
    %s27 = ssub.s32 %s22, 1
    %s28 = ssub.s32 %s22, 2
    %s29 = sadd.s32 %s22, 1
    %s30 = ssub.s32 %s22, %s29
    %p31 = scmp.eq.s32.totalorder %s30, 0
    %s33 = sadd.s32 %s32, 1
    %s34 = scalar_select %p31, %s32, %s33
    %p37 = pneg %p31
    %p38 = scmp.eq.s32.totalorder %s22, 1
    %p39 = por %p37, %p38
    %p40 = scmp.ne.s32.totalorder %s32, %s35
    %p41 = scmp.eq.s32.totalorder %s22, 0
    %p42 = por %p40, %p41
    %p43 = scmp.ne.s32.totalorder %s32, %s35
    %p44 = scmp.eq.s32.totalorder %s27, 1
    %p45 = por %p43, %p44
    %p46 = scmp.ne.s32.totalorder %s35, %s36
    %p47 = scmp.eq.s32.totalorder %s27, 0
    %p48 = por %p46, %p47
    %p49 = scmp.ne.s32.totalorder %s35, %s36
    %p50 = scmp.eq.s32.totalorder %s28, 1
    %p51 = por %p49, %p50
    %p53 = scmp.ne.s32.totalorder %s36, %s52
    %p54 = scmp.eq.s32.totalorder %s28, 0
    %p55 = por %p53, %p54
    %s56 = ssub.s32 %s22, %s29
    %p57 = scmp.eq.s32.totalorder %s56, 0
    %s59 = sadd.s32 %s58, 1
    %s60 = scalar_select %p57, %s58, %s59
    %p63 = pneg %p57
    %p64 = scmp.eq.s32.totalorder %s22, 1
    %p65 = por %p63, %p64
    %p66 = scmp.ne.s32.totalorder %s58, %s61
    %p67 = scmp.eq.s32.totalorder %s22, 0
    %p68 = por %p66, %p67
    %p69 = scmp.ne.s32.totalorder %s58, %s61
    %p70 = scmp.eq.s32.totalorder %s27, 1
    %p71 = por %p69, %p70
    %p72 = scmp.ne.s32.totalorder %s61, %s62
    %p73 = scmp.eq.s32.totalorder %s27, 0
    %p74 = por %p72, %p73
    %p75 = scmp.ne.s32.totalorder %s61, %s62
    %p76 = scmp.eq.s32.totalorder %s28, 1
    %p77 = por %p75, %p76
    %p79 = scmp.ne.s32.totalorder %s62, %s78
    %p80 = scmp.eq.s32.totalorder %s28, 0
    %p81 = por %p79, %p80
    %s82 = ssub.s32 %s22, %s29
    %p83 = scmp.eq.s32.totalorder %s82, 0
    %s85 = sadd.s32 %s84, 1
    %s86 = scalar_select %p83, %s84, %s85
    %p89 = pneg %p83
    %p90 = scmp.eq.s32.totalorder %s22, 1
    %p91 = por %p89, %p90
    %p92 = scmp.ne.s32.totalorder %s84, %s87
    %p93 = scmp.eq.s32.totalorder %s22, 0
    %p94 = por %p92, %p93
    %p95 = scmp.ne.s32.totalorder %s84, %s87
    %p96 = scmp.eq.s32.totalorder %s27, 1
    %p97 = por %p95, %p96
    %p98 = scmp.ne.s32.totalorder %s87, %s88
    %p99 = scmp.eq.s32.totalorder %s27, 0
    %p100 = por %p98, %p99
    %p101 = scmp.ne.s32.totalorder %s87, %s88
    %p102 = scmp.eq.s32.totalorder %s28, 1
    %p103 = por %p101, %p102
    %p105 = scmp.ne.s32.totalorder %s88, %s104
    %p106 = scmp.eq.s32.totalorder %s28, 0
    %p107 = por %p105, %p106
    %s108 = ssub.s32 %s22, %s29
    %p109 = scmp.eq.s32.totalorder %s108, 0
    %s111 = sadd.s32 %s110, 1
    %s112 = scalar_select %p109, %s110, %s111
    %p115 = pneg %p109
    %p116 = scmp.eq.s32.totalorder %s22, 1
    %p117 = por %p115, %p116
    %p118 = scmp.ne.s32.totalorder %s110, %s113
    %p119 = scmp.eq.s32.totalorder %s22, 0
    %p120 = por %p118, %p119
    %p121 = scmp.ne.s32.totalorder %s110, %s113
    %p122 = scmp.eq.s32.totalorder %s27, 1
    %p123 = por %p121, %p122
    %p124 = scmp.ne.s32.totalorder %s113, %s114
    %p125 = scmp.eq.s32.totalorder %s27, 0
    %p126 = por %p124, %p125
    %p127 = scmp.ne.s32.totalorder %s113, %s114
    %p128 = scmp.eq.s32.totalorder %s28, 1
    %p129 = por %p127, %p128
    %p131 = scmp.ne.s32.totalorder %s114, %s130
    %p132 = scmp.eq.s32.totalorder %s28, 0
    %p133 = por %p131, %p132
    %s134 = ssub.s32 %s22, %s29
    %p135 = scmp.eq.s32.totalorder %s134, 0
    %s137 = sadd.s32 %s136, 1
    %s138 = scalar_select %p135, %s136, %s137
    %p141 = pneg %p135
    %p142 = scmp.eq.s32.totalorder %s22, 1
    %p143 = por %p141, %p142
    %p144 = scmp.ne.s32.totalorder %s136, %s139
    %p145 = scmp.eq.s32.totalorder %s22, 0
    %p146 = por %p144, %p145
    %p147 = scmp.ne.s32.totalorder %s136, %s139
    %p148 = scmp.eq.s32.totalorder %s27, 1
    %p149 = por %p147, %p148
    %p150 = scmp.ne.s32.totalorder %s139, %s140
    %p151 = scmp.eq.s32.totalorder %s27, 0
    %p152 = por %p150, %p151
    %p153 = scmp.ne.s32.totalorder %s139, %s140
    %p154 = scmp.eq.s32.totalorder %s28, 1
    %p155 = por %p153, %p154
    %p157 = scmp.ne.s32.totalorder %s140, %s156
    %p158 = scmp.eq.s32.totalorder %s28, 0
    %p159 = por %p157, %p158
    %s160 = ssub.s32 %s22, %s29
    %p161 = scmp.eq.s32.totalorder %s160, 0
    %s163 = sadd.s32 %s162, 1
    %s164 = scalar_select %p161, %s162, %s163
    %p167 = pneg %p161
    %p168 = scmp.eq.s32.totalorder %s22, 1
    %p169 = por %p167, %p168
    %p170 = scmp.ne.s32.totalorder %s162, %s165
    %p171 = scmp.eq.s32.totalorder %s22, 0
    %p172 = por %p170, %p171
    %p173 = scmp.ne.s32.totalorder %s162, %s165
    %p174 = scmp.eq.s32.totalorder %s27, 1
    %p175 = por %p173, %p174
    %p176 = scmp.ne.s32.totalorder %s165, %s166
    %p177 = scmp.eq.s32.totalorder %s27, 0
    %p178 = por %p176, %p177
    %p179 = scmp.ne.s32.totalorder %s165, %s166
    %p180 = scmp.eq.s32.totalorder %s28, 1
    %p181 = por %p179, %p180
    %p183 = scmp.ne.s32.totalorder %s166, %s182
    %p184 = scmp.eq.s32.totalorder %s28, 0
    %p185 = por %p183, %p184
    %s186 = ssub.s32 %s22, %s29
    %p187 = scmp.eq.s32.totalorder %s186, 0
    %s189 = sadd.s32 %s188, 1
    %s190 = scalar_select %p187, %s188, %s189
    %p193 = pneg %p187
    %p194 = scmp.eq.s32.totalorder %s22, 1
    %p195 = por %p193, %p194
    %p196 = scmp.ne.s32.totalorder %s188, %s191
    %p197 = scmp.eq.s32.totalorder %s22, 0
    %p198 = por %p196, %p197
    %p199 = scmp.ne.s32.totalorder %s188, %s191
    %p200 = scmp.eq.s32.totalorder %s27, 1
    %p201 = por %p199, %p200
    %p202 = scmp.ne.s32.totalorder %s191, %s192
    %p203 = scmp.eq.s32.totalorder %s27, 0
    %p204 = por %p202, %p203
    %p205 = scmp.ne.s32.totalorder %s191, %s192
    %p206 = scmp.eq.s32.totalorder %s28, 1
    %p207 = por %p205, %p206
    %p209 = scmp.ne.s32.totalorder %s192, %s208
    %p210 = scmp.eq.s32.totalorder %s28, 0
    %p211 = por %p209, %p210
    %s212 = ssub.s32 %s22, %s29
    %p213 = scmp.eq.s32.totalorder %s212, 0
    %s215 = sadd.s32 %s214, 1
    %s216 = scalar_select %p213, %s214, %s215
    %p219 = pneg %p213
    %p220 = scmp.eq.s32.totalorder %s22, 1
    %p221 = por %p219, %p220
    %p222 = scmp.ne.s32.totalorder %s214, %s217
    %p223 = scmp.eq.s32.totalorder %s22, 0
    %p224 = por %p222, %p223
    %p225 = scmp.ne.s32.totalorder %s214, %s217
    %p226 = scmp.eq.s32.totalorder %s27, 1
    %p227 = por %p225, %p226
    %p228 = scmp.ne.s32.totalorder %s217, %s218
    %p229 = scmp.eq.s32.totalorder %s27, 0
    %p230 = por %p228, %p229
    %p231 = scmp.ne.s32.totalorder %s217, %s218
    %p232 = scmp.eq.s32.totalorder %s28, 1
    %p233 = por %p231, %p232
    %p235 = scmp.ne.s32.totalorder %s218, %s234
    %p236 = scmp.eq.s32.totalorder %s28, 0
    %p237 = por %p235, %p236
    %s238 = ssub.s32 %s22, %s29
    %p239 = scmp.eq.s32.totalorder %s238, 0
    %s241 = sadd.s32 %s240, 1
    %s242 = scalar_select %p239, %s240, %s241
    %p245 = pneg %p239
    %p246 = scmp.eq.s32.totalorder %s22, 1
    %p247 = por %p245, %p246
    %p248 = scmp.ne.s32.totalorder %s240, %s243
    %p249 = scmp.eq.s32.totalorder %s22, 0
    %p250 = por %p248, %p249
    %p251 = scmp.ne.s32.totalorder %s240, %s243
    %p252 = scmp.eq.s32.totalorder %s27, 1
    %p253 = por %p251, %p252
    %p254 = scmp.ne.s32.totalorder %s243, %s244
    %p255 = scmp.eq.s32.totalorder %s27, 0
    %p256 = por %p254, %p255
    %p257 = scmp.ne.s32.totalorder %s243, %s244
    %p258 = scmp.eq.s32.totalorder %s28, 1
    %p259 = por %p257, %p258
    %p261 = scmp.ne.s32.totalorder %s244, %s260
    %p262 = scmp.eq.s32.totalorder %s28, 0
    %p263 = por %p261, %p262
    %s264 = ssub.s32 %s22, %s29
    %p265 = scmp.eq.s32.totalorder %s264, 0
    %s267 = sadd.s32 %s266, 1
    %s268 = scalar_select %p265, %s266, %s267
    %p271 = pneg %p265
    %p272 = scmp.eq.s32.totalorder %s22, 1
    %p273 = por %p271, %p272
    %p274 = scmp.ne.s32.totalorder %s266, %s269
    %p275 = scmp.eq.s32.totalorder %s22, 0
    %p276 = por %p274, %p275
    %p277 = scmp.ne.s32.totalorder %s266, %s269
    %p278 = scmp.eq.s32.totalorder %s27, 1
    %p279 = por %p277, %p278
    %p280 = scmp.ne.s32.totalorder %s269, %s270
    %p281 = scmp.eq.s32.totalorder %s27, 0
    %p282 = por %p280, %p281
    %p283 = scmp.ne.s32.totalorder %s269, %s270
    %p284 = scmp.eq.s32.totalorder %s28, 1
    %p285 = por %p283, %p284
    %p287 = scmp.ne.s32.totalorder %s270, %s286
    %p288 = scmp.eq.s32.totalorder %s28, 0
    %p289 = por %p287, %p288
    %s290 = ssub.s32 %s22, %s29
    %p291 = scmp.eq.s32.totalorder %s290, 0
    %s293 = sadd.s32 %s292, 1
    %s294 = scalar_select %p291, %s292, %s293
    %p297 = pneg %p291
    %p298 = scmp.eq.s32.totalorder %s22, 1
    %p299 = por %p297, %p298
    %p300 = scmp.ne.s32.totalorder %s292, %s295
    %p301 = scmp.eq.s32.totalorder %s22, 0
    %p302 = por %p300, %p301
    %p303 = scmp.ne.s32.totalorder %s292, %s295
    %p304 = scmp.eq.s32.totalorder %s27, 1
    %p305 = por %p303, %p304
    %p306 = scmp.ne.s32.totalorder %s295, %s296
    %p307 = scmp.eq.s32.totalorder %s27, 0
    %p308 = por %p306, %p307
    %p309 = scmp.ne.s32.totalorder %s295, %s296
    %p310 = scmp.eq.s32.totalorder %s28, 1
    %p311 = por %p309, %p310
    %p313 = scmp.ne.s32.totalorder %s296, %s312
    %p314 = scmp.eq.s32.totalorder %s28, 0
    %p315 = por %p313, %p314
    %s316 = ssub.s32 %s22, %s29
    %p317 = scmp.eq.s32.totalorder %s316, 0
    %s319 = sadd.s32 %s318, 1
    %s320 = scalar_select %p317, %s318, %s319
    %p323 = pneg %p317
    %p324 = scmp.eq.s32.totalorder %s22, 1
    %p325 = por %p323, %p324
    %p326 = scmp.ne.s32.totalorder %s318, %s321
    %p327 = scmp.eq.s32.totalorder %s22, 0
    %p328 = por %p326, %p327
    %p329 = scmp.ne.s32.totalorder %s318, %s321
    %p330 = scmp.eq.s32.totalorder %s27, 1
    %p331 = por %p329, %p330
    %p332 = scmp.ne.s32.totalorder %s321, %s322
    %p333 = scmp.eq.s32.totalorder %s27, 0
    %p334 = por %p332, %p333
    %p335 = scmp.ne.s32.totalorder %s321, %s322
    %p336 = scmp.eq.s32.totalorder %s28, 1
    %p337 = por %p335, %p336
    %p339 = scmp.ne.s32.totalorder %s322, %s338
    %p340 = scmp.eq.s32.totalorder %s28, 0
    %p341 = por %p339, %p340
    %s342 = ssub.s32 %s22, %s29
    %p343 = scmp.eq.s32.totalorder %s342, 0
    %s345 = sadd.s32 %s344, 1
    %s346 = scalar_select %p343, %s344, %s345
    %p349 = pneg %p343
    %p350 = scmp.eq.s32.totalorder %s22, 1
    %p351 = por %p349, %p350
    %p352 = scmp.ne.s32.totalorder %s344, %s347
    %p353 = scmp.eq.s32.totalorder %s22, 0
    %p354 = por %p352, %p353
    %p355 = scmp.ne.s32.totalorder %s344, %s347
    %p356 = scmp.eq.s32.totalorder %s27, 1
    %p357 = por %p355, %p356
    %p358 = scmp.ne.s32.totalorder %s347, %s348
    %p359 = scmp.eq.s32.totalorder %s27, 0
    %p360 = por %p358, %p359
    %p361 = scmp.ne.s32.totalorder %s347, %s348
    %p362 = scmp.eq.s32.totalorder %s28, 1
    %p363 = por %p361, %p362
    %p365 = scmp.ne.s32.totalorder %s348, %s364
    %p366 = scmp.eq.s32.totalorder %s28, 0
    %p367 = por %p365, %p366
    %s368 = ssub.s32 %s22, %s29
    %p369 = scmp.eq.s32.totalorder %s368, 0
    %s371 = sadd.s32 %s370, 1
    %s372 = scalar_select %p369, %s370, %s371
    %p375 = pneg %p369
    %p376 = scmp.eq.s32.totalorder %s22, 1
    %p377 = por %p375, %p376
    %p378 = scmp.ne.s32.totalorder %s370, %s373
    %p379 = scmp.eq.s32.totalorder %s22, 0
    %p380 = por %p378, %p379
    %p381 = scmp.ne.s32.totalorder %s370, %s373
    %p382 = scmp.eq.s32.totalorder %s27, 1
    %p383 = por %p381, %p382
    %p384 = scmp.ne.s32.totalorder %s373, %s374
    %p385 = scmp.eq.s32.totalorder %s27, 0
    %p386 = por %p384, %p385
    %p387 = scmp.ne.s32.totalorder %s373, %s374
    %p388 = scmp.eq.s32.totalorder %s28, 1
    %p389 = por %p387, %p388
    %p391 = scmp.ne.s32.totalorder %s374, %s390
    %p392 = scmp.eq.s32.totalorder %s28, 0
    %p393 = por %p391, %p392
    %s394 = ssub.s32 %s22, %s29
    %p395 = scmp.eq.s32.totalorder %s394, 0
    %s397 = sadd.s32 %s396, 1
    %s398 = scalar_select %p395, %s396, %s397
    %p401 = pneg %p395
    %p402 = scmp.eq.s32.totalorder %s22, 1
    %p403 = por %p401, %p402
    %p404 = scmp.ne.s32.totalorder %s396, %s399
    %p405 = scmp.eq.s32.totalorder %s22, 0
    %p406 = por %p404, %p405
    %p407 = scmp.ne.s32.totalorder %s396, %s399
    %p408 = scmp.eq.s32.totalorder %s27, 1
    %p409 = por %p407, %p408
    %p410 = scmp.ne.s32.totalorder %s399, %s400
    %p411 = scmp.eq.s32.totalorder %s27, 0
    %p412 = por %p410, %p411
    %p413 = scmp.ne.s32.totalorder %s399, %s400
    %p414 = scmp.eq.s32.totalorder %s28, 1
    %p415 = por %p413, %p414
    %p417 = scmp.ne.s32.totalorder %s400, %s416
    %p418 = scmp.eq.s32.totalorder %s28, 0
    %p419 = por %p417, %p418
    %s420 = ssub.s32 %s22, %s29
    %p421 = scmp.eq.s32.totalorder %s420, 0
    %s423 = sadd.s32 %s422, 1
    %s424 = scalar_select %p421, %s422, %s423
    %p427 = pneg %p421
    %p428 = scmp.eq.s32.totalorder %s22, 1
    %p429 = por %p427, %p428
    %p430 = scmp.ne.s32.totalorder %s422, %s425
    %p431 = scmp.eq.s32.totalorder %s22, 0
    %p432 = por %p430, %p431
    %p433 = scmp.ne.s32.totalorder %s422, %s425
    %p434 = scmp.eq.s32.totalorder %s27, 1
    %p435 = por %p433, %p434
    %p436 = scmp.ne.s32.totalorder %s425, %s426
    %p437 = scmp.eq.s32.totalorder %s27, 0
    %p438 = por %p436, %p437
    %p439 = scmp.ne.s32.totalorder %s425, %s426
    %p440 = scmp.eq.s32.totalorder %s28, 1
    %p441 = por %p439, %p440
    %p443 = scmp.ne.s32.totalorder %s426, %s442
    %p444 = scmp.eq.s32.totalorder %s28, 0
    %p445 = por %p443, %p444
    %s446 = ssub.s32 %s22, %s29
    %p447 = scmp.eq.s32.totalorder %s446, 0
    %s449 = sadd.s32 %s448, 1
    %s450 = scalar_select %p447, %s448, %s449
    %p453 = pneg %p447
    %p454 = scmp.eq.s32.totalorder %s22, 1
    %p455 = por %p453, %p454
    %p456 = scmp.ne.s32.totalorder %s448, %s451
    %p457 = scmp.eq.s32.totalorder %s22, 0
    %p458 = por %p456, %p457
    %p459 = scmp.ne.s32.totalorder %s448, %s451
    %p460 = scmp.eq.s32.totalorder %s27, 1
    %p461 = por %p459, %p460
    %p462 = scmp.ne.s32.totalorder %s451, %s452
    %p463 = scmp.eq.s32.totalorder %s27, 0
    %p464 = por %p462, %p463
    %p465 = scmp.ne.s32.totalorder %s451, %s452
    %p466 = scmp.eq.s32.totalorder %s28, 1
    %p467 = por %p465, %p466
    %p469 = scmp.ne.s32.totalorder %s452, %s468
    %p470 = scmp.eq.s32.totalorder %s28, 0
    %p471 = por %p469, %p470
    %p472 = scmp.le.s32.totalorder 1, %s22
    %p473 = scmp.lt.s32.totalorder %s22, 3
    %p474 = pnand %p472, %p473
    %p475 = pneg %p474
    // Predicated region
    $region9: #{openpose_loss.1} parent=5 // pred_check
      _
    $region10: #{openpose_loss.1} parent=5 // pred_check_branch
      %477 = sbr.rel (%p474) target = $region12
    $region11: #{openpose_loss.1} parent=5 // pred_region
      %s478 = ssub.s32 %s22, 1
    $region12: #{openpose_loss.1} parent=5 // pred_fallthru
      _
    %p479 = scmp.lt.s32.totalorder %s22, 2
    // Predicated region
    $region13: #{openpose_loss.1} parent=5 // pred_check
      %p480 = pneg %p479
    $region14: #{openpose_loss.1} parent=5 // pred_check_branch
      %482 = sbr.rel (%p480) target = $region16
    $region15: #{openpose_loss.1} parent=5 // pred_region
      // Predicated region
      $region17: #{openpose_loss.1} parent=15 // pred_check
        %p483 = pneg %p42
      $region18: #{openpose_loss.1} parent=15 // pred_check_branch
        %485 = sbr.rel (%p483) target = $region20
      $region19: #{openpose_loss.1} parent=15 // pred_region
        %p486 = scmp.lt.s32.totalorder %s22, 1
        %s487 = scalar_select %p486, %s22, 1
        %s488 = smul.addr %s487, 85
        %s489 = smul.addr %s488, 8
        %s490 = scalar_lea.vmem %s0, %s489
      $region20: #{openpose_loss.1} parent=15 // pred_fallthru
        _
      // Predicated region
      $region21: #{openpose_loss.1} parent=15 // pred_check
        %p491 = pneg %p68
      $region22: #{openpose_loss.1} parent=15 // pred_check_branch
        %493 = sbr.rel (%p491) target = $region24
      $region23: #{openpose_loss.1} parent=15 // pred_region
        %p494 = scmp.lt.s32.totalorder %s22, 1
        %s495 = scalar_select %p494, %s22, 1
        %s496 = smul.addr %s495, 85
        %s497 = smul.addr %s496, 8
        %s498 = scalar_lea.vmem %s1, %s497
      $region24: #{openpose_loss.1} parent=15 // pred_fallthru
        _
      // Predicated region
      $region25: #{openpose_loss.1} parent=15 // pred_check
        %p499 = pneg %p94
      $region26: #{openpose_loss.1} parent=15 // pred_check_branch
        %501 = sbr.rel (%p499) target = $region28
      $region27: #{openpose_loss.1} parent=15 // pred_region
        %p502 = scmp.lt.s32.totalorder %s22, 1
        %s503 = scalar_select %p502, %s22, 1
        %s504 = smul.addr %s503, 85
        %s505 = smul.addr %s504, 8
        %s506 = scalar_lea.vmem %s2, %s505
      $region28: #{openpose_loss.1} parent=15 // pred_fallthru
        _
      // Predicated region
      $region29: #{openpose_loss.1} parent=15 // pred_check
        %p507 = pneg %p120
      $region30: #{openpose_loss.1} parent=15 // pred_check_branch
        %509 = sbr.rel (%p507) target = $region32
      $region31: #{openpose_loss.1} parent=15 // pred_region
        %p510 = scmp.lt.s32.totalorder %s22, 1
        %s511 = scalar_select %p510, %s22, 1
        %s512 = smul.addr %s511, 85
        %s513 = smul.addr %s512, 8
        %s514 = scalar_lea.vmem %s3, %s513
      $region32: #{openpose_loss.1} parent=15 // pred_fallthru
        _
      // Predicated region
      $region33: #{openpose_loss.1} parent=15 // pred_check
        %p515 = pneg %p146
      $region34: #{openpose_loss.1} parent=15 // pred_check_branch
        %517 = sbr.rel (%p515) target = $region36
      $region35: #{openpose_loss.1} parent=15 // pred_region
        %p518 = scmp.lt.s32.totalorder %s22, 1
        %s519 = scalar_select %p518, %s22, 1
        %s520 = smul.addr %s519, 85
        %s521 = smul.addr %s520, 8
        %s522 = scalar_lea.vmem %s4, %s521
      $region36: #{openpose_loss.1} parent=15 // pred_fallthru
        _
      // Predicated region
      $region37: #{openpose_loss.1} parent=15 // pred_check
        %p523 = pneg %p172
      $region38: #{openpose_loss.1} parent=15 // pred_check_branch
        %525 = sbr.rel (%p523) target = $region40
      $region39: #{openpose_loss.1} parent=15 // pred_region
        %p526 = scmp.lt.s32.totalorder %s22, 1
        %s527 = scalar_select %p526, %s22, 1
        %s528 = smul.addr %s527, 85
        %s529 = smul.addr %s528, 8
        %s530 = scalar_lea.vmem %s5, %s529
      $region40: #{openpose_loss.1} parent=15 // pred_fallthru
        _
      // Predicated region
      $region41: #{openpose_loss.1} parent=15 // pred_check
        %p531 = pneg %p198
      $region42: #{openpose_loss.1} parent=15 // pred_check_branch
        %533 = sbr.rel (%p531) target = $region44
      $region43: #{openpose_loss.1} parent=15 // pred_region
        %p534 = scmp.lt.s32.totalorder %s22, 1
        %s535 = scalar_select %p534, %s22, 1
        %s536 = smul.addr %s535, 51
        %s537 = smul.addr %s536, 8
        %s538 = scalar_lea.vmem %s6, %s537
      $region44: #{openpose_loss.1} parent=15 // pred_fallthru
        _
      // Predicated region
      $region45: #{openpose_loss.1} parent=15 // pred_check
        %p539 = pneg %p224
      $region46: #{openpose_loss.1} parent=15 // pred_check_branch
        %541 = sbr.rel (%p539) target = $region48
      $region47: #{openpose_loss.1} parent=15 // pred_region
        %p542 = scmp.lt.s32.totalorder %s22, 1
        %s543 = scalar_select %p542, %s22, 1
        %s544 = smul.addr %s543, 51
        %s545 = smul.addr %s544, 8
        %s546 = scalar_lea.vmem %s7, %s545
      $region48: #{openpose_loss.1} parent=15 // pred_fallthru
        _
      // Predicated region
      $region49: #{openpose_loss.1} parent=15 // pred_check
        %p547 = pneg %p250
      $region50: #{openpose_loss.1} parent=15 // pred_check_branch
        %549 = sbr.rel (%p547) target = $region52
      $region51: #{openpose_loss.1} parent=15 // pred_region
        %p550 = scmp.lt.s32.totalorder %s22, 1
        %s551 = scalar_select %p550, %s22, 1
        %s552 = smul.addr %s551, 51
        %s553 = smul.addr %s552, 8
        %s554 = scalar_lea.vmem %s8, %s553
      $region52: #{openpose_loss.1} parent=15 // pred_fallthru
        _
      // Predicated region
      $region53: #{openpose_loss.1} parent=15 // pred_check
        %p555 = pneg %p276
      $region54: #{openpose_loss.1} parent=15 // pred_check_branch
        %557 = sbr.rel (%p555) target = $region56
      $region55: #{openpose_loss.1} parent=15 // pred_region
        %p558 = scmp.lt.s32.totalorder %s22, 1
        %s559 = scalar_select %p558, %s22, 1
        %s560 = smul.addr %s559, 51
        %s561 = smul.addr %s560, 8
        %s562 = scalar_lea.vmem %s9, %s561
      $region56: #{openpose_loss.1} parent=15 // pred_fallthru
        _
      // Predicated region
      $region57: #{openpose_loss.1} parent=15 // pred_check
        %p563 = pneg %p302
      $region58: #{openpose_loss.1} parent=15 // pred_check_branch
        %565 = sbr.rel (%p563) target = $region60
      $region59: #{openpose_loss.1} parent=15 // pred_region
        %p566 = scmp.lt.s32.totalorder %s22, 1
        %s567 = scalar_select %p566, %s22, 1
        %s568 = smul.addr %s567, 51
        %s569 = smul.addr %s568, 8
        %s570 = scalar_lea.vmem %s10, %s569
      $region60: #{openpose_loss.1} parent=15 // pred_fallthru
        _
      // Predicated region
      $region61: #{openpose_loss.1} parent=15 // pred_check
        %p571 = pneg %p328
      $region62: #{openpose_loss.1} parent=15 // pred_check_branch
        %573 = sbr.rel (%p571) target = $region64
      $region63: #{openpose_loss.1} parent=15 // pred_region
        %p574 = scmp.lt.s32.totalorder %s22, 1
        %s575 = scalar_select %p574, %s22, 1
        %s576 = smul.addr %s575, 51
        %s577 = smul.addr %s576, 8
        %s578 = scalar_lea.vmem %s11, %s577
      $region64: #{openpose_loss.1} parent=15 // pred_fallthru
        _
      // Predicated region
      $region65: #{openpose_loss.1} parent=15 // pred_check
        %p579 = pneg %p354
      $region66: #{openpose_loss.1} parent=15 // pred_check_branch
        %581 = sbr.rel (%p579) target = $region68
      $region67: #{openpose_loss.1} parent=15 // pred_region
        %p582 = scmp.lt.s32.totalorder %s22, 1
        %s583 = scalar_select %p582, %s22, 1
        %s584 = smul.addr %s583, 85
        %s585 = smul.addr %s584, 8
        %s586 = scalar_lea.vmem %s12, %s585
      $region68: #{openpose_loss.1} parent=15 // pred_fallthru
        _
      // Predicated region
      $region69: #{openpose_loss.1} parent=15 // pred_check
        %p587 = pneg %p380
      $region70: #{openpose_loss.1} parent=15 // pred_check_branch
        %589 = sbr.rel (%p587) target = $region72
      $region71: #{openpose_loss.1} parent=15 // pred_region
        %p590 = scmp.lt.s32.totalorder %s22, 1
        %s591 = scalar_select %p590, %s22, 1
        %s592 = smul.addr %s591, 85
        %s593 = smul.addr %s592, 8
        %s594 = scalar_lea.vmem %s13, %s593
      $region72: #{openpose_loss.1} parent=15 // pred_fallthru
        _
      // Predicated region
      $region73: #{openpose_loss.1} parent=15 // pred_check
        %p595 = pneg %p406
      $region74: #{openpose_loss.1} parent=15 // pred_check_branch
        %597 = sbr.rel (%p595) target = $region76
      $region75: #{openpose_loss.1} parent=15 // pred_region
        %p598 = scmp.lt.s32.totalorder %s22, 1
        %s599 = scalar_select %p598, %s22, 1
        %s600 = smul.addr %s599, 51
        %s601 = smul.addr %s600, 8
        %s602 = scalar_lea.vmem %s14, %s601
      $region76: #{openpose_loss.1} parent=15 // pred_fallthru
        _
      // Predicated region
      $region77: #{openpose_loss.1} parent=15 // pred_check
        %p603 = pneg %p432
      $region78: #{openpose_loss.1} parent=15 // pred_check_branch
        %605 = sbr.rel (%p603) target = $region80
      $region79: #{openpose_loss.1} parent=15 // pred_region
        %p606 = scmp.lt.s32.totalorder %s22, 1
        %s607 = scalar_select %p606, %s22, 1
        %s608 = smul.addr %s607, 51
        %s609 = smul.addr %s608, 8
        %s610 = scalar_lea.vmem %s15, %s609
      $region80: #{openpose_loss.1} parent=15 // pred_fallthru
        _
    $region16: #{openpose_loss.1} parent=5 // pred_fallthru
      _
    %p611 = scmp.le.s32.totalorder 1, %s22
    %p612 = scmp.lt.s32.totalorder %s22, 3
    %p613 = pnand %p611, %p612
    %p614 = pneg %p613
    // Predicated region
    $region81: #{openpose_loss.1} parent=5 // pred_check
      _
    $region82: #{openpose_loss.1} parent=5 // pred_check_branch
      %616 = sbr.rel (%p613) target = $region84
    $region83: #{openpose_loss.1} parent=5 // pred_region
      %s617 = ssub.s32 %s22, 1
      %p618 = scmp.lt.s32.totalorder %s27, 1
      %s619 = scalar_select %p618, %s27, 1
      %s620 = smul.addr %s619, 85
      %s621 = smul.addr %s620, 8
      %s622 = scalar_lea.vmem %s0, %s621
      %p623 = pneg %p48
      %p624 = pneg %p45
      %p625 = scmp.lt.s32.totalorder %s27, 1
      %s626 = scalar_select %p625, %s27, 1
      %s627 = smul.addr %s626, 85
      %s628 = smul.addr %s627, 8
      %s629 = scalar_lea.vmem %s1, %s628
      %p630 = pneg %p74
      %p631 = pneg %p71
      %p632 = scmp.lt.s32.totalorder %s27, 1
      %s633 = scalar_select %p632, %s27, 1
      %s634 = smul.addr %s633, 85
      %s635 = smul.addr %s634, 8
      %s636 = scalar_lea.vmem %s2, %s635
      %p637 = pneg %p100
      %p638 = pneg %p97
      %p639 = scmp.lt.s32.totalorder %s27, 1
      %s640 = scalar_select %p639, %s27, 1
      %s641 = smul.addr %s640, 85
      %s642 = smul.addr %s641, 8
      %s643 = scalar_lea.vmem %s3, %s642
      %p644 = pneg %p126
      %p645 = pneg %p123
      %p646 = scmp.lt.s32.totalorder %s27, 1
      %s647 = scalar_select %p646, %s27, 1
      %s648 = smul.addr %s647, 85
      %s649 = smul.addr %s648, 8
      %s650 = scalar_lea.vmem %s4, %s649
      %p651 = pneg %p152
      %p652 = pneg %p149
      %p653 = scmp.lt.s32.totalorder %s27, 1
      %s654 = scalar_select %p653, %s27, 1
      %s655 = smul.addr %s654, 85
      %s656 = smul.addr %s655, 8
      %s657 = scalar_lea.vmem %s5, %s656
      %p658 = pneg %p178
      %p659 = pneg %p175
      %p660 = scmp.lt.s32.totalorder %s27, 1
      %s661 = scalar_select %p660, %s27, 1
      %s662 = smul.addr %s661, 51
      %s663 = smul.addr %s662, 8
      %s664 = scalar_lea.vmem %s6, %s663
      %p665 = pneg %p204
      %p666 = pneg %p201
      %p667 = scmp.lt.s32.totalorder %s27, 1
      %s668 = scalar_select %p667, %s27, 1
      %s669 = smul.addr %s668, 51
      %s670 = smul.addr %s669, 8
      %s671 = scalar_lea.vmem %s7, %s670
      %p672 = pneg %p230
      %p673 = pneg %p227
      %p674 = scmp.lt.s32.totalorder %s27, 1
      %s675 = scalar_select %p674, %s27, 1
      %s676 = smul.addr %s675, 51
      %s677 = smul.addr %s676, 8
      %s678 = scalar_lea.vmem %s8, %s677
      %p679 = pneg %p256
      %p680 = pneg %p253
      %p681 = scmp.lt.s32.totalorder %s27, 1
      %s682 = scalar_select %p681, %s27, 1
      %s683 = smul.addr %s682, 51
      %s684 = smul.addr %s683, 8
      %s685 = scalar_lea.vmem %s9, %s684
      %p686 = pneg %p282
      %p687 = pneg %p279
      %p688 = scmp.lt.s32.totalorder %s27, 1
      %s689 = scalar_select %p688, %s27, 1
      %s690 = smul.addr %s689, 51
      %s691 = smul.addr %s690, 8
      %s692 = scalar_lea.vmem %s10, %s691
      %p693 = pneg %p308
      %p694 = pneg %p305
      %p695 = scmp.lt.s32.totalorder %s27, 1
      %s696 = scalar_select %p695, %s27, 1
      %s697 = smul.addr %s696, 51
      %s698 = smul.addr %s697, 8
      %s699 = scalar_lea.vmem %s11, %s698
      %p700 = pneg %p334
      %p701 = pneg %p331
      %p702 = scmp.lt.s32.totalorder %s27, 1
      %s703 = scalar_select %p702, %s27, 1
      %s704 = smul.addr %s703, 85
      %s705 = smul.addr %s704, 8
      %s706 = scalar_lea.vmem %s12, %s705
      %p707 = pneg %p360
      %p708 = pneg %p357
      %p709 = scmp.lt.s32.totalorder %s27, 1
      %s710 = scalar_select %p709, %s27, 1
      %s711 = smul.addr %s710, 85
      %s712 = smul.addr %s711, 8
      %s713 = scalar_lea.vmem %s13, %s712
      %p714 = pneg %p386
      %p715 = pneg %p383
      %p716 = scmp.lt.s32.totalorder %s27, 1
      %s717 = scalar_select %p716, %s27, 1
      %s718 = smul.addr %s717, 51
      %s719 = smul.addr %s718, 8
      %s720 = scalar_lea.vmem %s14, %s719
      %p721 = pneg %p412
      %p722 = pneg %p409
      %p723 = scmp.lt.s32.totalorder %s27, 1
      %s724 = scalar_select %p723, %s27, 1
      %s725 = smul.addr %s724, 51
      %s726 = smul.addr %s725, 8
      %s727 = scalar_lea.vmem %s15, %s726
      %p728 = pneg %p438
      %p729 = pneg %p435
      %p730 = pneg %p464
      %p731 = pneg %p461
      %p732 = scmp.lt.s32.totalorder %s27, 1
      %s733 = scalar_select %p732, %s27, 1
      %s734 = smul.addr %s733, 8
      %s735 = scalar_lea.vmem %s16, %s734
      %p736 = scmp.lt.s32.totalorder %s27, 1
      %s737 = scalar_select %p736, %s27, 1
      %s738 = smul.addr %s737, 85
      %s739 = smul.addr %s738, 8
      %s740 = scalar_lea.vmem %s0, %s739
      %p741 = scmp.lt.s32.totalorder %s27, 1
      %s742 = scalar_select %p741, %s27, 1
      %s743 = smul.addr %s742, 85
      %s744 = smul.addr %s743, 8
      %s745 = scalar_lea.vmem %s1, %s744
      %p746 = scmp.lt.s32.totalorder %s27, 1
      %s747 = scalar_select %p746, %s27, 1
      %s748 = smul.addr %s747, 85
      %s749 = smul.addr %s748, 8
      %s750 = scalar_lea.vmem %s2, %s749
      %p751 = scmp.lt.s32.totalorder %s27, 1
      %s752 = scalar_select %p751, %s27, 1
      %s753 = smul.addr %s752, 85
      %s754 = smul.addr %s753, 8
      %s755 = scalar_lea.vmem %s3, %s754
      %p756 = scmp.lt.s32.totalorder %s27, 1
      %s757 = scalar_select %p756, %s27, 1
      %s758 = smul.addr %s757, 85
      %s759 = smul.addr %s758, 8
      %s760 = scalar_lea.vmem %s4, %s759
      %p761 = scmp.lt.s32.totalorder %s27, 1
      %s762 = scalar_select %p761, %s27, 1
      %s763 = smul.addr %s762, 85
      %s764 = smul.addr %s763, 8
      %s765 = scalar_lea.vmem %s5, %s764
      %p766 = scmp.lt.s32.totalorder %s27, 1
      %s767 = scalar_select %p766, %s27, 1
      %s768 = smul.addr %s767, 51
      %s769 = smul.addr %s768, 8
      %s770 = scalar_lea.vmem %s6, %s769
      %p771 = scmp.lt.s32.totalorder %s27, 1
      %s772 = scalar_select %p771, %s27, 1
      %s773 = smul.addr %s772, 51
      %s774 = smul.addr %s773, 8
      %s775 = scalar_lea.vmem %s7, %s774
      %p776 = scmp.lt.s32.totalorder %s27, 1
      %s777 = scalar_select %p776, %s27, 1
      %s778 = smul.addr %s777, 51
      %s779 = smul.addr %s778, 8
      %s780 = scalar_lea.vmem %s8, %s779
      %p781 = scmp.lt.s32.totalorder %s27, 1
      %s782 = scalar_select %p781, %s27, 1
      %s783 = smul.addr %s782, 51
      %s784 = smul.addr %s783, 8
      %s785 = scalar_lea.vmem %s9, %s784
      %p786 = scmp.lt.s32.totalorder %s27, 1
      %s787 = scalar_select %p786, %s27, 1
      %s788 = smul.addr %s787, 51
      %s789 = smul.addr %s788, 8
      %s790 = scalar_lea.vmem %s10, %s789
      %p791 = scmp.lt.s32.totalorder %s27, 1
      %s792 = scalar_select %p791, %s27, 1
      %s793 = smul.addr %s792, 51
      %s794 = smul.addr %s793, 8
      %s795 = scalar_lea.vmem %s11, %s794
      %p796 = scmp.lt.s32.totalorder %s27, 1
      %s797 = scalar_select %p796, %s27, 1
      %s798 = smul.addr %s797, 85
      %s799 = smul.addr %s798, 8
      %s800 = scalar_lea.vmem %s12, %s799
      %p801 = scmp.lt.s32.totalorder %s27, 1
      %s802 = scalar_select %p801, %s27, 1
      %s803 = smul.addr %s802, 85
      %s804 = smul.addr %s803, 8
      %s805 = scalar_lea.vmem %s13, %s804
      %p806 = scmp.lt.s32.totalorder %s27, 1
      %s807 = scalar_select %p806, %s27, 1
      %s808 = smul.addr %s807, 51
      %s809 = smul.addr %s808, 8
      %s810 = scalar_lea.vmem %s14, %s809
      %p811 = scmp.lt.s32.totalorder %s27, 1
      %s812 = scalar_select %p811, %s27, 1
      %s813 = smul.addr %s812, 51
      %s814 = smul.addr %s813, 8
      %s815 = scalar_lea.vmem %s15, %s814
      %p816 = scmp.lt.s32.totalorder %s27, 1
      %s817 = scalar_select %p816, %s27, 1
      %s818 = smul.addr %s817, 8
      %s819 = scalar_lea.vmem %s16, %s818
      %v820 = vld [vmem:[%s805] sm:$0xff]
      %v821 = vld [vmem:[%s805 + $0x8] sm:$0xff]
      %v822 = vld [vmem:[%s805 + $0x10] sm:$0xff]
      %v823 = vld [vmem:[%s805 + $0x18] sm:$0xff]
      %v824 = vld [vmem:[%s805 + $0x20] sm:$0xff]
      %v825 = vld [vmem:[%s805 + $0x28] sm:$0xff]
      %v826 = vld [vmem:[%s805 + $0x30] sm:$0xff]
      %v827 = vld [vmem:[%s805 + $0x38] sm:$0xff]
      %v828 = vld [vmem:[%s805 + $0x40] sm:$0xff]
      %v829 = vld [vmem:[%s805 + $0x48] sm:$0xff]
      %v830 = vld [vmem:[%s805 + $0x50] sm:$0xff]
      %v831 = vld [vmem:[%s805 + $0x58] sm:$0xff]
      %v832 = vld [vmem:[%s805 + $0x60] sm:$0xff]
      %v833 = vld [vmem:[%s805 + $0x68] sm:$0xff]
      %v834 = vld [vmem:[%s805 + $0x70] sm:$0xff]
      %v835 = vld [vmem:[%s805 + $0x78] sm:$0xff]
      %v836 = vld [vmem:[%s805 + $0x80] sm:$0xff]
      %v837 = vld [vmem:[%s805 + $0x88] sm:$0xff]
      %v838 = vld [vmem:[%s805 + $0x90] sm:$0xff]
      %v839 = vld [vmem:[%s805 + $0x98] sm:$0xff]
      %v840 = vld [vmem:[%s805 + $0xa0] sm:$0xff]
      %v841 = vld [vmem:[%s805 + $0xa8] sm:$0xff]
      %v842 = vld [vmem:[%s805 + $0xb0] sm:$0xff]
      %v843 = vld [vmem:[%s805 + $0xb8] sm:$0xff]
      %v844 = vld [vmem:[%s805 + $0xc0] sm:$0xff]
      %v845 = vld [vmem:[%s805 + $0xc8] sm:$0xff]
      %v846 = vld [vmem:[%s805 + $0xd0] sm:$0xff]
      %v847 = vld [vmem:[%s805 + $0xd8] sm:$0xff]
      %v848 = vld [vmem:[%s805 + $0xe0] sm:$0xff]
      %v849 = vld [vmem:[%s805 + $0xe8] sm:$0xff]
      %v850 = vld [vmem:[%s805 + $0xf0] sm:$0xff]
      %v851 = vld [vmem:[%s805 + $0xf8] sm:$0xff]
      %v852 = vld [vmem:[%s805 + $0x100] sm:$0xff]
      %v853 = vld [vmem:[%s805 + $0x108] sm:$0xff]
      %v854 = vld [vmem:[%s805 + $0x110] sm:$0xff]
      %v855 = vld [vmem:[%s805 + $0x118] sm:$0xff]
      %v856 = vld [vmem:[%s805 + $0x120] sm:$0xff]
      %v857 = vld [vmem:[%s805 + $0x128] sm:$0xff]
      %v858 = vld [vmem:[%s805 + $0x130] sm:$0xff]
      %v859 = vld [vmem:[%s805 + $0x138] sm:$0xff]
      %v860 = vld [vmem:[%s805 + $0x140] sm:$0xff]
      %v861 = vld [vmem:[%s805 + $0x148] sm:$0xff]
      %v862 = vld [vmem:[%s805 + $0x150] sm:$0xff]
      %v863 = vld [vmem:[%s805 + $0x158] sm:$0xff]
      %v864 = vld [vmem:[%s805 + $0x160] sm:$0xff]
      %v865 = vld [vmem:[%s805 + $0x168] sm:$0xff]
      %v866 = vld [vmem:[%s805 + $0x170] sm:$0xff]
      %v867 = vld [vmem:[%s805 + $0x178] sm:$0xff]
      %v868 = vld [vmem:[%s805 + $0x180] sm:$0xff]
      %v869 = vld [vmem:[%s805 + $0x188] sm:$0xff]
      %v870 = vld [vmem:[%s805 + $0x190] sm:$0xff]
      %v871 = vld [vmem:[%s805 + $0x198] sm:$0xff]
      %v872 = vld [vmem:[%s805 + $0x1a0] sm:$0xff]
      %v873 = vld [vmem:[%s805 + $0x1a8] sm:$0xff]
      %v874 = vld [vmem:[%s805 + $0x1b0] sm:$0xff]
      %v875 = vld [vmem:[%s805 + $0x1b8] sm:$0xff]
      %v876 = vld [vmem:[%s805 + $0x1c0] sm:$0xff]
      %v877 = vld [vmem:[%s805 + $0x1c8] sm:$0xff]
      %v878 = vld [vmem:[%s805 + $0x1d0] sm:$0xff]
      %v879 = vld [vmem:[%s805 + $0x1d8] sm:$0xff]
      %v880 = vld [vmem:[%s805 + $0x1e0] sm:$0xff]
      %v881 = vld [vmem:[%s805 + $0x1e8] sm:$0xff]
      %v882 = vld [vmem:[%s805 + $0x1f0] sm:$0xff]
      %v883 = vld [vmem:[%s805 + $0x1f8] sm:$0xff]
      %v884 = vld [vmem:[%s805 + $0x200] sm:$0xff]
      %v885 = vld [vmem:[%s805 + $0x208] sm:$0xff]
      %v886 = vld [vmem:[%s805 + $0x210] sm:$0xff]
      %v887 = vld [vmem:[%s805 + $0x218] sm:$0xff]
      %v888 = vld [vmem:[%s805 + $0x220] sm:$0x3f]
      %v889 = vld [vmem:[%s805 + $0x228] sm:$0x3f]
      %v890 = vld [vmem:[%s805 + $0x230] sm:$0x3f]
      %v891 = vld [vmem:[%s805 + $0x238] sm:$0x3f]
      %v892 = vld [vmem:[%s805 + $0x240] sm:$0x3f]
      %v893 = vld [vmem:[%s805 + $0x248] sm:$0x3f]
      %v894 = vld [vmem:[%s805 + $0x250] sm:$0x3f]
      %v895 = vld [vmem:[%s805 + $0x258] sm:$0x3f]
      %v896 = vld [vmem:[%s805 + $0x260] sm:$0x3f]
      %v897 = vld [vmem:[%s805 + $0x268] sm:$0x3f]
      %v898 = vld [vmem:[%s805 + $0x270] sm:$0x3f]
      %v899 = vld [vmem:[%s805 + $0x278] sm:$0x3f]
      %v900 = vld [vmem:[%s805 + $0x280] sm:$0x3f]
      %v901 = vld [vmem:[%s805 + $0x288] sm:$0x3f]
      %v902 = vld [vmem:[%s805 + $0x290] sm:$0x3f]
      %v903 = vld [vmem:[%s805 + $0x298] sm:$0x3f]
      %v904 = vld [vmem:[%s805 + $0x2a0] sm:$0x3f]
      %v905 = vld [vmem:[%s800] sm:$0xff]
      %v906 = vld [vmem:[%s800 + $0x8] sm:$0xff]
      %v907 = vld [vmem:[%s800 + $0x10] sm:$0xff]
      %v908 = vld [vmem:[%s800 + $0x18] sm:$0xff]
      %v909 = vld [vmem:[%s800 + $0x20] sm:$0xff]
      %v910 = vld [vmem:[%s800 + $0x28] sm:$0xff]
      %v911 = vld [vmem:[%s800 + $0x30] sm:$0xff]
      %v912 = vld [vmem:[%s800 + $0x38] sm:$0xff]
      %v913 = vld [vmem:[%s800 + $0x40] sm:$0xff]
      %v914 = vld [vmem:[%s800 + $0x48] sm:$0xff]
      %v915 = vld [vmem:[%s800 + $0x50] sm:$0xff]
      %v916 = vld [vmem:[%s800 + $0x58] sm:$0xff]
      %v917 = vld [vmem:[%s800 + $0x60] sm:$0xff]
      %v918 = vld [vmem:[%s800 + $0x68] sm:$0xff]
      %v919 = vld [vmem:[%s800 + $0x70] sm:$0xff]
      %v920 = vld [vmem:[%s800 + $0x78] sm:$0xff]
      %v921 = vld [vmem:[%s800 + $0x80] sm:$0xff]
      %v922 = vld [vmem:[%s800 + $0x88] sm:$0xff]
      %v923 = vld [vmem:[%s800 + $0x90] sm:$0xff]
      %v924 = vld [vmem:[%s800 + $0x98] sm:$0xff]
      %v925 = vld [vmem:[%s800 + $0xa0] sm:$0xff]
      %v926 = vld [vmem:[%s800 + $0xa8] sm:$0xff]
      %v927 = vld [vmem:[%s800 + $0xb0] sm:$0xff]
      %v928 = vld [vmem:[%s800 + $0xb8] sm:$0xff]
      %v929 = vld [vmem:[%s800 + $0xc0] sm:$0xff]
      %v930 = vld [vmem:[%s800 + $0xc8] sm:$0xff]
      %v931 = vld [vmem:[%s800 + $0xd0] sm:$0xff]
      %v932 = vld [vmem:[%s800 + $0xd8] sm:$0xff]
      %v933 = vld [vmem:[%s800 + $0xe0] sm:$0xff]
      %v934 = vld [vmem:[%s800 + $0xe8] sm:$0xff]
      %v935 = vld [vmem:[%s800 + $0xf0] sm:$0xff]
      %v936 = vld [vmem:[%s800 + $0xf8] sm:$0xff]
      %v937 = vld [vmem:[%s800 + $0x100] sm:$0xff]
      %v938 = vld [vmem:[%s800 + $0x108] sm:$0xff]
      %v939 = vld [vmem:[%s800 + $0x110] sm:$0xff]
      %v940 = vld [vmem:[%s800 + $0x118] sm:$0xff]
      %v941 = vld [vmem:[%s800 + $0x120] sm:$0xff]
      %v942 = vld [vmem:[%s800 + $0x128] sm:$0xff]
      %v943 = vld [vmem:[%s800 + $0x130] sm:$0xff]
      %v944 = vld [vmem:[%s800 + $0x138] sm:$0xff]
      %v945 = vld [vmem:[%s800 + $0x140] sm:$0xff]
      %v946 = vld [vmem:[%s800 + $0x148] sm:$0xff]
      %v947 = vld [vmem:[%s800 + $0x150] sm:$0xff]
      %v948 = vld [vmem:[%s800 + $0x158] sm:$0xff]
      %v949 = vld [vmem:[%s800 + $0x160] sm:$0xff]
      %v950 = vld [vmem:[%s800 + $0x168] sm:$0xff]
      %v951 = vld [vmem:[%s800 + $0x170] sm:$0xff]
      %v952 = vld [vmem:[%s800 + $0x178] sm:$0xff]
      %v953 = vld [vmem:[%s800 + $0x180] sm:$0xff]
      %v954 = vld [vmem:[%s800 + $0x188] sm:$0xff]
      %v955 = vld [vmem:[%s800 + $0x190] sm:$0xff]
      %v956 = vld [vmem:[%s800 + $0x198] sm:$0xff]
      %v957 = vld [vmem:[%s800 + $0x1a0] sm:$0xff]
      %v958 = vld [vmem:[%s800 + $0x1a8] sm:$0xff]
      %v959 = vld [vmem:[%s800 + $0x1b0] sm:$0xff]
      %v960 = vld [vmem:[%s800 + $0x1b8] sm:$0xff]
      %v961 = vld [vmem:[%s800 + $0x1c0] sm:$0xff]
      %v962 = vld [vmem:[%s800 + $0x1c8] sm:$0xff]
      %v963 = vld [vmem:[%s800 + $0x1d0] sm:$0xff]
      %v964 = vld [vmem:[%s800 + $0x1d8] sm:$0xff]
      %v965 = vld [vmem:[%s800 + $0x1e0] sm:$0xff]
      %v966 = vld [vmem:[%s800 + $0x1e8] sm:$0xff]
      %v967 = vld [vmem:[%s800 + $0x1f0] sm:$0xff]
      %v968 = vld [vmem:[%s800 + $0x1f8] sm:$0xff]
      %v969 = vld [vmem:[%s800 + $0x200] sm:$0xff]
      %v970 = vld [vmem:[%s800 + $0x208] sm:$0xff]
      %v971 = vld [vmem:[%s800 + $0x210] sm:$0xff]
      %v972 = vld [vmem:[%s800 + $0x218] sm:$0xff]
      %v973 = vld [vmem:[%s800 + $0x220] sm:$0x3f]
      %v974 = vld [vmem:[%s800 + $0x228] sm:$0x3f]
      %v975 = vld [vmem:[%s800 + $0x230] sm:$0x3f]
      %v976 = vld [vmem:[%s800 + $0x238] sm:$0x3f]
      %v977 = vld [vmem:[%s800 + $0x240] sm:$0x3f]
      %v978 = vld [vmem:[%s800 + $0x248] sm:$0x3f]
      %v979 = vld [vmem:[%s800 + $0x250] sm:$0x3f]
      %v980 = vld [vmem:[%s800 + $0x258] sm:$0x3f]
      %v981 = vld [vmem:[%s800 + $0x260] sm:$0x3f]
      %v982 = vld [vmem:[%s800 + $0x268] sm:$0x3f]
      %v983 = vld [vmem:[%s800 + $0x270] sm:$0x3f]
      %v984 = vld [vmem:[%s800 + $0x278] sm:$0x3f]
      %v985 = vld [vmem:[%s800 + $0x280] sm:$0x3f]
      %v986 = vld [vmem:[%s800 + $0x288] sm:$0x3f]
      %v987 = vld [vmem:[%s800 + $0x290] sm:$0x3f]
      %v988 = vld [vmem:[%s800 + $0x298] sm:$0x3f]
      %v989 = vld [vmem:[%s800 + $0x2a0] sm:$0x3f]
      %v990 = vmul.f32 %v905, %v820
      %v991 = vmul.f32 %v906, %v821
      %v992 = vmul.f32 %v907, %v822
      %v993 = vmul.f32 %v908, %v823
      %v994 = vmul.f32 %v909, %v824
      %v995 = vmul.f32 %v910, %v825
      %v996 = vmul.f32 %v911, %v826
      %v997 = vmul.f32 %v912, %v827
      %v998 = vmul.f32 %v913, %v828
      %v999 = vmul.f32 %v914, %v829
      %v1000 = vmul.f32 %v915, %v830
      %v1001 = vmul.f32 %v916, %v831
      %v1002 = vmul.f32 %v917, %v832
      %v1003 = vmul.f32 %v918, %v833
      %v1004 = vmul.f32 %v919, %v834
      %v1005 = vmul.f32 %v920, %v835
      %v1006 = vmul.f32 %v921, %v836
      %v1007 = vmul.f32 %v922, %v837
      %v1008 = vmul.f32 %v923, %v838
      %v1009 = vmul.f32 %v924, %v839
      %v1010 = vmul.f32 %v925, %v840
      %v1011 = vmul.f32 %v926, %v841
      %v1012 = vmul.f32 %v927, %v842
      %v1013 = vmul.f32 %v928, %v843
      %v1014 = vmul.f32 %v929, %v844
      %v1015 = vmul.f32 %v930, %v845
      %v1016 = vmul.f32 %v931, %v846
      %v1017 = vmul.f32 %v932, %v847
      %v1018 = vmul.f32 %v933, %v848
      %v1019 = vmul.f32 %v934, %v849
      %v1020 = vmul.f32 %v935, %v850
      %v1021 = vmul.f32 %v936, %v851
      %v1022 = vmul.f32 %v937, %v852
      %v1023 = vmul.f32 %v938, %v853
      %v1024 = vmul.f32 %v939, %v854
      %v1025 = vmul.f32 %v940, %v855
      %v1026 = vmul.f32 %v941, %v856
      %v1027 = vmul.f32 %v942, %v857
      %v1028 = vmul.f32 %v943, %v858
      %v1029 = vmul.f32 %v944, %v859
      %v1030 = vmul.f32 %v945, %v860
      %v1031 = vmul.f32 %v946, %v861
      %v1032 = vmul.f32 %v947, %v862
      %v1033 = vmul.f32 %v948, %v863
      %v1034 = vmul.f32 %v949, %v864
      %v1035 = vmul.f32 %v950, %v865
      %v1036 = vmul.f32 %v951, %v866
      %v1037 = vmul.f32 %v952, %v867
      %v1038 = vmul.f32 %v953, %v868
      %v1039 = vmul.f32 %v954, %v869
      %v1040 = vmul.f32 %v955, %v870
      %v1041 = vmul.f32 %v956, %v871
      %v1042 = vmul.f32 %v957, %v872
      %v1043 = vmul.f32 %v958, %v873
      %v1044 = vmul.f32 %v959, %v874
      %v1045 = vmul.f32 %v960, %v875
      %v1046 = vmul.f32 %v961, %v876
      %v1047 = vmul.f32 %v962, %v877
      %v1048 = vmul.f32 %v963, %v878
      %v1049 = vmul.f32 %v964, %v879
      %v1050 = vmul.f32 %v965, %v880
      %v1051 = vmul.f32 %v966, %v881
      %v1052 = vmul.f32 %v967, %v882
      %v1053 = vmul.f32 %v968, %v883
      %v1054 = vmul.f32 %v969, %v884
      %v1055 = vmul.f32 %v970, %v885
      %v1056 = vmul.f32 %v971, %v886
      %v1057 = vmul.f32 %v972, %v887
      %v1058 = vmul.f32 %v973, %v888
      %v1059 = vmul.f32 %v974, %v889
      %v1060 = vmul.f32 %v975, %v890
      %v1061 = vmul.f32 %v976, %v891
      %v1062 = vmul.f32 %v977, %v892
      %v1063 = vmul.f32 %v978, %v893
      %v1064 = vmul.f32 %v979, %v894
      %v1065 = vmul.f32 %v980, %v895
      %v1066 = vmul.f32 %v981, %v896
      %v1067 = vmul.f32 %v982, %v897
      %v1068 = vmul.f32 %v983, %v898
      %v1069 = vmul.f32 %v984, %v899
      %v1070 = vmul.f32 %v985, %v900
      %v1071 = vmul.f32 %v986, %v901
      %v1072 = vmul.f32 %v987, %v902
      %v1073 = vmul.f32 %v988, %v903
      %v1074 = vmul.f32 %v989, %v904
      %v1075 = vld [vmem:[%s740] sm:$0xff]
      %v1076 = vld [vmem:[%s740 + $0x8] sm:$0xff]
      %v1077 = vld [vmem:[%s740 + $0x10] sm:$0xff]
      %v1078 = vld [vmem:[%s740 + $0x18] sm:$0xff]
      %v1079 = vld [vmem:[%s740 + $0x20] sm:$0xff]
      %v1080 = vld [vmem:[%s740 + $0x28] sm:$0xff]
      %v1081 = vld [vmem:[%s740 + $0x30] sm:$0xff]
      %v1082 = vld [vmem:[%s740 + $0x38] sm:$0xff]
      %v1083 = vld [vmem:[%s740 + $0x40] sm:$0xff]
      %v1084 = vld [vmem:[%s740 + $0x48] sm:$0xff]
      %v1085 = vld [vmem:[%s740 + $0x50] sm:$0xff]
      %v1086 = vld [vmem:[%s740 + $0x58] sm:$0xff]
      %v1087 = vld [vmem:[%s740 + $0x60] sm:$0xff]
      %v1088 = vld [vmem:[%s740 + $0x68] sm:$0xff]
      %v1089 = vld [vmem:[%s740 + $0x70] sm:$0xff]
      %v1090 = vld [vmem:[%s740 + $0x78] sm:$0xff]
      %v1091 = vld [vmem:[%s740 + $0x80] sm:$0xff]
      %v1092 = vld [vmem:[%s740 + $0x88] sm:$0xff]
      %v1093 = vld [vmem:[%s740 + $0x90] sm:$0xff]
      %v1094 = vld [vmem:[%s740 + $0x98] sm:$0xff]
      %v1095 = vld [vmem:[%s740 + $0xa0] sm:$0xff]
      %v1096 = vld [vmem:[%s740 + $0xa8] sm:$0xff]
      %v1097 = vld [vmem:[%s740 + $0xb0] sm:$0xff]
      %v1098 = vld [vmem:[%s740 + $0xb8] sm:$0xff]
      %v1099 = vld [vmem:[%s740 + $0xc0] sm:$0xff]
      %v1100 = vld [vmem:[%s740 + $0xc8] sm:$0xff]
      %v1101 = vld [vmem:[%s740 + $0xd0] sm:$0xff]
      %v1102 = vld [vmem:[%s740 + $0xd8] sm:$0xff]
      %v1103 = vld [vmem:[%s740 + $0xe0] sm:$0xff]
      %v1104 = vld [vmem:[%s740 + $0xe8] sm:$0xff]
      %v1105 = vld [vmem:[%s740 + $0xf0] sm:$0xff]
      %v1106 = vld [vmem:[%s740 + $0xf8] sm:$0xff]
      %v1107 = vld [vmem:[%s740 + $0x100] sm:$0xff]
      %v1108 = vld [vmem:[%s740 + $0x108] sm:$0xff]
      %v1109 = vld [vmem:[%s740 + $0x110] sm:$0xff]
      %v1110 = vld [vmem:[%s740 + $0x118] sm:$0xff]
      %v1111 = vld [vmem:[%s740 + $0x120] sm:$0xff]
      %v1112 = vld [vmem:[%s740 + $0x128] sm:$0xff]
      %v1113 = vld [vmem:[%s740 + $0x130] sm:$0xff]
      %v1114 = vld [vmem:[%s740 + $0x138] sm:$0xff]
      %v1115 = vld [vmem:[%s740 + $0x140] sm:$0xff]
      %v1116 = vld [vmem:[%s740 + $0x148] sm:$0xff]
      %v1117 = vld [vmem:[%s740 + $0x150] sm:$0xff]
      %v1118 = vld [vmem:[%s740 + $0x158] sm:$0xff]
      %v1119 = vld [vmem:[%s740 + $0x160] sm:$0xff]
      %v1120 = vld [vmem:[%s740 + $0x168] sm:$0xff]
      %v1121 = vld [vmem:[%s740 + $0x170] sm:$0xff]
      %v1122 = vld [vmem:[%s740 + $0x178] sm:$0xff]
      %v1123 = vld [vmem:[%s740 + $0x180] sm:$0xff]
      %v1124 = vld [vmem:[%s740 + $0x188] sm:$0xff]
      %v1125 = vld [vmem:[%s740 + $0x190] sm:$0xff]
      %v1126 = vld [vmem:[%s740 + $0x198] sm:$0xff]
      %v1127 = vld [vmem:[%s740 + $0x1a0] sm:$0xff]
      %v1128 = vld [vmem:[%s740 + $0x1a8] sm:$0xff]
      %v1129 = vld [vmem:[%s740 + $0x1b0] sm:$0xff]
      %v1130 = vld [vmem:[%s740 + $0x1b8] sm:$0xff]
      %v1131 = vld [vmem:[%s740 + $0x1c0] sm:$0xff]
      %v1132 = vld [vmem:[%s740 + $0x1c8] sm:$0xff]
      %v1133 = vld [vmem:[%s740 + $0x1d0] sm:$0xff]
      %v1134 = vld [vmem:[%s740 + $0x1d8] sm:$0xff]
      %v1135 = vld [vmem:[%s740 + $0x1e0] sm:$0xff]
      %v1136 = vld [vmem:[%s740 + $0x1e8] sm:$0xff]
      %v1137 = vld [vmem:[%s740 + $0x1f0] sm:$0xff]
      %v1138 = vld [vmem:[%s740 + $0x1f8] sm:$0xff]
      %v1139 = vld [vmem:[%s740 + $0x200] sm:$0xff]
      %v1140 = vld [vmem:[%s740 + $0x208] sm:$0xff]
      %v1141 = vld [vmem:[%s740 + $0x210] sm:$0xff]
      %v1142 = vld [vmem:[%s740 + $0x218] sm:$0xff]
      %v1143 = vld [vmem:[%s740 + $0x220] sm:$0x3f]
      %v1144 = vld [vmem:[%s740 + $0x228] sm:$0x3f]
      %v1145 = vld [vmem:[%s740 + $0x230] sm:$0x3f]
      %v1146 = vld [vmem:[%s740 + $0x238] sm:$0x3f]
      %v1147 = vld [vmem:[%s740 + $0x240] sm:$0x3f]
      %v1148 = vld [vmem:[%s740 + $0x248] sm:$0x3f]
      %v1149 = vld [vmem:[%s740 + $0x250] sm:$0x3f]
      %v1150 = vld [vmem:[%s740 + $0x258] sm:$0x3f]
      %v1151 = vld [vmem:[%s740 + $0x260] sm:$0x3f]
      %v1152 = vld [vmem:[%s740 + $0x268] sm:$0x3f]
      %v1153 = vld [vmem:[%s740 + $0x270] sm:$0x3f]
      %v1154 = vld [vmem:[%s740 + $0x278] sm:$0x3f]
      %v1155 = vld [vmem:[%s740 + $0x280] sm:$0x3f]
      %v1156 = vld [vmem:[%s740 + $0x288] sm:$0x3f]
      %v1157 = vld [vmem:[%s740 + $0x290] sm:$0x3f]
      %v1158 = vld [vmem:[%s740 + $0x298] sm:$0x3f]
      %v1159 = vld [vmem:[%s740 + $0x2a0] sm:$0x3f]
      %v1160 = vmul.f32 %v1075, %v820
      %v1161 = vmul.f32 %v1076, %v821
      %v1162 = vmul.f32 %v1077, %v822
      %v1163 = vmul.f32 %v1078, %v823
      %v1164 = vmul.f32 %v1079, %v824
      %v1165 = vmul.f32 %v1080, %v825
      %v1166 = vmul.f32 %v1081, %v826
      %v1167 = vmul.f32 %v1082, %v827
      %v1168 = vmul.f32 %v1083, %v828
      %v1169 = vmul.f32 %v1084, %v829
      %v1170 = vmul.f32 %v1085, %v830
      %v1171 = vmul.f32 %v1086, %v831
      %v1172 = vmul.f32 %v1087, %v832
      %v1173 = vmul.f32 %v1088, %v833
      %v1174 = vmul.f32 %v1089, %v834
      %v1175 = vmul.f32 %v1090, %v835
      %v1176 = vmul.f32 %v1091, %v836
      %v1177 = vmul.f32 %v1092, %v837
      %v1178 = vmul.f32 %v1093, %v838
      %v1179 = vmul.f32 %v1094, %v839
      %v1180 = vmul.f32 %v1095, %v840
      %v1181 = vmul.f32 %v1096, %v841
      %v1182 = vmul.f32 %v1097, %v842
      %v1183 = vmul.f32 %v1098, %v843
      %v1184 = vmul.f32 %v1099, %v844
      %v1185 = vmul.f32 %v1100, %v845
      %v1186 = vmul.f32 %v1101, %v846
      %v1187 = vmul.f32 %v1102, %v847
      %v1188 = vmul.f32 %v1103, %v848
      %v1189 = vmul.f32 %v1104, %v849
      %v1190 = vmul.f32 %v1105, %v850
      %v1191 = vmul.f32 %v1106, %v851
      %v1192 = vmul.f32 %v1107, %v852
      %v1193 = vmul.f32 %v1108, %v853
      %v1194 = vmul.f32 %v1109, %v854
      %v1195 = vmul.f32 %v1110, %v855
      %v1196 = vmul.f32 %v1111, %v856
      %v1197 = vmul.f32 %v1112, %v857
      %v1198 = vmul.f32 %v1113, %v858
      %v1199 = vmul.f32 %v1114, %v859
      %v1200 = vmul.f32 %v1115, %v860
      %v1201 = vmul.f32 %v1116, %v861
      %v1202 = vmul.f32 %v1117, %v862
      %v1203 = vmul.f32 %v1118, %v863
      %v1204 = vmul.f32 %v1119, %v864
      %v1205 = vmul.f32 %v1120, %v865
      %v1206 = vmul.f32 %v1121, %v866
      %v1207 = vmul.f32 %v1122, %v867
      %v1208 = vmul.f32 %v1123, %v868
      %v1209 = vmul.f32 %v1124, %v869
      %v1210 = vmul.f32 %v1125, %v870
      %v1211 = vmul.f32 %v1126, %v871
      %v1212 = vmul.f32 %v1127, %v872
      %v1213 = vmul.f32 %v1128, %v873
      %v1214 = vmul.f32 %v1129, %v874
      %v1215 = vmul.f32 %v1130, %v875
      %v1216 = vmul.f32 %v1131, %v876
      %v1217 = vmul.f32 %v1132, %v877
      %v1218 = vmul.f32 %v1133, %v878
      %v1219 = vmul.f32 %v1134, %v879
      %v1220 = vmul.f32 %v1135, %v880
      %v1221 = vmul.f32 %v1136, %v881
      %v1222 = vmul.f32 %v1137, %v882
      %v1223 = vmul.f32 %v1138, %v883
      %v1224 = vmul.f32 %v1139, %v884
      %v1225 = vmul.f32 %v1140, %v885
      %v1226 = vmul.f32 %v1141, %v886
      %v1227 = vmul.f32 %v1142, %v887
      %v1228 = vmul.f32 %v1143, %v888
      %v1229 = vmul.f32 %v1144, %v889
      %v1230 = vmul.f32 %v1145, %v890
      %v1231 = vmul.f32 %v1146, %v891
      %v1232 = vmul.f32 %v1147, %v892
      %v1233 = vmul.f32 %v1148, %v893
      %v1234 = vmul.f32 %v1149, %v894
      %v1235 = vmul.f32 %v1150, %v895
      %v1236 = vmul.f32 %v1151, %v896
      %v1237 = vmul.f32 %v1152, %v897
      %v1238 = vmul.f32 %v1153, %v898
      %v1239 = vmul.f32 %v1154, %v899
      %v1240 = vmul.f32 %v1155, %v900
      %v1241 = vmul.f32 %v1156, %v901
      %v1242 = vmul.f32 %v1157, %v902
      %v1243 = vmul.f32 %v1158, %v903
      %v1244 = vmul.f32 %v1159, %v904
      %v1245 = vsub.f32 %v1160, %v990
      %v1246 = vsub.f32 %v1161, %v991
      %v1247 = vsub.f32 %v1162, %v992
      %v1248 = vsub.f32 %v1163, %v993
      %v1249 = vsub.f32 %v1164, %v994
      %v1250 = vsub.f32 %v1165, %v995
      %v1251 = vsub.f32 %v1166, %v996
      %v1252 = vsub.f32 %v1167, %v997
      %v1253 = vsub.f32 %v1168, %v998
      %v1254 = vsub.f32 %v1169, %v999
      %v1255 = vsub.f32 %v1170, %v1000
      %v1256 = vsub.f32 %v1171, %v1001
      %v1257 = vsub.f32 %v1172, %v1002
      %v1258 = vsub.f32 %v1173, %v1003
      %v1259 = vsub.f32 %v1174, %v1004
      %v1260 = vsub.f32 %v1175, %v1005
      %v1261 = vsub.f32 %v1176, %v1006
      %v1262 = vsub.f32 %v1177, %v1007
      %v1263 = vsub.f32 %v1178, %v1008
      %v1264 = vsub.f32 %v1179, %v1009
      %v1265 = vsub.f32 %v1180, %v1010
      %v1266 = vsub.f32 %v1181, %v1011
      %v1267 = vsub.f32 %v1182, %v1012
      %v1268 = vsub.f32 %v1183, %v1013
      %v1269 = vsub.f32 %v1184, %v1014
      %v1270 = vsub.f32 %v1185, %v1015
      %v1271 = vsub.f32 %v1186, %v1016
      %v1272 = vsub.f32 %v1187, %v1017
      %v1273 = vsub.f32 %v1188, %v1018
      %v1274 = vsub.f32 %v1189, %v1019
      %v1275 = vsub.f32 %v1190, %v1020
      %v1276 = vsub.f32 %v1191, %v1021
      %v1277 = vsub.f32 %v1192, %v1022
      %v1278 = vsub.f32 %v1193, %v1023
      %v1279 = vsub.f32 %v1194, %v1024
      %v1280 = vsub.f32 %v1195, %v1025
      %v1281 = vsub.f32 %v1196, %v1026
      %v1282 = vsub.f32 %v1197, %v1027
      %v1283 = vsub.f32 %v1198, %v1028
      %v1284 = vsub.f32 %v1199, %v1029
      %v1285 = vsub.f32 %v1200, %v1030
      %v1286 = vsub.f32 %v1201, %v1031
      %v1287 = vsub.f32 %v1202, %v1032
      %v1288 = vsub.f32 %v1203, %v1033
      %v1289 = vsub.f32 %v1204, %v1034
      %v1290 = vsub.f32 %v1205, %v1035
      %v1291 = vsub.f32 %v1206, %v1036
      %v1292 = vsub.f32 %v1207, %v1037
      %v1293 = vsub.f32 %v1208, %v1038
      %v1294 = vsub.f32 %v1209, %v1039
      %v1295 = vsub.f32 %v1210, %v1040
      %v1296 = vsub.f32 %v1211, %v1041
      %v1297 = vsub.f32 %v1212, %v1042
      %v1298 = vsub.f32 %v1213, %v1043
      %v1299 = vsub.f32 %v1214, %v1044
      %v1300 = vsub.f32 %v1215, %v1045
      %v1301 = vsub.f32 %v1216, %v1046
      %v1302 = vsub.f32 %v1217, %v1047
      %v1303 = vsub.f32 %v1218, %v1048
      %v1304 = vsub.f32 %v1219, %v1049
      %v1305 = vsub.f32 %v1220, %v1050
      %v1306 = vsub.f32 %v1221, %v1051
      %v1307 = vsub.f32 %v1222, %v1052
      %v1308 = vsub.f32 %v1223, %v1053
      %v1309 = vsub.f32 %v1224, %v1054
      %v1310 = vsub.f32 %v1225, %v1055
      %v1311 = vsub.f32 %v1226, %v1056
      %v1312 = vsub.f32 %v1227, %v1057
      %v1313 = vsub.f32 %v1228, %v1058
      %v1314 = vsub.f32 %v1229, %v1059
      %v1315 = vsub.f32 %v1230, %v1060
      %v1316 = vsub.f32 %v1231, %v1061
      %v1317 = vsub.f32 %v1232, %v1062
      %v1318 = vsub.f32 %v1233, %v1063
      %v1319 = vsub.f32 %v1234, %v1064
      %v1320 = vsub.f32 %v1235, %v1065
      %v1321 = vsub.f32 %v1236, %v1066
      %v1322 = vsub.f32 %v1237, %v1067
      %v1323 = vsub.f32 %v1238, %v1068
      %v1324 = vsub.f32 %v1239, %v1069
      %v1325 = vsub.f32 %v1240, %v1070
      %v1326 = vsub.f32 %v1241, %v1071
      %v1327 = vsub.f32 %v1242, %v1072
      %v1328 = vsub.f32 %v1243, %v1073
      %v1329 = vsub.f32 %v1244, %v1074
      %v1330 = vmul.f32 %v1245, %v1245
      %v1331 = vmul.f32 %v1246, %v1246
      %v1332 = vmul.f32 %v1247, %v1247
      %v1333 = vmul.f32 %v1248, %v1248
      %v1334 = vmul.f32 %v1249, %v1249
      %v1335 = vmul.f32 %v1250, %v1250
      %v1336 = vmul.f32 %v1251, %v1251
      %v1337 = vmul.f32 %v1252, %v1252
      %v1338 = vmul.f32 %v1253, %v1253
      %v1339 = vmul.f32 %v1254, %v1254
      %v1340 = vmul.f32 %v1255, %v1255
      %v1341 = vmul.f32 %v1256, %v1256
      %v1342 = vmul.f32 %v1257, %v1257
      %v1343 = vmul.f32 %v1258, %v1258
      %v1344 = vmul.f32 %v1259, %v1259
      %v1345 = vmul.f32 %v1260, %v1260
      %v1346 = vmul.f32 %v1261, %v1261
      %v1347 = vmul.f32 %v1262, %v1262
      %v1348 = vmul.f32 %v1263, %v1263
      %v1349 = vmul.f32 %v1264, %v1264
      %v1350 = vmul.f32 %v1265, %v1265
      %v1351 = vmul.f32 %v1266, %v1266
      %v1352 = vmul.f32 %v1267, %v1267
      %v1353 = vmul.f32 %v1268, %v1268
      %v1354 = vmul.f32 %v1269, %v1269
      %v1355 = vmul.f32 %v1270, %v1270
      %v1356 = vmul.f32 %v1271, %v1271
      %v1357 = vmul.f32 %v1272, %v1272
      %v1358 = vmul.f32 %v1273, %v1273
      %v1359 = vmul.f32 %v1274, %v1274
      %v1360 = vmul.f32 %v1275, %v1275
      %v1361 = vmul.f32 %v1276, %v1276
      %v1362 = vmul.f32 %v1277, %v1277
      %v1363 = vmul.f32 %v1278, %v1278
      %v1364 = vmul.f32 %v1279, %v1279
      %v1365 = vmul.f32 %v1280, %v1280
      %v1366 = vmul.f32 %v1281, %v1281
      %v1367 = vmul.f32 %v1282, %v1282
      %v1368 = vmul.f32 %v1283, %v1283
      %v1369 = vmul.f32 %v1284, %v1284
      %v1370 = vmul.f32 %v1285, %v1285
      %v1371 = vmul.f32 %v1286, %v1286
      %v1372 = vmul.f32 %v1287, %v1287
      %v1373 = vmul.f32 %v1288, %v1288
      %v1374 = vmul.f32 %v1289, %v1289
      %v1375 = vmul.f32 %v1290, %v1290
      %v1376 = vmul.f32 %v1291, %v1291
      %v1377 = vmul.f32 %v1292, %v1292
      %v1378 = vmul.f32 %v1293, %v1293
      %v1379 = vmul.f32 %v1294, %v1294
      %v1380 = vmul.f32 %v1295, %v1295
      %v1381 = vmul.f32 %v1296, %v1296
      %v1382 = vmul.f32 %v1297, %v1297
      %v1383 = vmul.f32 %v1298, %v1298
      %v1384 = vmul.f32 %v1299, %v1299
      %v1385 = vmul.f32 %v1300, %v1300
      %v1386 = vmul.f32 %v1301, %v1301
      %v1387 = vmul.f32 %v1302, %v1302
      %v1388 = vmul.f32 %v1303, %v1303
      %v1389 = vmul.f32 %v1304, %v1304
      %v1390 = vmul.f32 %v1305, %v1305
      %v1391 = vmul.f32 %v1306, %v1306
      %v1392 = vmul.f32 %v1307, %v1307
      %v1393 = vmul.f32 %v1308, %v1308
      %v1394 = vmul.f32 %v1309, %v1309
      %v1395 = vmul.f32 %v1310, %v1310
      %v1396 = vmul.f32 %v1311, %v1311
      %v1397 = vmul.f32 %v1312, %v1312
      %v1398 = vmul.f32 %v1313, %v1313
      %v1399 = vmul.f32 %v1314, %v1314
      %v1400 = vmul.f32 %v1315, %v1315
      %v1401 = vmul.f32 %v1316, %v1316
      %v1402 = vmul.f32 %v1317, %v1317
      %v1403 = vmul.f32 %v1318, %v1318
      %v1404 = vmul.f32 %v1319, %v1319
      %v1405 = vmul.f32 %v1320, %v1320
      %v1406 = vmul.f32 %v1321, %v1321
      %v1407 = vmul.f32 %v1322, %v1322
      %v1408 = vmul.f32 %v1323, %v1323
      %v1409 = vmul.f32 %v1324, %v1324
      %v1410 = vmul.f32 %v1325, %v1325
      %v1411 = vmul.f32 %v1326, %v1326
      %v1412 = vmul.f32 %v1327, %v1327
      %v1413 = vmul.f32 %v1328, %v1328
      %v1414 = vmul.f32 %v1329, %v1329
      %v1415 = vld [vmem:[%s745] sm:$0xff]
      %v1416 = vld [vmem:[%s745 + $0x8] sm:$0xff]
      %v1417 = vld [vmem:[%s745 + $0x10] sm:$0xff]
      %v1418 = vld [vmem:[%s745 + $0x18] sm:$0xff]
      %v1419 = vld [vmem:[%s745 + $0x20] sm:$0xff]
      %v1420 = vld [vmem:[%s745 + $0x28] sm:$0xff]
      %v1421 = vld [vmem:[%s745 + $0x30] sm:$0xff]
      %v1422 = vld [vmem:[%s745 + $0x38] sm:$0xff]
      %v1423 = vld [vmem:[%s745 + $0x40] sm:$0xff]
      %v1424 = vld [vmem:[%s745 + $0x48] sm:$0xff]
      %v1425 = vld [vmem:[%s745 + $0x50] sm:$0xff]
      %v1426 = vld [vmem:[%s745 + $0x58] sm:$0xff]
      %v1427 = vld [vmem:[%s745 + $0x60] sm:$0xff]
      %v1428 = vld [vmem:[%s745 + $0x68] sm:$0xff]
      %v1429 = vld [vmem:[%s745 + $0x70] sm:$0xff]
      %v1430 = vld [vmem:[%s745 + $0x78] sm:$0xff]
      %v1431 = vld [vmem:[%s745 + $0x80] sm:$0xff]
      %v1432 = vld [vmem:[%s745 + $0x88] sm:$0xff]
      %v1433 = vld [vmem:[%s745 + $0x90] sm:$0xff]
      %v1434 = vld [vmem:[%s745 + $0x98] sm:$0xff]
      %v1435 = vld [vmem:[%s745 + $0xa0] sm:$0xff]
      %v1436 = vld [vmem:[%s745 + $0xa8] sm:$0xff]
      %v1437 = vld [vmem:[%s745 + $0xb0] sm:$0xff]
      %v1438 = vld [vmem:[%s745 + $0xb8] sm:$0xff]
      %v1439 = vld [vmem:[%s745 + $0xc0] sm:$0xff]
      %v1440 = vld [vmem:[%s745 + $0xc8] sm:$0xff]
      %v1441 = vld [vmem:[%s745 + $0xd0] sm:$0xff]
      %v1442 = vld [vmem:[%s745 + $0xd8] sm:$0xff]
      %v1443 = vld [vmem:[%s745 + $0xe0] sm:$0xff]
      %v1444 = vld [vmem:[%s745 + $0xe8] sm:$0xff]
      %v1445 = vld [vmem:[%s745 + $0xf0] sm:$0xff]
      %v1446 = vld [vmem:[%s745 + $0xf8] sm:$0xff]
      %v1447 = vld [vmem:[%s745 + $0x100] sm:$0xff]
      %v1448 = vld [vmem:[%s745 + $0x108] sm:$0xff]
      %v1449 = vld [vmem:[%s745 + $0x110] sm:$0xff]
      %v1450 = vld [vmem:[%s745 + $0x118] sm:$0xff]
      %v1451 = vld [vmem:[%s745 + $0x120] sm:$0xff]
      %v1452 = vld [vmem:[%s745 + $0x128] sm:$0xff]
      %v1453 = vld [vmem:[%s745 + $0x130] sm:$0xff]
      %v1454 = vld [vmem:[%s745 + $0x138] sm:$0xff]
      %v1455 = vld [vmem:[%s745 + $0x140] sm:$0xff]
      %v1456 = vld [vmem:[%s745 + $0x148] sm:$0xff]
      %v1457 = vld [vmem:[%s745 + $0x150] sm:$0xff]
      %v1458 = vld [vmem:[%s745 + $0x158] sm:$0xff]
      %v1459 = vld [vmem:[%s745 + $0x160] sm:$0xff]
      %v1460 = vld [vmem:[%s745 + $0x168] sm:$0xff]
      %v1461 = vld [vmem:[%s745 + $0x170] sm:$0xff]
      %v1462 = vld [vmem:[%s745 + $0x178] sm:$0xff]
      %v1463 = vld [vmem:[%s745 + $0x180] sm:$0xff]
      %v1464 = vld [vmem:[%s745 + $0x188] sm:$0xff]
      %v1465 = vld [vmem:[%s745 + $0x190] sm:$0xff]
      %v1466 = vld [vmem:[%s745 + $0x198] sm:$0xff]
      %v1467 = vld [vmem:[%s745 + $0x1a0] sm:$0xff]
      %v1468 = vld [vmem:[%s745 + $0x1a8] sm:$0xff]
      %v1469 = vld [vmem:[%s745 + $0x1b0] sm:$0xff]
      %v1470 = vld [vmem:[%s745 + $0x1b8] sm:$0xff]
      %v1471 = vld [vmem:[%s745 + $0x1c0] sm:$0xff]
      %v1472 = vld [vmem:[%s745 + $0x1c8] sm:$0xff]
      %v1473 = vld [vmem:[%s745 + $0x1d0] sm:$0xff]
      %v1474 = vld [vmem:[%s745 + $0x1d8] sm:$0xff]
      %v1475 = vld [vmem:[%s745 + $0x1e0] sm:$0xff]
      %v1476 = vld [vmem:[%s745 + $0x1e8] sm:$0xff]
      %v1477 = vld [vmem:[%s745 + $0x1f0] sm:$0xff]
      %v1478 = vld [vmem:[%s745 + $0x1f8] sm:$0xff]
      %v1479 = vld [vmem:[%s745 + $0x200] sm:$0xff]
      %v1480 = vld [vmem:[%s745 + $0x208] sm:$0xff]
      %v1481 = vld [vmem:[%s745 + $0x210] sm:$0xff]
      %v1482 = vld [vmem:[%s745 + $0x218] sm:$0xff]
      %v1483 = vld [vmem:[%s745 + $0x220] sm:$0x3f]
      %v1484 = vld [vmem:[%s745 + $0x228] sm:$0x3f]
      %v1485 = vld [vmem:[%s745 + $0x230] sm:$0x3f]
      %v1486 = vld [vmem:[%s745 + $0x238] sm:$0x3f]
      %v1487 = vld [vmem:[%s745 + $0x240] sm:$0x3f]
      %v1488 = vld [vmem:[%s745 + $0x248] sm:$0x3f]
      %v1489 = vld [vmem:[%s745 + $0x250] sm:$0x3f]
      %v1490 = vld [vmem:[%s745 + $0x258] sm:$0x3f]
      %v1491 = vld [vmem:[%s745 + $0x260] sm:$0x3f]
      %v1492 = vld [vmem:[%s745 + $0x268] sm:$0x3f]
      %v1493 = vld [vmem:[%s745 + $0x270] sm:$0x3f]
      %v1494 = vld [vmem:[%s745 + $0x278] sm:$0x3f]
      %v1495 = vld [vmem:[%s745 + $0x280] sm:$0x3f]
      %v1496 = vld [vmem:[%s745 + $0x288] sm:$0x3f]
      %v1497 = vld [vmem:[%s745 + $0x290] sm:$0x3f]
      %v1498 = vld [vmem:[%s745 + $0x298] sm:$0x3f]
      %v1499 = vld [vmem:[%s745 + $0x2a0] sm:$0x3f]
      %v1500 = vmul.f32 %v1415, %v820
      %v1501 = vmul.f32 %v1416, %v821
      %v1502 = vmul.f32 %v1417, %v822
      %v1503 = vmul.f32 %v1418, %v823
      %v1504 = vmul.f32 %v1419, %v824
      %v1505 = vmul.f32 %v1420, %v825
      %v1506 = vmul.f32 %v1421, %v826
      %v1507 = vmul.f32 %v1422, %v827
      %v1508 = vmul.f32 %v1423, %v828
      %v1509 = vmul.f32 %v1424, %v829
      %v1510 = vmul.f32 %v1425, %v830
      %v1511 = vmul.f32 %v1426, %v831
      %v1512 = vmul.f32 %v1427, %v832
      %v1513 = vmul.f32 %v1428, %v833
      %v1514 = vmul.f32 %v1429, %v834
      %v1515 = vmul.f32 %v1430, %v835
      %v1516 = vmul.f32 %v1431, %v836
      %v1517 = vmul.f32 %v1432, %v837
      %v1518 = vmul.f32 %v1433, %v838
      %v1519 = vmul.f32 %v1434, %v839
      %v1520 = vmul.f32 %v1435, %v840
      %v1521 = vmul.f32 %v1436, %v841
      %v1522 = vmul.f32 %v1437, %v842
      %v1523 = vmul.f32 %v1438, %v843
      %v1524 = vmul.f32 %v1439, %v844
      %v1525 = vmul.f32 %v1440, %v845
      %v1526 = vmul.f32 %v1441, %v846
      %v1527 = vmul.f32 %v1442, %v847
      %v1528 = vmul.f32 %v1443, %v848
      %v1529 = vmul.f32 %v1444, %v849
      %v1530 = vmul.f32 %v1445, %v850
      %v1531 = vmul.f32 %v1446, %v851
      %v1532 = vmul.f32 %v1447, %v852
      %v1533 = vmul.f32 %v1448, %v853
      %v1534 = vmul.f32 %v1449, %v854
      %v1535 = vmul.f32 %v1450, %v855
      %v1536 = vmul.f32 %v1451, %v856
      %v1537 = vmul.f32 %v1452, %v857
      %v1538 = vmul.f32 %v1453, %v858
      %v1539 = vmul.f32 %v1454, %v859
      %v1540 = vmul.f32 %v1455, %v860
      %v1541 = vmul.f32 %v1456, %v861
      %v1542 = vmul.f32 %v1457, %v862
      %v1543 = vmul.f32 %v1458, %v863
      %v1544 = vmul.f32 %v1459, %v864
      %v1545 = vmul.f32 %v1460, %v865
      %v1546 = vmul.f32 %v1461, %v866
      %v1547 = vmul.f32 %v1462, %v867
      %v1548 = vmul.f32 %v1463, %v868
      %v1549 = vmul.f32 %v1464, %v869
      %v1550 = vmul.f32 %v1465, %v870
      %v1551 = vmul.f32 %v1466, %v871
      %v1552 = vmul.f32 %v1467, %v872
      %v1553 = vmul.f32 %v1468, %v873
      %v1554 = vmul.f32 %v1469, %v874
      %v1555 = vmul.f32 %v1470, %v875
      %v1556 = vmul.f32 %v1471, %v876
      %v1557 = vmul.f32 %v1472, %v877
      %v1558 = vmul.f32 %v1473, %v878
      %v1559 = vmul.f32 %v1474, %v879
      %v1560 = vmul.f32 %v1475, %v880
      %v1561 = vmul.f32 %v1476, %v881
      %v1562 = vmul.f32 %v1477, %v882
      %v1563 = vmul.f32 %v1478, %v883
      %v1564 = vmul.f32 %v1479, %v884
      %v1565 = vmul.f32 %v1480, %v885
      %v1566 = vmul.f32 %v1481, %v886
      %v1567 = vmul.f32 %v1482, %v887
      %v1568 = vmul.f32 %v1483, %v888
      %v1569 = vmul.f32 %v1484, %v889
      %v1570 = vmul.f32 %v1485, %v890
      %v1571 = vmul.f32 %v1486, %v891
      %v1572 = vmul.f32 %v1487, %v892
      %v1573 = vmul.f32 %v1488, %v893
      %v1574 = vmul.f32 %v1489, %v894
      %v1575 = vmul.f32 %v1490, %v895
      %v1576 = vmul.f32 %v1491, %v896
      %v1577 = vmul.f32 %v1492, %v897
      %v1578 = vmul.f32 %v1493, %v898
      %v1579 = vmul.f32 %v1494, %v899
      %v1580 = vmul.f32 %v1495, %v900
      %v1581 = vmul.f32 %v1496, %v901
      %v1582 = vmul.f32 %v1497, %v902
      %v1583 = vmul.f32 %v1498, %v903
      %v1584 = vmul.f32 %v1499, %v904
      %v1585 = vsub.f32 %v1500, %v990
      %v1586 = vsub.f32 %v1501, %v991
      %v1587 = vsub.f32 %v1502, %v992
      %v1588 = vsub.f32 %v1503, %v993
      %v1589 = vsub.f32 %v1504, %v994
      %v1590 = vsub.f32 %v1505, %v995
      %v1591 = vsub.f32 %v1506, %v996
      %v1592 = vsub.f32 %v1507, %v997
      %v1593 = vsub.f32 %v1508, %v998
      %v1594 = vsub.f32 %v1509, %v999
      %v1595 = vsub.f32 %v1510, %v1000
      %v1596 = vsub.f32 %v1511, %v1001
      %v1597 = vsub.f32 %v1512, %v1002
      %v1598 = vsub.f32 %v1513, %v1003
      %v1599 = vsub.f32 %v1514, %v1004
      %v1600 = vsub.f32 %v1515, %v1005
      %v1601 = vsub.f32 %v1516, %v1006
      %v1602 = vsub.f32 %v1517, %v1007
      %v1603 = vsub.f32 %v1518, %v1008
      %v1604 = vsub.f32 %v1519, %v1009
      %v1605 = vsub.f32 %v1520, %v1010
      %v1606 = vsub.f32 %v1521, %v1011
      %v1607 = vsub.f32 %v1522, %v1012
      %v1608 = vsub.f32 %v1523, %v1013
      %v1609 = vsub.f32 %v1524, %v1014
      %v1610 = vsub.f32 %v1525, %v1015
      %v1611 = vsub.f32 %v1526, %v1016
      %v1612 = vsub.f32 %v1527, %v1017
      %v1613 = vsub.f32 %v1528, %v1018
      %v1614 = vsub.f32 %v1529, %v1019
      %v1615 = vsub.f32 %v1530, %v1020
      %v1616 = vsub.f32 %v1531, %v1021
      %v1617 = vsub.f32 %v1532, %v1022
      %v1618 = vsub.f32 %v1533, %v1023
      %v1619 = vsub.f32 %v1534, %v1024
      %v1620 = vsub.f32 %v1535, %v1025
      %v1621 = vsub.f32 %v1536, %v1026
      %v1622 = vsub.f32 %v1537, %v1027
      %v1623 = vsub.f32 %v1538, %v1028
      %v1624 = vsub.f32 %v1539, %v1029
      %v1625 = vsub.f32 %v1540, %v1030
      %v1626 = vsub.f32 %v1541, %v1031
      %v1627 = vsub.f32 %v1542, %v1032
      %v1628 = vsub.f32 %v1543, %v1033
      %v1629 = vsub.f32 %v1544, %v1034
      %v1630 = vsub.f32 %v1545, %v1035
      %v1631 = vsub.f32 %v1546, %v1036
      %v1632 = vsub.f32 %v1547, %v1037
      %v1633 = vsub.f32 %v1548, %v1038
      %v1634 = vsub.f32 %v1549, %v1039
      %v1635 = vsub.f32 %v1550, %v1040
      %v1636 = vsub.f32 %v1551, %v1041
      %v1637 = vsub.f32 %v1552, %v1042
      %v1638 = vsub.f32 %v1553, %v1043
      %v1639 = vsub.f32 %v1554, %v1044
      %v1640 = vsub.f32 %v1555, %v1045
      %v1641 = vsub.f32 %v1556, %v1046
      %v1642 = vsub.f32 %v1557, %v1047
      %v1643 = vsub.f32 %v1558, %v1048
      %v1644 = vsub.f32 %v1559, %v1049
      %v1645 = vsub.f32 %v1560, %v1050
      %v1646 = vsub.f32 %v1561, %v1051
      %v1647 = vsub.f32 %v1562, %v1052
      %v1648 = vsub.f32 %v1563, %v1053
      %v1649 = vsub.f32 %v1564, %v1054
      %v1650 = vsub.f32 %v1565, %v1055
      %v1651 = vsub.f32 %v1566, %v1056
      %v1652 = vsub.f32 %v1567, %v1057
      %v1653 = vsub.f32 %v1568, %v1058
      %v1654 = vsub.f32 %v1569, %v1059
      %v1655 = vsub.f32 %v1570, %v1060
      %v1656 = vsub.f32 %v1571, %v1061
      %v1657 = vsub.f32 %v1572, %v1062
      %v1658 = vsub.f32 %v1573, %v1063
      %v1659 = vsub.f32 %v1574, %v1064
      %v1660 = vsub.f32 %v1575, %v1065
      %v1661 = vsub.f32 %v1576, %v1066
      %v1662 = vsub.f32 %v1577, %v1067
      %v1663 = vsub.f32 %v1578, %v1068
      %v1664 = vsub.f32 %v1579, %v1069
      %v1665 = vsub.f32 %v1580, %v1070
      %v1666 = vsub.f32 %v1581, %v1071
      %v1667 = vsub.f32 %v1582, %v1072
      %v1668 = vsub.f32 %v1583, %v1073
      %v1669 = vsub.f32 %v1584, %v1074
      %v1670 = vmul.f32 %v1585, %v1585
      %v1671 = vmul.f32 %v1586, %v1586
      %v1672 = vmul.f32 %v1587, %v1587
      %v1673 = vmul.f32 %v1588, %v1588
      %v1674 = vmul.f32 %v1589, %v1589
      %v1675 = vmul.f32 %v1590, %v1590
      %v1676 = vmul.f32 %v1591, %v1591
      %v1677 = vmul.f32 %v1592, %v1592
      %v1678 = vmul.f32 %v1593, %v1593
      %v1679 = vmul.f32 %v1594, %v1594
      %v1680 = vmul.f32 %v1595, %v1595
      %v1681 = vmul.f32 %v1596, %v1596
      %v1682 = vmul.f32 %v1597, %v1597
      %v1683 = vmul.f32 %v1598, %v1598
      %v1684 = vmul.f32 %v1599, %v1599
      %v1685 = vmul.f32 %v1600, %v1600
      %v1686 = vmul.f32 %v1601, %v1601
      %v1687 = vmul.f32 %v1602, %v1602
      %v1688 = vmul.f32 %v1603, %v1603
      %v1689 = vmul.f32 %v1604, %v1604
      %v1690 = vmul.f32 %v1605, %v1605
      %v1691 = vmul.f32 %v1606, %v1606
      %v1692 = vmul.f32 %v1607, %v1607
      %v1693 = vmul.f32 %v1608, %v1608
      %v1694 = vmul.f32 %v1609, %v1609
      %v1695 = vmul.f32 %v1610, %v1610
      %v1696 = vmul.f32 %v1611, %v1611
      %v1697 = vmul.f32 %v1612, %v1612
      %v1698 = vmul.f32 %v1613, %v1613
      %v1699 = vmul.f32 %v1614, %v1614
      %v1700 = vmul.f32 %v1615, %v1615
      %v1701 = vmul.f32 %v1616, %v1616
      %v1702 = vmul.f32 %v1617, %v1617
      %v1703 = vmul.f32 %v1618, %v1618
      %v1704 = vmul.f32 %v1619, %v1619
      %v1705 = vmul.f32 %v1620, %v1620
      %v1706 = vmul.f32 %v1621, %v1621
      %v1707 = vmul.f32 %v1622, %v1622
      %v1708 = vmul.f32 %v1623, %v1623
      %v1709 = vmul.f32 %v1624, %v1624
      %v1710 = vmul.f32 %v1625, %v1625
      %v1711 = vmul.f32 %v1626, %v1626
      %v1712 = vmul.f32 %v1627, %v1627
      %v1713 = vmul.f32 %v1628, %v1628
      %v1714 = vmul.f32 %v1629, %v1629
      %v1715 = vmul.f32 %v1630, %v1630
      %v1716 = vmul.f32 %v1631, %v1631
      %v1717 = vmul.f32 %v1632, %v1632
      %v1718 = vmul.f32 %v1633, %v1633
      %v1719 = vmul.f32 %v1634, %v1634
      %v1720 = vmul.f32 %v1635, %v1635
      %v1721 = vmul.f32 %v1636, %v1636
      %v1722 = vmul.f32 %v1637, %v1637
      %v1723 = vmul.f32 %v1638, %v1638
      %v1724 = vmul.f32 %v1639, %v1639
      %v1725 = vmul.f32 %v1640, %v1640
      %v1726 = vmul.f32 %v1641, %v1641
      %v1727 = vmul.f32 %v1642, %v1642
      %v1728 = vmul.f32 %v1643, %v1643
      %v1729 = vmul.f32 %v1644, %v1644
      %v1730 = vmul.f32 %v1645, %v1645
      %v1731 = vmul.f32 %v1646, %v1646
      %v1732 = vmul.f32 %v1647, %v1647
      %v1733 = vmul.f32 %v1648, %v1648
      %v1734 = vmul.f32 %v1649, %v1649
      %v1735 = vmul.f32 %v1650, %v1650
      %v1736 = vmul.f32 %v1651, %v1651
      %v1737 = vmul.f32 %v1652, %v1652
      %v1738 = vmul.f32 %v1653, %v1653
      %v1739 = vmul.f32 %v1654, %v1654
      %v1740 = vmul.f32 %v1655, %v1655
      %v1741 = vmul.f32 %v1656, %v1656
      %v1742 = vmul.f32 %v1657, %v1657
      %v1743 = vmul.f32 %v1658, %v1658
      %v1744 = vmul.f32 %v1659, %v1659
      %v1745 = vmul.f32 %v1660, %v1660
      %v1746 = vmul.f32 %v1661, %v1661
      %v1747 = vmul.f32 %v1662, %v1662
      %v1748 = vmul.f32 %v1663, %v1663
      %v1749 = vmul.f32 %v1664, %v1664
      %v1750 = vmul.f32 %v1665, %v1665
      %v1751 = vmul.f32 %v1666, %v1666
      %v1752 = vmul.f32 %v1667, %v1667
      %v1753 = vmul.f32 %v1668, %v1668
      %v1754 = vmul.f32 %v1669, %v1669
      %v1755 = vadd.f32 %v1330, %v1670
      %v1756 = vadd.f32 %v1331, %v1671
      %v1757 = vadd.f32 %v1332, %v1672
      %v1758 = vadd.f32 %v1333, %v1673
      %v1759 = vadd.f32 %v1334, %v1674
      %v1760 = vadd.f32 %v1335, %v1675
      %v1761 = vadd.f32 %v1336, %v1676
      %v1762 = vadd.f32 %v1337, %v1677
      %v1763 = vadd.f32 %v1338, %v1678
      %v1764 = vadd.f32 %v1339, %v1679
      %v1765 = vadd.f32 %v1340, %v1680
      %v1766 = vadd.f32 %v1341, %v1681
      %v1767 = vadd.f32 %v1342, %v1682
      %v1768 = vadd.f32 %v1343, %v1683
      %v1769 = vadd.f32 %v1344, %v1684
      %v1770 = vadd.f32 %v1345, %v1685
      %v1771 = vadd.f32 %v1346, %v1686
      %v1772 = vadd.f32 %v1347, %v1687
      %v1773 = vadd.f32 %v1348, %v1688
      %v1774 = vadd.f32 %v1349, %v1689
      %v1775 = vadd.f32 %v1350, %v1690
      %v1776 = vadd.f32 %v1351, %v1691
      %v1777 = vadd.f32 %v1352, %v1692
      %v1778 = vadd.f32 %v1353, %v1693
      %v1779 = vadd.f32 %v1354, %v1694
      %v1780 = vadd.f32 %v1355, %v1695
      %v1781 = vadd.f32 %v1356, %v1696
      %v1782 = vadd.f32 %v1357, %v1697
      %v1783 = vadd.f32 %v1358, %v1698
      %v1784 = vadd.f32 %v1359, %v1699
      %v1785 = vadd.f32 %v1360, %v1700
      %v1786 = vadd.f32 %v1361, %v1701
      %v1787 = vadd.f32 %v1362, %v1702
      %v1788 = vadd.f32 %v1363, %v1703
      %v1789 = vadd.f32 %v1364, %v1704
      %v1790 = vadd.f32 %v1365, %v1705
      %v1791 = vadd.f32 %v1366, %v1706
      %v1792 = vadd.f32 %v1367, %v1707
      %v1793 = vadd.f32 %v1368, %v1708
      %v1794 = vadd.f32 %v1369, %v1709
      %v1795 = vadd.f32 %v1370, %v1710
      %v1796 = vadd.f32 %v1371, %v1711
      %v1797 = vadd.f32 %v1372, %v1712
      %v1798 = vadd.f32 %v1373, %v1713
      %v1799 = vadd.f32 %v1374, %v1714
      %v1800 = vadd.f32 %v1375, %v1715
      %v1801 = vadd.f32 %v1376, %v1716
      %v1802 = vadd.f32 %v1377, %v1717
      %v1803 = vadd.f32 %v1378, %v1718
      %v1804 = vadd.f32 %v1379, %v1719
      %v1805 = vadd.f32 %v1380, %v1720
      %v1806 = vadd.f32 %v1381, %v1721
      %v1807 = vadd.f32 %v1382, %v1722
      %v1808 = vadd.f32 %v1383, %v1723
      %v1809 = vadd.f32 %v1384, %v1724
      %v1810 = vadd.f32 %v1385, %v1725
      %v1811 = vadd.f32 %v1386, %v1726
      %v1812 = vadd.f32 %v1387, %v1727
      %v1813 = vadd.f32 %v1388, %v1728
      %v1814 = vadd.f32 %v1389, %v1729
      %v1815 = vadd.f32 %v1390, %v1730
      %v1816 = vadd.f32 %v1391, %v1731
      %v1817 = vadd.f32 %v1392, %v1732
      %v1818 = vadd.f32 %v1393, %v1733
      %v1819 = vadd.f32 %v1394, %v1734
      %v1820 = vadd.f32 %v1395, %v1735
      %v1821 = vadd.f32 %v1396, %v1736
      %v1822 = vadd.f32 %v1397, %v1737
      %v1823 = vadd.f32 %v1398, %v1738
      %v1824 = vadd.f32 %v1399, %v1739
      %v1825 = vadd.f32 %v1400, %v1740
      %v1826 = vadd.f32 %v1401, %v1741
      %v1827 = vadd.f32 %v1402, %v1742
      %v1828 = vadd.f32 %v1403, %v1743
      %v1829 = vadd.f32 %v1404, %v1744
      %v1830 = vadd.f32 %v1405, %v1745
      %v1831 = vadd.f32 %v1406, %v1746
      %v1832 = vadd.f32 %v1407, %v1747
      %v1833 = vadd.f32 %v1408, %v1748
      %v1834 = vadd.f32 %v1409, %v1749
      %v1835 = vadd.f32 %v1410, %v1750
      %v1836 = vadd.f32 %v1411, %v1751
      %v1837 = vadd.f32 %v1412, %v1752
      %v1838 = vadd.f32 %v1413, %v1753
      %v1839 = vadd.f32 %v1414, %v1754
      %v1840 = vld [vmem:[%s750] sm:$0xff]
      %v1841 = vld [vmem:[%s750 + $0x8] sm:$0xff]
      %v1842 = vld [vmem:[%s750 + $0x10] sm:$0xff]
      %v1843 = vld [vmem:[%s750 + $0x18] sm:$0xff]
      %v1844 = vld [vmem:[%s750 + $0x20] sm:$0xff]
      %v1845 = vld [vmem:[%s750 + $0x28] sm:$0xff]
      %v1846 = vld [vmem:[%s750 + $0x30] sm:$0xff]
      %v1847 = vld [vmem:[%s750 + $0x38] sm:$0xff]
      %v1848 = vld [vmem:[%s750 + $0x40] sm:$0xff]
      %v1849 = vld [vmem:[%s750 + $0x48] sm:$0xff]
      %v1850 = vld [vmem:[%s750 + $0x50] sm:$0xff]
      %v1851 = vld [vmem:[%s750 + $0x58] sm:$0xff]
      %v1852 = vld [vmem:[%s750 + $0x60] sm:$0xff]
      %v1853 = vld [vmem:[%s750 + $0x68] sm:$0xff]
      %v1854 = vld [vmem:[%s750 + $0x70] sm:$0xff]
      %v1855 = vld [vmem:[%s750 + $0x78] sm:$0xff]
      %v1856 = vld [vmem:[%s750 + $0x80] sm:$0xff]
      %v1857 = vld [vmem:[%s750 + $0x88] sm:$0xff]
      %v1858 = vld [vmem:[%s750 + $0x90] sm:$0xff]
      %v1859 = vld [vmem:[%s750 + $0x98] sm:$0xff]
      %v1860 = vld [vmem:[%s750 + $0xa0] sm:$0xff]
      %v1861 = vld [vmem:[%s750 + $0xa8] sm:$0xff]
      %v1862 = vld [vmem:[%s750 + $0xb0] sm:$0xff]
      %v1863 = vld [vmem:[%s750 + $0xb8] sm:$0xff]
      %v1864 = vld [vmem:[%s750 + $0xc0] sm:$0xff]
      %v1865 = vld [vmem:[%s750 + $0xc8] sm:$0xff]
      %v1866 = vld [vmem:[%s750 + $0xd0] sm:$0xff]
      %v1867 = vld [vmem:[%s750 + $0xd8] sm:$0xff]
      %v1868 = vld [vmem:[%s750 + $0xe0] sm:$0xff]
      %v1869 = vld [vmem:[%s750 + $0xe8] sm:$0xff]
      %v1870 = vld [vmem:[%s750 + $0xf0] sm:$0xff]
      %v1871 = vld [vmem:[%s750 + $0xf8] sm:$0xff]
      %v1872 = vld [vmem:[%s750 + $0x100] sm:$0xff]
      %v1873 = vld [vmem:[%s750 + $0x108] sm:$0xff]
      %v1874 = vld [vmem:[%s750 + $0x110] sm:$0xff]
      %v1875 = vld [vmem:[%s750 + $0x118] sm:$0xff]
      %v1876 = vld [vmem:[%s750 + $0x120] sm:$0xff]
      %v1877 = vld [vmem:[%s750 + $0x128] sm:$0xff]
      %v1878 = vld [vmem:[%s750 + $0x130] sm:$0xff]
      %v1879 = vld [vmem:[%s750 + $0x138] sm:$0xff]
      %v1880 = vld [vmem:[%s750 + $0x140] sm:$0xff]
      %v1881 = vld [vmem:[%s750 + $0x148] sm:$0xff]
      %v1882 = vld [vmem:[%s750 + $0x150] sm:$0xff]
      %v1883 = vld [vmem:[%s750 + $0x158] sm:$0xff]
      %v1884 = vld [vmem:[%s750 + $0x160] sm:$0xff]
      %v1885 = vld [vmem:[%s750 + $0x168] sm:$0xff]
      %v1886 = vld [vmem:[%s750 + $0x170] sm:$0xff]
      %v1887 = vld [vmem:[%s750 + $0x178] sm:$0xff]
      %v1888 = vld [vmem:[%s750 + $0x180] sm:$0xff]
      %v1889 = vld [vmem:[%s750 + $0x188] sm:$0xff]
      %v1890 = vld [vmem:[%s750 + $0x190] sm:$0xff]
      %v1891 = vld [vmem:[%s750 + $0x198] sm:$0xff]
      %v1892 = vld [vmem:[%s750 + $0x1a0] sm:$0xff]
      %v1893 = vld [vmem:[%s750 + $0x1a8] sm:$0xff]
      %v1894 = vld [vmem:[%s750 + $0x1b0] sm:$0xff]
      %v1895 = vld [vmem:[%s750 + $0x1b8] sm:$0xff]
      %v1896 = vld [vmem:[%s750 + $0x1c0] sm:$0xff]
      %v1897 = vld [vmem:[%s750 + $0x1c8] sm:$0xff]
      %v1898 = vld [vmem:[%s750 + $0x1d0] sm:$0xff]
      %v1899 = vld [vmem:[%s750 + $0x1d8] sm:$0xff]
      %v1900 = vld [vmem:[%s750 + $0x1e0] sm:$0xff]
      %v1901 = vld [vmem:[%s750 + $0x1e8] sm:$0xff]
      %v1902 = vld [vmem:[%s750 + $0x1f0] sm:$0xff]
      %v1903 = vld [vmem:[%s750 + $0x1f8] sm:$0xff]
      %v1904 = vld [vmem:[%s750 + $0x200] sm:$0xff]
      %v1905 = vld [vmem:[%s750 + $0x208] sm:$0xff]
      %v1906 = vld [vmem:[%s750 + $0x210] sm:$0xff]
      %v1907 = vld [vmem:[%s750 + $0x218] sm:$0xff]
      %v1908 = vld [vmem:[%s750 + $0x220] sm:$0x3f]
      %v1909 = vld [vmem:[%s750 + $0x228] sm:$0x3f]
      %v1910 = vld [vmem:[%s750 + $0x230] sm:$0x3f]
      %v1911 = vld [vmem:[%s750 + $0x238] sm:$0x3f]
      %v1912 = vld [vmem:[%s750 + $0x240] sm:$0x3f]
      %v1913 = vld [vmem:[%s750 + $0x248] sm:$0x3f]
      %v1914 = vld [vmem:[%s750 + $0x250] sm:$0x3f]
      %v1915 = vld [vmem:[%s750 + $0x258] sm:$0x3f]
      %v1916 = vld [vmem:[%s750 + $0x260] sm:$0x3f]
      %v1917 = vld [vmem:[%s750 + $0x268] sm:$0x3f]
      %v1918 = vld [vmem:[%s750 + $0x270] sm:$0x3f]
      %v1919 = vld [vmem:[%s750 + $0x278] sm:$0x3f]
      %v1920 = vld [vmem:[%s750 + $0x280] sm:$0x3f]
      %v1921 = vld [vmem:[%s750 + $0x288] sm:$0x3f]
      %v1922 = vld [vmem:[%s750 + $0x290] sm:$0x3f]
      %v1923 = vld [vmem:[%s750 + $0x298] sm:$0x3f]
      %v1924 = vld [vmem:[%s750 + $0x2a0] sm:$0x3f]
      %v1925 = vmul.f32 %v1840, %v820
      %v1926 = vmul.f32 %v1841, %v821
      %v1927 = vmul.f32 %v1842, %v822
      %v1928 = vmul.f32 %v1843, %v823
      %v1929 = vmul.f32 %v1844, %v824
      %v1930 = vmul.f32 %v1845, %v825
      %v1931 = vmul.f32 %v1846, %v826
      %v1932 = vmul.f32 %v1847, %v827
      %v1933 = vmul.f32 %v1848, %v828
      %v1934 = vmul.f32 %v1849, %v829
      %v1935 = vmul.f32 %v1850, %v830
      %v1936 = vmul.f32 %v1851, %v831
      %v1937 = vmul.f32 %v1852, %v832
      %v1938 = vmul.f32 %v1853, %v833
      %v1939 = vmul.f32 %v1854, %v834
      %v1940 = vmul.f32 %v1855, %v835
      %v1941 = vmul.f32 %v1856, %v836
      %v1942 = vmul.f32 %v1857, %v837
      %v1943 = vmul.f32 %v1858, %v838
      %v1944 = vmul.f32 %v1859, %v839
      %v1945 = vmul.f32 %v1860, %v840
      %v1946 = vmul.f32 %v1861, %v841
      %v1947 = vmul.f32 %v1862, %v842
      %v1948 = vmul.f32 %v1863, %v843
      %v1949 = vmul.f32 %v1864, %v844
      %v1950 = vmul.f32 %v1865, %v845
      %v1951 = vmul.f32 %v1866, %v846
      %v1952 = vmul.f32 %v1867, %v847
      %v1953 = vmul.f32 %v1868, %v848
      %v1954 = vmul.f32 %v1869, %v849
      %v1955 = vmul.f32 %v1870, %v850
      %v1956 = vmul.f32 %v1871, %v851
      %v1957 = vmul.f32 %v1872, %v852
      %v1958 = vmul.f32 %v1873, %v853
      %v1959 = vmul.f32 %v1874, %v854
      %v1960 = vmul.f32 %v1875, %v855
      %v1961 = vmul.f32 %v1876, %v856
      %v1962 = vmul.f32 %v1877, %v857
      %v1963 = vmul.f32 %v1878, %v858
      %v1964 = vmul.f32 %v1879, %v859
      %v1965 = vmul.f32 %v1880, %v860
      %v1966 = vmul.f32 %v1881, %v861
      %v1967 = vmul.f32 %v1882, %v862
      %v1968 = vmul.f32 %v1883, %v863
      %v1969 = vmul.f32 %v1884, %v864
      %v1970 = vmul.f32 %v1885, %v865
      %v1971 = vmul.f32 %v1886, %v866
      %v1972 = vmul.f32 %v1887, %v867
      %v1973 = vmul.f32 %v1888, %v868
      %v1974 = vmul.f32 %v1889, %v869
      %v1975 = vmul.f32 %v1890, %v870
      %v1976 = vmul.f32 %v1891, %v871
      %v1977 = vmul.f32 %v1892, %v872
      %v1978 = vmul.f32 %v1893, %v873
      %v1979 = vmul.f32 %v1894, %v874
      %v1980 = vmul.f32 %v1895, %v875
      %v1981 = vmul.f32 %v1896, %v876
      %v1982 = vmul.f32 %v1897, %v877
      %v1983 = vmul.f32 %v1898, %v878
      %v1984 = vmul.f32 %v1899, %v879
      %v1985 = vmul.f32 %v1900, %v880
      %v1986 = vmul.f32 %v1901, %v881
      %v1987 = vmul.f32 %v1902, %v882
      %v1988 = vmul.f32 %v1903, %v883
      %v1989 = vmul.f32 %v1904, %v884
      %v1990 = vmul.f32 %v1905, %v885
      %v1991 = vmul.f32 %v1906, %v886
      %v1992 = vmul.f32 %v1907, %v887
      %v1993 = vmul.f32 %v1908, %v888
      %v1994 = vmul.f32 %v1909, %v889
      %v1995 = vmul.f32 %v1910, %v890
      %v1996 = vmul.f32 %v1911, %v891
      %v1997 = vmul.f32 %v1912, %v892
      %v1998 = vmul.f32 %v1913, %v893
      %v1999 = vmul.f32 %v1914, %v894
      %v2000 = vmul.f32 %v1915, %v895
      %v2001 = vmul.f32 %v1916, %v896
      %v2002 = vmul.f32 %v1917, %v897
      %v2003 = vmul.f32 %v1918, %v898
      %v2004 = vmul.f32 %v1919, %v899
      %v2005 = vmul.f32 %v1920, %v900
      %v2006 = vmul.f32 %v1921, %v901
      %v2007 = vmul.f32 %v1922, %v902
      %v2008 = vmul.f32 %v1923, %v903
      %v2009 = vmul.f32 %v1924, %v904
      %v2010 = vsub.f32 %v1925, %v990
      %v2011 = vsub.f32 %v1926, %v991
      %v2012 = vsub.f32 %v1927, %v992
      %v2013 = vsub.f32 %v1928, %v993
      %v2014 = vsub.f32 %v1929, %v994
      %v2015 = vsub.f32 %v1930, %v995
      %v2016 = vsub.f32 %v1931, %v996
      %v2017 = vsub.f32 %v1932, %v997
      %v2018 = vsub.f32 %v1933, %v998
      %v2019 = vsub.f32 %v1934, %v999
      %v2020 = vsub.f32 %v1935, %v1000
      %v2021 = vsub.f32 %v1936, %v1001
      %v2022 = vsub.f32 %v1937, %v1002
      %v2023 = vsub.f32 %v1938, %v1003
      %v2024 = vsub.f32 %v1939, %v1004
      %v2025 = vsub.f32 %v1940, %v1005
      %v2026 = vsub.f32 %v1941, %v1006
      %v2027 = vsub.f32 %v1942, %v1007
      %v2028 = vsub.f32 %v1943, %v1008
      %v2029 = vsub.f32 %v1944, %v1009
      %v2030 = vsub.f32 %v1945, %v1010
      %v2031 = vsub.f32 %v1946, %v1011
      %v2032 = vsub.f32 %v1947, %v1012
      %v2033 = vsub.f32 %v1948, %v1013
      %v2034 = vsub.f32 %v1949, %v1014
      %v2035 = vsub.f32 %v1950, %v1015
      %v2036 = vsub.f32 %v1951, %v1016
      %v2037 = vsub.f32 %v1952, %v1017
      %v2038 = vsub.f32 %v1953, %v1018
      %v2039 = vsub.f32 %v1954, %v1019
      %v2040 = vsub.f32 %v1955, %v1020
      %v2041 = vsub.f32 %v1956, %v1021
      %v2042 = vsub.f32 %v1957, %v1022
      %v2043 = vsub.f32 %v1958, %v1023
      %v2044 = vsub.f32 %v1959, %v1024
      %v2045 = vsub.f32 %v1960, %v1025
      %v2046 = vsub.f32 %v1961, %v1026
      %v2047 = vsub.f32 %v1962, %v1027
      %v2048 = vsub.f32 %v1963, %v1028
      %v2049 = vsub.f32 %v1964, %v1029
      %v2050 = vsub.f32 %v1965, %v1030
      %v2051 = vsub.f32 %v1966, %v1031
      %v2052 = vsub.f32 %v1967, %v1032
      %v2053 = vsub.f32 %v1968, %v1033
      %v2054 = vsub.f32 %v1969, %v1034
      %v2055 = vsub.f32 %v1970, %v1035
      %v2056 = vsub.f32 %v1971, %v1036
      %v2057 = vsub.f32 %v1972, %v1037
      %v2058 = vsub.f32 %v1973, %v1038
      %v2059 = vsub.f32 %v1974, %v1039
      %v2060 = vsub.f32 %v1975, %v1040
      %v2061 = vsub.f32 %v1976, %v1041
      %v2062 = vsub.f32 %v1977, %v1042
      %v2063 = vsub.f32 %v1978, %v1043
      %v2064 = vsub.f32 %v1979, %v1044
      %v2065 = vsub.f32 %v1980, %v1045
      %v2066 = vsub.f32 %v1981, %v1046
      %v2067 = vsub.f32 %v1982, %v1047
      %v2068 = vsub.f32 %v1983, %v1048
      %v2069 = vsub.f32 %v1984, %v1049
      %v2070 = vsub.f32 %v1985, %v1050
      %v2071 = vsub.f32 %v1986, %v1051
      %v2072 = vsub.f32 %v1987, %v1052
      %v2073 = vsub.f32 %v1988, %v1053
      %v2074 = vsub.f32 %v1989, %v1054
      %v2075 = vsub.f32 %v1990, %v1055
      %v2076 = vsub.f32 %v1991, %v1056
      %v2077 = vsub.f32 %v1992, %v1057
      %v2078 = vsub.f32 %v1993, %v1058
      %v2079 = vsub.f32 %v1994, %v1059
      %v2080 = vsub.f32 %v1995, %v1060
      %v2081 = vsub.f32 %v1996, %v1061
      %v2082 = vsub.f32 %v1997, %v1062
      %v2083 = vsub.f32 %v1998, %v1063
      %v2084 = vsub.f32 %v1999, %v1064
      %v2085 = vsub.f32 %v2000, %v1065
      %v2086 = vsub.f32 %v2001, %v1066
      %v2087 = vsub.f32 %v2002, %v1067
      %v2088 = vsub.f32 %v2003, %v1068
      %v2089 = vsub.f32 %v2004, %v1069
      %v2090 = vsub.f32 %v2005, %v1070
      %v2091 = vsub.f32 %v2006, %v1071
      %v2092 = vsub.f32 %v2007, %v1072
      %v2093 = vsub.f32 %v2008, %v1073
      %v2094 = vsub.f32 %v2009, %v1074
      %v2095 = vmul.f32 %v2010, %v2010
      %v2096 = vmul.f32 %v2011, %v2011
      %v2097 = vmul.f32 %v2012, %v2012
      %v2098 = vmul.f32 %v2013, %v2013
      %v2099 = vmul.f32 %v2014, %v2014
      %v2100 = vmul.f32 %v2015, %v2015
      %v2101 = vmul.f32 %v2016, %v2016
      %v2102 = vmul.f32 %v2017, %v2017
      %v2103 = vmul.f32 %v2018, %v2018
      %v2104 = vmul.f32 %v2019, %v2019
      %v2105 = vmul.f32 %v2020, %v2020
      %v2106 = vmul.f32 %v2021, %v2021
      %v2107 = vmul.f32 %v2022, %v2022
      %v2108 = vmul.f32 %v2023, %v2023
      %v2109 = vmul.f32 %v2024, %v2024
      %v2110 = vmul.f32 %v2025, %v2025
      %v2111 = vmul.f32 %v2026, %v2026
      %v2112 = vmul.f32 %v2027, %v2027
      %v2113 = vmul.f32 %v2028, %v2028
      %v2114 = vmul.f32 %v2029, %v2029
      %v2115 = vmul.f32 %v2030, %v2030
      %v2116 = vmul.f32 %v2031, %v2031
      %v2117 = vmul.f32 %v2032, %v2032
      %v2118 = vmul.f32 %v2033, %v2033
      %v2119 = vmul.f32 %v2034, %v2034
      %v2120 = vmul.f32 %v2035, %v2035
      %v2121 = vmul.f32 %v2036, %v2036
      %v2122 = vmul.f32 %v2037, %v2037
      %v2123 = vmul.f32 %v2038, %v2038
      %v2124 = vmul.f32 %v2039, %v2039
      %v2125 = vmul.f32 %v2040, %v2040
      %v2126 = vmul.f32 %v2041, %v2041
      %v2127 = vmul.f32 %v2042, %v2042
      %v2128 = vmul.f32 %v2043, %v2043
      %v2129 = vmul.f32 %v2044, %v2044
      %v2130 = vmul.f32 %v2045, %v2045
      %v2131 = vmul.f32 %v2046, %v2046
      %v2132 = vmul.f32 %v2047, %v2047
      %v2133 = vmul.f32 %v2048, %v2048
      %v2134 = vmul.f32 %v2049, %v2049
      %v2135 = vmul.f32 %v2050, %v2050
      %v2136 = vmul.f32 %v2051, %v2051
      %v2137 = vmul.f32 %v2052, %v2052
      %v2138 = vmul.f32 %v2053, %v2053
      %v2139 = vmul.f32 %v2054, %v2054
      %v2140 = vmul.f32 %v2055, %v2055
      %v2141 = vmul.f32 %v2056, %v2056
      %v2142 = vmul.f32 %v2057, %v2057
      %v2143 = vmul.f32 %v2058, %v2058
      %v2144 = vmul.f32 %v2059, %v2059
      %v2145 = vmul.f32 %v2060, %v2060
      %v2146 = vmul.f32 %v2061, %v2061
      %v2147 = vmul.f32 %v2062, %v2062
      %v2148 = vmul.f32 %v2063, %v2063
      %v2149 = vmul.f32 %v2064, %v2064
      %v2150 = vmul.f32 %v2065, %v2065
      %v2151 = vmul.f32 %v2066, %v2066
      %v2152 = vmul.f32 %v2067, %v2067
      %v2153 = vmul.f32 %v2068, %v2068
      %v2154 = vmul.f32 %v2069, %v2069
      %v2155 = vmul.f32 %v2070, %v2070
      %v2156 = vmul.f32 %v2071, %v2071
      %v2157 = vmul.f32 %v2072, %v2072
      %v2158 = vmul.f32 %v2073, %v2073
      %v2159 = vmul.f32 %v2074, %v2074
      %v2160 = vmul.f32 %v2075, %v2075
      %v2161 = vmul.f32 %v2076, %v2076
      %v2162 = vmul.f32 %v2077, %v2077
      %v2163 = vmul.f32 %v2078, %v2078
      %v2164 = vmul.f32 %v2079, %v2079
      %v2165 = vmul.f32 %v2080, %v2080
      %v2166 = vmul.f32 %v2081, %v2081
      %v2167 = vmul.f32 %v2082, %v2082
      %v2168 = vmul.f32 %v2083, %v2083
      %v2169 = vmul.f32 %v2084, %v2084
      %v2170 = vmul.f32 %v2085, %v2085
      %v2171 = vmul.f32 %v2086, %v2086
      %v2172 = vmul.f32 %v2087, %v2087
      %v2173 = vmul.f32 %v2088, %v2088
      %v2174 = vmul.f32 %v2089, %v2089
      %v2175 = vmul.f32 %v2090, %v2090
      %v2176 = vmul.f32 %v2091, %v2091
      %v2177 = vmul.f32 %v2092, %v2092
      %v2178 = vmul.f32 %v2093, %v2093
      %v2179 = vmul.f32 %v2094, %v2094
      %v2180 = vadd.f32 %v1755, %v2095
      %v2181 = vadd.f32 %v1756, %v2096
      %v2182 = vadd.f32 %v1757, %v2097
      %v2183 = vadd.f32 %v1758, %v2098
      %v2184 = vadd.f32 %v1759, %v2099
      %v2185 = vadd.f32 %v1760, %v2100
      %v2186 = vadd.f32 %v1761, %v2101
      %v2187 = vadd.f32 %v1762, %v2102
      %v2188 = vadd.f32 %v1763, %v2103
      %v2189 = vadd.f32 %v1764, %v2104
      %v2190 = vadd.f32 %v1765, %v2105
      %v2191 = vadd.f32 %v1766, %v2106
      %v2192 = vadd.f32 %v1767, %v2107
      %v2193 = vadd.f32 %v1768, %v2108
      %v2194 = vadd.f32 %v1769, %v2109
      %v2195 = vadd.f32 %v1770, %v2110
      %v2196 = vadd.f32 %v1771, %v2111
      %v2197 = vadd.f32 %v1772, %v2112
      %v2198 = vadd.f32 %v1773, %v2113
      %v2199 = vadd.f32 %v1774, %v2114
      %v2200 = vadd.f32 %v1775, %v2115
      %v2201 = vadd.f32 %v1776, %v2116
      %v2202 = vadd.f32 %v1777, %v2117
      %v2203 = vadd.f32 %v1778, %v2118
      %v2204 = vadd.f32 %v1779, %v2119
      %v2205 = vadd.f32 %v1780, %v2120
      %v2206 = vadd.f32 %v1781, %v2121
      %v2207 = vadd.f32 %v1782, %v2122
      %v2208 = vadd.f32 %v1783, %v2123
      %v2209 = vadd.f32 %v1784, %v2124
      %v2210 = vadd.f32 %v1785, %v2125
      %v2211 = vadd.f32 %v1786, %v2126
      %v2212 = vadd.f32 %v1787, %v2127
      %v2213 = vadd.f32 %v1788, %v2128
      %v2214 = vadd.f32 %v1789, %v2129
      %v2215 = vadd.f32 %v1790, %v2130
      %v2216 = vadd.f32 %v1791, %v2131
      %v2217 = vadd.f32 %v1792, %v2132
      %v2218 = vadd.f32 %v1793, %v2133
      %v2219 = vadd.f32 %v1794, %v2134
      %v2220 = vadd.f32 %v1795, %v2135
      %v2221 = vadd.f32 %v1796, %v2136
      %v2222 = vadd.f32 %v1797, %v2137
      %v2223 = vadd.f32 %v1798, %v2138
      %v2224 = vadd.f32 %v1799, %v2139
      %v2225 = vadd.f32 %v1800, %v2140
      %v2226 = vadd.f32 %v1801, %v2141
      %v2227 = vadd.f32 %v1802, %v2142
      %v2228 = vadd.f32 %v1803, %v2143
      %v2229 = vadd.f32 %v1804, %v2144
      %v2230 = vadd.f32 %v1805, %v2145
      %v2231 = vadd.f32 %v1806, %v2146
      %v2232 = vadd.f32 %v1807, %v2147
      %v2233 = vadd.f32 %v1808, %v2148
      %v2234 = vadd.f32 %v1809, %v2149
      %v2235 = vadd.f32 %v1810, %v2150
      %v2236 = vadd.f32 %v1811, %v2151
      %v2237 = vadd.f32 %v1812, %v2152
      %v2238 = vadd.f32 %v1813, %v2153
      %v2239 = vadd.f32 %v1814, %v2154
      %v2240 = vadd.f32 %v1815, %v2155
      %v2241 = vadd.f32 %v1816, %v2156
      %v2242 = vadd.f32 %v1817, %v2157
      %v2243 = vadd.f32 %v1818, %v2158
      %v2244 = vadd.f32 %v1819, %v2159
      %v2245 = vadd.f32 %v1820, %v2160
      %v2246 = vadd.f32 %v1821, %v2161
      %v2247 = vadd.f32 %v1822, %v2162
      %v2248 = vadd.f32 %v1823, %v2163
      %v2249 = vadd.f32 %v1824, %v2164
      %v2250 = vadd.f32 %v1825, %v2165
      %v2251 = vadd.f32 %v1826, %v2166
      %v2252 = vadd.f32 %v1827, %v2167
      %v2253 = vadd.f32 %v1828, %v2168
      %v2254 = vadd.f32 %v1829, %v2169
      %v2255 = vadd.f32 %v1830, %v2170
      %v2256 = vadd.f32 %v1831, %v2171
      %v2257 = vadd.f32 %v1832, %v2172
      %v2258 = vadd.f32 %v1833, %v2173
      %v2259 = vadd.f32 %v1834, %v2174
      %v2260 = vadd.f32 %v1835, %v2175
      %v2261 = vadd.f32 %v1836, %v2176
      %v2262 = vadd.f32 %v1837, %v2177
      %v2263 = vadd.f32 %v1838, %v2178
      %v2264 = vadd.f32 %v1839, %v2179
      %v2265 = vld [vmem:[%s755] sm:$0xff]
      %v2266 = vld [vmem:[%s755 + $0x8] sm:$0xff]
      %v2267 = vld [vmem:[%s755 + $0x10] sm:$0xff]
      %v2268 = vld [vmem:[%s755 + $0x18] sm:$0xff]
      %v2269 = vld [vmem:[%s755 + $0x20] sm:$0xff]
      %v2270 = vld [vmem:[%s755 + $0x28] sm:$0xff]
      %v2271 = vld [vmem:[%s755 + $0x30] sm:$0xff]
      %v2272 = vld [vmem:[%s755 + $0x38] sm:$0xff]
      %v2273 = vld [vmem:[%s755 + $0x40] sm:$0xff]
      %v2274 = vld [vmem:[%s755 + $0x48] sm:$0xff]
      %v2275 = vld [vmem:[%s755 + $0x50] sm:$0xff]
      %v2276 = vld [vmem:[%s755 + $0x58] sm:$0xff]
      %v2277 = vld [vmem:[%s755 + $0x60] sm:$0xff]
      %v2278 = vld [vmem:[%s755 + $0x68] sm:$0xff]
      %v2279 = vld [vmem:[%s755 + $0x70] sm:$0xff]
      %v2280 = vld [vmem:[%s755 + $0x78] sm:$0xff]
      %v2281 = vld [vmem:[%s755 + $0x80] sm:$0xff]
      %v2282 = vld [vmem:[%s755 + $0x88] sm:$0xff]
      %v2283 = vld [vmem:[%s755 + $0x90] sm:$0xff]
      %v2284 = vld [vmem:[%s755 + $0x98] sm:$0xff]
      %v2285 = vld [vmem:[%s755 + $0xa0] sm:$0xff]
      %v2286 = vld [vmem:[%s755 + $0xa8] sm:$0xff]
      %v2287 = vld [vmem:[%s755 + $0xb0] sm:$0xff]
      %v2288 = vld [vmem:[%s755 + $0xb8] sm:$0xff]
      %v2289 = vld [vmem:[%s755 + $0xc0] sm:$0xff]
      %v2290 = vld [vmem:[%s755 + $0xc8] sm:$0xff]
      %v2291 = vld [vmem:[%s755 + $0xd0] sm:$0xff]
      %v2292 = vld [vmem:[%s755 + $0xd8] sm:$0xff]
      %v2293 = vld [vmem:[%s755 + $0xe0] sm:$0xff]
      %v2294 = vld [vmem:[%s755 + $0xe8] sm:$0xff]
      %v2295 = vld [vmem:[%s755 + $0xf0] sm:$0xff]
      %v2296 = vld [vmem:[%s755 + $0xf8] sm:$0xff]
      %v2297 = vld [vmem:[%s755 + $0x100] sm:$0xff]
      %v2298 = vld [vmem:[%s755 + $0x108] sm:$0xff]
      %v2299 = vld [vmem:[%s755 + $0x110] sm:$0xff]
      %v2300 = vld [vmem:[%s755 + $0x118] sm:$0xff]
      %v2301 = vld [vmem:[%s755 + $0x120] sm:$0xff]
      %v2302 = vld [vmem:[%s755 + $0x128] sm:$0xff]
      %v2303 = vld [vmem:[%s755 + $0x130] sm:$0xff]
      %v2304 = vld [vmem:[%s755 + $0x138] sm:$0xff]
      %v2305 = vld [vmem:[%s755 + $0x140] sm:$0xff]
      %v2306 = vld [vmem:[%s755 + $0x148] sm:$0xff]
      %v2307 = vld [vmem:[%s755 + $0x150] sm:$0xff]
      %v2308 = vld [vmem:[%s755 + $0x158] sm:$0xff]
      %v2309 = vld [vmem:[%s755 + $0x160] sm:$0xff]
      %v2310 = vld [vmem:[%s755 + $0x168] sm:$0xff]
      %v2311 = vld [vmem:[%s755 + $0x170] sm:$0xff]
      %v2312 = vld [vmem:[%s755 + $0x178] sm:$0xff]
      %v2313 = vld [vmem:[%s755 + $0x180] sm:$0xff]
      %v2314 = vld [vmem:[%s755 + $0x188] sm:$0xff]
      %v2315 = vld [vmem:[%s755 + $0x190] sm:$0xff]
      %v2316 = vld [vmem:[%s755 + $0x198] sm:$0xff]
      %v2317 = vld [vmem:[%s755 + $0x1a0] sm:$0xff]
      %v2318 = vld [vmem:[%s755 + $0x1a8] sm:$0xff]
      %v2319 = vld [vmem:[%s755 + $0x1b0] sm:$0xff]
      %v2320 = vld [vmem:[%s755 + $0x1b8] sm:$0xff]
      %v2321 = vld [vmem:[%s755 + $0x1c0] sm:$0xff]
      %v2322 = vld [vmem:[%s755 + $0x1c8] sm:$0xff]
      %v2323 = vld [vmem:[%s755 + $0x1d0] sm:$0xff]
      %v2324 = vld [vmem:[%s755 + $0x1d8] sm:$0xff]
      %v2325 = vld [vmem:[%s755 + $0x1e0] sm:$0xff]
      %v2326 = vld [vmem:[%s755 + $0x1e8] sm:$0xff]
      %v2327 = vld [vmem:[%s755 + $0x1f0] sm:$0xff]
      %v2328 = vld [vmem:[%s755 + $0x1f8] sm:$0xff]
      %v2329 = vld [vmem:[%s755 + $0x200] sm:$0xff]
      %v2330 = vld [vmem:[%s755 + $0x208] sm:$0xff]
      %v2331 = vld [vmem:[%s755 + $0x210] sm:$0xff]
      %v2332 = vld [vmem:[%s755 + $0x218] sm:$0xff]
      %v2333 = vld [vmem:[%s755 + $0x220] sm:$0x3f]
      %v2334 = vld [vmem:[%s755 + $0x228] sm:$0x3f]
      %v2335 = vld [vmem:[%s755 + $0x230] sm:$0x3f]
      %v2336 = vld [vmem:[%s755 + $0x238] sm:$0x3f]
      %v2337 = vld [vmem:[%s755 + $0x240] sm:$0x3f]
      %v2338 = vld [vmem:[%s755 + $0x248] sm:$0x3f]
      %v2339 = vld [vmem:[%s755 + $0x250] sm:$0x3f]
      %v2340 = vld [vmem:[%s755 + $0x258] sm:$0x3f]
      %v2341 = vld [vmem:[%s755 + $0x260] sm:$0x3f]
      %v2342 = vld [vmem:[%s755 + $0x268] sm:$0x3f]
      %v2343 = vld [vmem:[%s755 + $0x270] sm:$0x3f]
      %v2344 = vld [vmem:[%s755 + $0x278] sm:$0x3f]
      %v2345 = vld [vmem:[%s755 + $0x280] sm:$0x3f]
      %v2346 = vld [vmem:[%s755 + $0x288] sm:$0x3f]
      %v2347 = vld [vmem:[%s755 + $0x290] sm:$0x3f]
      %v2348 = vld [vmem:[%s755 + $0x298] sm:$0x3f]
      %v2349 = vld [vmem:[%s755 + $0x2a0] sm:$0x3f]
      %v2350 = vmul.f32 %v2265, %v820
      %v2351 = vmul.f32 %v2266, %v821
      %v2352 = vmul.f32 %v2267, %v822
      %v2353 = vmul.f32 %v2268, %v823
      %v2354 = vmul.f32 %v2269, %v824
      %v2355 = vmul.f32 %v2270, %v825
      %v2356 = vmul.f32 %v2271, %v826
      %v2357 = vmul.f32 %v2272, %v827
      %v2358 = vmul.f32 %v2273, %v828
      %v2359 = vmul.f32 %v2274, %v829
      %v2360 = vmul.f32 %v2275, %v830
      %v2361 = vmul.f32 %v2276, %v831
      %v2362 = vmul.f32 %v2277, %v832
      %v2363 = vmul.f32 %v2278, %v833
      %v2364 = vmul.f32 %v2279, %v834
      %v2365 = vmul.f32 %v2280, %v835
      %v2366 = vmul.f32 %v2281, %v836
      %v2367 = vmul.f32 %v2282, %v837
      %v2368 = vmul.f32 %v2283, %v838
      %v2369 = vmul.f32 %v2284, %v839
      %v2370 = vmul.f32 %v2285, %v840
      %v2371 = vmul.f32 %v2286, %v841
      %v2372 = vmul.f32 %v2287, %v842
      %v2373 = vmul.f32 %v2288, %v843
      %v2374 = vmul.f32 %v2289, %v844
      %v2375 = vmul.f32 %v2290, %v845
      %v2376 = vmul.f32 %v2291, %v846
      %v2377 = vmul.f32 %v2292, %v847
      %v2378 = vmul.f32 %v2293, %v848
      %v2379 = vmul.f32 %v2294, %v849
      %v2380 = vmul.f32 %v2295, %v850
      %v2381 = vmul.f32 %v2296, %v851
      %v2382 = vmul.f32 %v2297, %v852
      %v2383 = vmul.f32 %v2298, %v853
      %v2384 = vmul.f32 %v2299, %v854
      %v2385 = vmul.f32 %v2300, %v855
      %v2386 = vmul.f32 %v2301, %v856
      %v2387 = vmul.f32 %v2302, %v857
      %v2388 = vmul.f32 %v2303, %v858
      %v2389 = vmul.f32 %v2304, %v859
      %v2390 = vmul.f32 %v2305, %v860
      %v2391 = vmul.f32 %v2306, %v861
      %v2392 = vmul.f32 %v2307, %v862
      %v2393 = vmul.f32 %v2308, %v863
      %v2394 = vmul.f32 %v2309, %v864
      %v2395 = vmul.f32 %v2310, %v865
      %v2396 = vmul.f32 %v2311, %v866
      %v2397 = vmul.f32 %v2312, %v867
      %v2398 = vmul.f32 %v2313, %v868
      %v2399 = vmul.f32 %v2314, %v869
      %v2400 = vmul.f32 %v2315, %v870
      %v2401 = vmul.f32 %v2316, %v871
      %v2402 = vmul.f32 %v2317, %v872
      %v2403 = vmul.f32 %v2318, %v873
      %v2404 = vmul.f32 %v2319, %v874
      %v2405 = vmul.f32 %v2320, %v875
      %v2406 = vmul.f32 %v2321, %v876
      %v2407 = vmul.f32 %v2322, %v877
      %v2408 = vmul.f32 %v2323, %v878
      %v2409 = vmul.f32 %v2324, %v879
      %v2410 = vmul.f32 %v2325, %v880
      %v2411 = vmul.f32 %v2326, %v881
      %v2412 = vmul.f32 %v2327, %v882
      %v2413 = vmul.f32 %v2328, %v883
      %v2414 = vmul.f32 %v2329, %v884
      %v2415 = vmul.f32 %v2330, %v885
      %v2416 = vmul.f32 %v2331, %v886
      %v2417 = vmul.f32 %v2332, %v887
      %v2418 = vmul.f32 %v2333, %v888
      %v2419 = vmul.f32 %v2334, %v889
      %v2420 = vmul.f32 %v2335, %v890
      %v2421 = vmul.f32 %v2336, %v891
      %v2422 = vmul.f32 %v2337, %v892
      %v2423 = vmul.f32 %v2338, %v893
      %v2424 = vmul.f32 %v2339, %v894
      %v2425 = vmul.f32 %v2340, %v895
      %v2426 = vmul.f32 %v2341, %v896
      %v2427 = vmul.f32 %v2342, %v897
      %v2428 = vmul.f32 %v2343, %v898
      %v2429 = vmul.f32 %v2344, %v899
      %v2430 = vmul.f32 %v2345, %v900
      %v2431 = vmul.f32 %v2346, %v901
      %v2432 = vmul.f32 %v2347, %v902
      %v2433 = vmul.f32 %v2348, %v903
      %v2434 = vmul.f32 %v2349, %v904
      %v2435 = vsub.f32 %v2350, %v990
      %v2436 = vsub.f32 %v2351, %v991
      %v2437 = vsub.f32 %v2352, %v992
      %v2438 = vsub.f32 %v2353, %v993
      %v2439 = vsub.f32 %v2354, %v994
      %v2440 = vsub.f32 %v2355, %v995
      %v2441 = vsub.f32 %v2356, %v996
      %v2442 = vsub.f32 %v2357, %v997
      %v2443 = vsub.f32 %v2358, %v998
      %v2444 = vsub.f32 %v2359, %v999
      %v2445 = vsub.f32 %v2360, %v1000
      %v2446 = vsub.f32 %v2361, %v1001
      %v2447 = vsub.f32 %v2362, %v1002
      %v2448 = vsub.f32 %v2363, %v1003
      %v2449 = vsub.f32 %v2364, %v1004
      %v2450 = vsub.f32 %v2365, %v1005
      %v2451 = vsub.f32 %v2366, %v1006
      %v2452 = vsub.f32 %v2367, %v1007
      %v2453 = vsub.f32 %v2368, %v1008
      %v2454 = vsub.f32 %v2369, %v1009
      %v2455 = vsub.f32 %v2370, %v1010
      %v2456 = vsub.f32 %v2371, %v1011
      %v2457 = vsub.f32 %v2372, %v1012
      %v2458 = vsub.f32 %v2373, %v1013
      %v2459 = vsub.f32 %v2374, %v1014
      %v2460 = vsub.f32 %v2375, %v1015
      %v2461 = vsub.f32 %v2376, %v1016
      %v2462 = vsub.f32 %v2377, %v1017
      %v2463 = vsub.f32 %v2378, %v1018
      %v2464 = vsub.f32 %v2379, %v1019
      %v2465 = vsub.f32 %v2380, %v1020
      %v2466 = vsub.f32 %v2381, %v1021
      %v2467 = vsub.f32 %v2382, %v1022
      %v2468 = vsub.f32 %v2383, %v1023
      %v2469 = vsub.f32 %v2384, %v1024
      %v2470 = vsub.f32 %v2385, %v1025
      %v2471 = vsub.f32 %v2386, %v1026
      %v2472 = vsub.f32 %v2387, %v1027
      %v2473 = vsub.f32 %v2388, %v1028
      %v2474 = vsub.f32 %v2389, %v1029
      %v2475 = vsub.f32 %v2390, %v1030
      %v2476 = vsub.f32 %v2391, %v1031
      %v2477 = vsub.f32 %v2392, %v1032
      %v2478 = vsub.f32 %v2393, %v1033
      %v2479 = vsub.f32 %v2394, %v1034
      %v2480 = vsub.f32 %v2395, %v1035
      %v2481 = vsub.f32 %v2396, %v1036
      %v2482 = vsub.f32 %v2397, %v1037
      %v2483 = vsub.f32 %v2398, %v1038
      %v2484 = vsub.f32 %v2399, %v1039
      %v2485 = vsub.f32 %v2400, %v1040
      %v2486 = vsub.f32 %v2401, %v1041
      %v2487 = vsub.f32 %v2402, %v1042
      %v2488 = vsub.f32 %v2403, %v1043
      %v2489 = vsub.f32 %v2404, %v1044
      %v2490 = vsub.f32 %v2405, %v1045
      %v2491 = vsub.f32 %v2406, %v1046
      %v2492 = vsub.f32 %v2407, %v1047
      %v2493 = vsub.f32 %v2408, %v1048
      %v2494 = vsub.f32 %v2409, %v1049
      %v2495 = vsub.f32 %v2410, %v1050
      %v2496 = vsub.f32 %v2411, %v1051
      %v2497 = vsub.f32 %v2412, %v1052
      %v2498 = vsub.f32 %v2413, %v1053
      %v2499 = vsub.f32 %v2414, %v1054
      %v2500 = vsub.f32 %v2415, %v1055
      %v2501 = vsub.f32 %v2416, %v1056
      %v2502 = vsub.f32 %v2417, %v1057
      %v2503 = vsub.f32 %v2418, %v1058
      %v2504 = vsub.f32 %v2419, %v1059
      %v2505 = vsub.f32 %v2420, %v1060
      %v2506 = vsub.f32 %v2421, %v1061
      %v2507 = vsub.f32 %v2422, %v1062
      %v2508 = vsub.f32 %v2423, %v1063
      %v2509 = vsub.f32 %v2424, %v1064
      %v2510 = vsub.f32 %v2425, %v1065
      %v2511 = vsub.f32 %v2426, %v1066
      %v2512 = vsub.f32 %v2427, %v1067
      %v2513 = vsub.f32 %v2428, %v1068
      %v2514 = vsub.f32 %v2429, %v1069
      %v2515 = vsub.f32 %v2430, %v1070
      %v2516 = vsub.f32 %v2431, %v1071
      %v2517 = vsub.f32 %v2432, %v1072
      %v2518 = vsub.f32 %v2433, %v1073
      %v2519 = vsub.f32 %v2434, %v1074
      %v2520 = vmul.f32 %v2435, %v2435
      %v2521 = vmul.f32 %v2436, %v2436
      %v2522 = vmul.f32 %v2437, %v2437
      %v2523 = vmul.f32 %v2438, %v2438
      %v2524 = vmul.f32 %v2439, %v2439
      %v2525 = vmul.f32 %v2440, %v2440
      %v2526 = vmul.f32 %v2441, %v2441
      %v2527 = vmul.f32 %v2442, %v2442
      %v2528 = vmul.f32 %v2443, %v2443
      %v2529 = vmul.f32 %v2444, %v2444
      %v2530 = vmul.f32 %v2445, %v2445
      %v2531 = vmul.f32 %v2446, %v2446
      %v2532 = vmul.f32 %v2447, %v2447
      %v2533 = vmul.f32 %v2448, %v2448
      %v2534 = vmul.f32 %v2449, %v2449
      %v2535 = vmul.f32 %v2450, %v2450
      %v2536 = vmul.f32 %v2451, %v2451
      %v2537 = vmul.f32 %v2452, %v2452
      %v2538 = vmul.f32 %v2453, %v2453
      %v2539 = vmul.f32 %v2454, %v2454
      %v2540 = vmul.f32 %v2455, %v2455
      %v2541 = vmul.f32 %v2456, %v2456
      %v2542 = vmul.f32 %v2457, %v2457
      %v2543 = vmul.f32 %v2458, %v2458
      %v2544 = vmul.f32 %v2459, %v2459
      %v2545 = vmul.f32 %v2460, %v2460
      %v2546 = vmul.f32 %v2461, %v2461
      %v2547 = vmul.f32 %v2462, %v2462
      %v2548 = vmul.f32 %v2463, %v2463
      %v2549 = vmul.f32 %v2464, %v2464
      %v2550 = vmul.f32 %v2465, %v2465
      %v2551 = vmul.f32 %v2466, %v2466
      %v2552 = vmul.f32 %v2467, %v2467
      %v2553 = vmul.f32 %v2468, %v2468
      %v2554 = vmul.f32 %v2469, %v2469
      %v2555 = vmul.f32 %v2470, %v2470
      %v2556 = vmul.f32 %v2471, %v2471
      %v2557 = vmul.f32 %v2472, %v2472
      %v2558 = vmul.f32 %v2473, %v2473
      %v2559 = vmul.f32 %v2474, %v2474
      %v2560 = vmul.f32 %v2475, %v2475
      %v2561 = vmul.f32 %v2476, %v2476
      %v2562 = vmul.f32 %v2477, %v2477
      %v2563 = vmul.f32 %v2478, %v2478
      %v2564 = vmul.f32 %v2479, %v2479
      %v2565 = vmul.f32 %v2480, %v2480
      %v2566 = vmul.f32 %v2481, %v2481
      %v2567 = vmul.f32 %v2482, %v2482
      %v2568 = vmul.f32 %v2483, %v2483
      %v2569 = vmul.f32 %v2484, %v2484
      %v2570 = vmul.f32 %v2485, %v2485
      %v2571 = vmul.f32 %v2486, %v2486
      %v2572 = vmul.f32 %v2487, %v2487
      %v2573 = vmul.f32 %v2488, %v2488
      %v2574 = vmul.f32 %v2489, %v2489
      %v2575 = vmul.f32 %v2490, %v2490
      %v2576 = vmul.f32 %v2491, %v2491
      %v2577 = vmul.f32 %v2492, %v2492
      %v2578 = vmul.f32 %v2493, %v2493
      %v2579 = vmul.f32 %v2494, %v2494
      %v2580 = vmul.f32 %v2495, %v2495
      %v2581 = vmul.f32 %v2496, %v2496
      %v2582 = vmul.f32 %v2497, %v2497
      %v2583 = vmul.f32 %v2498, %v2498
      %v2584 = vmul.f32 %v2499, %v2499
      %v2585 = vmul.f32 %v2500, %v2500
      %v2586 = vmul.f32 %v2501, %v2501
      %v2587 = vmul.f32 %v2502, %v2502
      %v2588 = vmul.f32 %v2503, %v2503
      %v2589 = vmul.f32 %v2504, %v2504
      %v2590 = vmul.f32 %v2505, %v2505
      %v2591 = vmul.f32 %v2506, %v2506
      %v2592 = vmul.f32 %v2507, %v2507
      %v2593 = vmul.f32 %v2508, %v2508
      %v2594 = vmul.f32 %v2509, %v2509
      %v2595 = vmul.f32 %v2510, %v2510
      %v2596 = vmul.f32 %v2511, %v2511
      %v2597 = vmul.f32 %v2512, %v2512
      %v2598 = vmul.f32 %v2513, %v2513
      %v2599 = vmul.f32 %v2514, %v2514
      %v2600 = vmul.f32 %v2515, %v2515
      %v2601 = vmul.f32 %v2516, %v2516
      %v2602 = vmul.f32 %v2517, %v2517
      %v2603 = vmul.f32 %v2518, %v2518
      %v2604 = vmul.f32 %v2519, %v2519
      %v2605 = vadd.f32 %v2180, %v2520
      %v2606 = vadd.f32 %v2181, %v2521
      %v2607 = vadd.f32 %v2182, %v2522
      %v2608 = vadd.f32 %v2183, %v2523
      %v2609 = vadd.f32 %v2184, %v2524
      %v2610 = vadd.f32 %v2185, %v2525
      %v2611 = vadd.f32 %v2186, %v2526
      %v2612 = vadd.f32 %v2187, %v2527
      %v2613 = vadd.f32 %v2188, %v2528
      %v2614 = vadd.f32 %v2189, %v2529
      %v2615 = vadd.f32 %v2190, %v2530
      %v2616 = vadd.f32 %v2191, %v2531
      %v2617 = vadd.f32 %v2192, %v2532
      %v2618 = vadd.f32 %v2193, %v2533
      %v2619 = vadd.f32 %v2194, %v2534
      %v2620 = vadd.f32 %v2195, %v2535
      %v2621 = vadd.f32 %v2196, %v2536
      %v2622 = vadd.f32 %v2197, %v2537
      %v2623 = vadd.f32 %v2198, %v2538
      %v2624 = vadd.f32 %v2199, %v2539
      %v2625 = vadd.f32 %v2200, %v2540
      %v2626 = vadd.f32 %v2201, %v2541
      %v2627 = vadd.f32 %v2202, %v2542
      %v2628 = vadd.f32 %v2203, %v2543
      %v2629 = vadd.f32 %v2204, %v2544
      %v2630 = vadd.f32 %v2205, %v2545
      %v2631 = vadd.f32 %v2206, %v2546
      %v2632 = vadd.f32 %v2207, %v2547
      %v2633 = vadd.f32 %v2208, %v2548
      %v2634 = vadd.f32 %v2209, %v2549
      %v2635 = vadd.f32 %v2210, %v2550
      %v2636 = vadd.f32 %v2211, %v2551
      %v2637 = vadd.f32 %v2212, %v2552
      %v2638 = vadd.f32 %v2213, %v2553
      %v2639 = vadd.f32 %v2214, %v2554
      %v2640 = vadd.f32 %v2215, %v2555
      %v2641 = vadd.f32 %v2216, %v2556
      %v2642 = vadd.f32 %v2217, %v2557
      %v2643 = vadd.f32 %v2218, %v2558
      %v2644 = vadd.f32 %v2219, %v2559
      %v2645 = vadd.f32 %v2220, %v2560
      %v2646 = vadd.f32 %v2221, %v2561
      %v2647 = vadd.f32 %v2222, %v2562
      %v2648 = vadd.f32 %v2223, %v2563
      %v2649 = vadd.f32 %v2224, %v2564
      %v2650 = vadd.f32 %v2225, %v2565
      %v2651 = vadd.f32 %v2226, %v2566
      %v2652 = vadd.f32 %v2227, %v2567
      %v2653 = vadd.f32 %v2228, %v2568
      %v2654 = vadd.f32 %v2229, %v2569
      %v2655 = vadd.f32 %v2230, %v2570
      %v2656 = vadd.f32 %v2231, %v2571
      %v2657 = vadd.f32 %v2232, %v2572
      %v2658 = vadd.f32 %v2233, %v2573
      %v2659 = vadd.f32 %v2234, %v2574
      %v2660 = vadd.f32 %v2235, %v2575
      %v2661 = vadd.f32 %v2236, %v2576
      %v2662 = vadd.f32 %v2237, %v2577
      %v2663 = vadd.f32 %v2238, %v2578
      %v2664 = vadd.f32 %v2239, %v2579
      %v2665 = vadd.f32 %v2240, %v2580
      %v2666 = vadd.f32 %v2241, %v2581
      %v2667 = vadd.f32 %v2242, %v2582
      %v2668 = vadd.f32 %v2243, %v2583
      %v2669 = vadd.f32 %v2244, %v2584
      %v2670 = vadd.f32 %v2245, %v2585
      %v2671 = vadd.f32 %v2246, %v2586
      %v2672 = vadd.f32 %v2247, %v2587
      %v2673 = vadd.f32 %v2248, %v2588
      %v2674 = vadd.f32 %v2249, %v2589
      %v2675 = vadd.f32 %v2250, %v2590
      %v2676 = vadd.f32 %v2251, %v2591
      %v2677 = vadd.f32 %v2252, %v2592
      %v2678 = vadd.f32 %v2253, %v2593
      %v2679 = vadd.f32 %v2254, %v2594
      %v2680 = vadd.f32 %v2255, %v2595
      %v2681 = vadd.f32 %v2256, %v2596
      %v2682 = vadd.f32 %v2257, %v2597
      %v2683 = vadd.f32 %v2258, %v2598
      %v2684 = vadd.f32 %v2259, %v2599
      %v2685 = vadd.f32 %v2260, %v2600
      %v2686 = vadd.f32 %v2261, %v2601
      %v2687 = vadd.f32 %v2262, %v2602
      %v2688 = vadd.f32 %v2263, %v2603
      %v2689 = vadd.f32 %v2264, %v2604
      %v2690 = vld [vmem:[%s760] sm:$0xff]
      %v2691 = vld [vmem:[%s760 + $0x8] sm:$0xff]
      %v2692 = vld [vmem:[%s760 + $0x10] sm:$0xff]
      %v2693 = vld [vmem:[%s760 + $0x18] sm:$0xff]
      %v2694 = vld [vmem:[%s760 + $0x20] sm:$0xff]
      %v2695 = vld [vmem:[%s760 + $0x28] sm:$0xff]
      %v2696 = vld [vmem:[%s760 + $0x30] sm:$0xff]
      %v2697 = vld [vmem:[%s760 + $0x38] sm:$0xff]
      %v2698 = vld [vmem:[%s760 + $0x40] sm:$0xff]
      %v2699 = vld [vmem:[%s760 + $0x48] sm:$0xff]
      %v2700 = vld [vmem:[%s760 + $0x50] sm:$0xff]
      %v2701 = vld [vmem:[%s760 + $0x58] sm:$0xff]
      %v2702 = vld [vmem:[%s760 + $0x60] sm:$0xff]
      %v2703 = vld [vmem:[%s760 + $0x68] sm:$0xff]
      %v2704 = vld [vmem:[%s760 + $0x70] sm:$0xff]
      %v2705 = vld [vmem:[%s760 + $0x78] sm:$0xff]
      %v2706 = vld [vmem:[%s760 + $0x80] sm:$0xff]
      %v2707 = vld [vmem:[%s760 + $0x88] sm:$0xff]
      %v2708 = vld [vmem:[%s760 + $0x90] sm:$0xff]
      %v2709 = vld [vmem:[%s760 + $0x98] sm:$0xff]
      %v2710 = vld [vmem:[%s760 + $0xa0] sm:$0xff]
      %v2711 = vld [vmem:[%s760 + $0xa8] sm:$0xff]
      %v2712 = vld [vmem:[%s760 + $0xb0] sm:$0xff]
      %v2713 = vld [vmem:[%s760 + $0xb8] sm:$0xff]
      %v2714 = vld [vmem:[%s760 + $0xc0] sm:$0xff]
      %v2715 = vld [vmem:[%s760 + $0xc8] sm:$0xff]
      %v2716 = vld [vmem:[%s760 + $0xd0] sm:$0xff]
      %v2717 = vld [vmem:[%s760 + $0xd8] sm:$0xff]
      %v2718 = vld [vmem:[%s760 + $0xe0] sm:$0xff]
      %v2719 = vld [vmem:[%s760 + $0xe8] sm:$0xff]
      %v2720 = vld [vmem:[%s760 + $0xf0] sm:$0xff]
      %v2721 = vld [vmem:[%s760 + $0xf8] sm:$0xff]
      %v2722 = vld [vmem:[%s760 + $0x100] sm:$0xff]
      %v2723 = vld [vmem:[%s760 + $0x108] sm:$0xff]
      %v2724 = vld [vmem:[%s760 + $0x110] sm:$0xff]
      %v2725 = vld [vmem:[%s760 + $0x118] sm:$0xff]
      %v2726 = vld [vmem:[%s760 + $0x120] sm:$0xff]
      %v2727 = vld [vmem:[%s760 + $0x128] sm:$0xff]
      %v2728 = vld [vmem:[%s760 + $0x130] sm:$0xff]
      %v2729 = vld [vmem:[%s760 + $0x138] sm:$0xff]
      %v2730 = vld [vmem:[%s760 + $0x140] sm:$0xff]
      %v2731 = vld [vmem:[%s760 + $0x148] sm:$0xff]
      %v2732 = vld [vmem:[%s760 + $0x150] sm:$0xff]
      %v2733 = vld [vmem:[%s760 + $0x158] sm:$0xff]
      %v2734 = vld [vmem:[%s760 + $0x160] sm:$0xff]
      %v2735 = vld [vmem:[%s760 + $0x168] sm:$0xff]
      %v2736 = vld [vmem:[%s760 + $0x170] sm:$0xff]
      %v2737 = vld [vmem:[%s760 + $0x178] sm:$0xff]
      %v2738 = vld [vmem:[%s760 + $0x180] sm:$0xff]
      %v2739 = vld [vmem:[%s760 + $0x188] sm:$0xff]
      %v2740 = vld [vmem:[%s760 + $0x190] sm:$0xff]
      %v2741 = vld [vmem:[%s760 + $0x198] sm:$0xff]
      %v2742 = vld [vmem:[%s760 + $0x1a0] sm:$0xff]
      %v2743 = vld [vmem:[%s760 + $0x1a8] sm:$0xff]
      %v2744 = vld [vmem:[%s760 + $0x1b0] sm:$0xff]
      %v2745 = vld [vmem:[%s760 + $0x1b8] sm:$0xff]
      %v2746 = vld [vmem:[%s760 + $0x1c0] sm:$0xff]
      %v2747 = vld [vmem:[%s760 + $0x1c8] sm:$0xff]
      %v2748 = vld [vmem:[%s760 + $0x1d0] sm:$0xff]
      %v2749 = vld [vmem:[%s760 + $0x1d8] sm:$0xff]
      %v2750 = vld [vmem:[%s760 + $0x1e0] sm:$0xff]
      %v2751 = vld [vmem:[%s760 + $0x1e8] sm:$0xff]
      %v2752 = vld [vmem:[%s760 + $0x1f0] sm:$0xff]
      %v2753 = vld [vmem:[%s760 + $0x1f8] sm:$0xff]
      %v2754 = vld [vmem:[%s760 + $0x200] sm:$0xff]
      %v2755 = vld [vmem:[%s760 + $0x208] sm:$0xff]
      %v2756 = vld [vmem:[%s760 + $0x210] sm:$0xff]
      %v2757 = vld [vmem:[%s760 + $0x218] sm:$0xff]
      %v2758 = vld [vmem:[%s760 + $0x220] sm:$0x3f]
      %v2759 = vld [vmem:[%s760 + $0x228] sm:$0x3f]
      %v2760 = vld [vmem:[%s760 + $0x230] sm:$0x3f]
      %v2761 = vld [vmem:[%s760 + $0x238] sm:$0x3f]
      %v2762 = vld [vmem:[%s760 + $0x240] sm:$0x3f]
      %v2763 = vld [vmem:[%s760 + $0x248] sm:$0x3f]
      %v2764 = vld [vmem:[%s760 + $0x250] sm:$0x3f]
      %v2765 = vld [vmem:[%s760 + $0x258] sm:$0x3f]
      %v2766 = vld [vmem:[%s760 + $0x260] sm:$0x3f]
      %v2767 = vld [vmem:[%s760 + $0x268] sm:$0x3f]
      %v2768 = vld [vmem:[%s760 + $0x270] sm:$0x3f]
      %v2769 = vld [vmem:[%s760 + $0x278] sm:$0x3f]
      %v2770 = vld [vmem:[%s760 + $0x280] sm:$0x3f]
      %v2771 = vld [vmem:[%s760 + $0x288] sm:$0x3f]
      %v2772 = vld [vmem:[%s760 + $0x290] sm:$0x3f]
      %v2773 = vld [vmem:[%s760 + $0x298] sm:$0x3f]
      %v2774 = vld [vmem:[%s760 + $0x2a0] sm:$0x3f]
      %v2775 = vmul.f32 %v2690, %v820
      %v2776 = vmul.f32 %v2691, %v821
      %v2777 = vmul.f32 %v2692, %v822
      %v2778 = vmul.f32 %v2693, %v823
      %v2779 = vmul.f32 %v2694, %v824
      %v2780 = vmul.f32 %v2695, %v825
      %v2781 = vmul.f32 %v2696, %v826
      %v2782 = vmul.f32 %v2697, %v827
      %v2783 = vmul.f32 %v2698, %v828
      %v2784 = vmul.f32 %v2699, %v829
      %v2785 = vmul.f32 %v2700, %v830
      %v2786 = vmul.f32 %v2701, %v831
      %v2787 = vmul.f32 %v2702, %v832
      %v2788 = vmul.f32 %v2703, %v833
      %v2789 = vmul.f32 %v2704, %v834
      %v2790 = vmul.f32 %v2705, %v835
      %v2791 = vmul.f32 %v2706, %v836
      %v2792 = vmul.f32 %v2707, %v837
      %v2793 = vmul.f32 %v2708, %v838
      %v2794 = vmul.f32 %v2709, %v839
      %v2795 = vmul.f32 %v2710, %v840
      %v2796 = vmul.f32 %v2711, %v841
      %v2797 = vmul.f32 %v2712, %v842
      %v2798 = vmul.f32 %v2713, %v843
      %v2799 = vmul.f32 %v2714, %v844
      %v2800 = vmul.f32 %v2715, %v845
      %v2801 = vmul.f32 %v2716, %v846
      %v2802 = vmul.f32 %v2717, %v847
      %v2803 = vmul.f32 %v2718, %v848
      %v2804 = vmul.f32 %v2719, %v849
      %v2805 = vmul.f32 %v2720, %v850
      %v2806 = vmul.f32 %v2721, %v851
      %v2807 = vmul.f32 %v2722, %v852
      %v2808 = vmul.f32 %v2723, %v853
      %v2809 = vmul.f32 %v2724, %v854
      %v2810 = vmul.f32 %v2725, %v855
      %v2811 = vmul.f32 %v2726, %v856
      %v2812 = vmul.f32 %v2727, %v857
      %v2813 = vmul.f32 %v2728, %v858
      %v2814 = vmul.f32 %v2729, %v859
      %v2815 = vmul.f32 %v2730, %v860
      %v2816 = vmul.f32 %v2731, %v861
      %v2817 = vmul.f32 %v2732, %v862
      %v2818 = vmul.f32 %v2733, %v863
      %v2819 = vmul.f32 %v2734, %v864
      %v2820 = vmul.f32 %v2735, %v865
      %v2821 = vmul.f32 %v2736, %v866
      %v2822 = vmul.f32 %v2737, %v867
      %v2823 = vmul.f32 %v2738, %v868
      %v2824 = vmul.f32 %v2739, %v869
      %v2825 = vmul.f32 %v2740, %v870
      %v2826 = vmul.f32 %v2741, %v871
      %v2827 = vmul.f32 %v2742, %v872
      %v2828 = vmul.f32 %v2743, %v873
      %v2829 = vmul.f32 %v2744, %v874
      %v2830 = vmul.f32 %v2745, %v875
      %v2831 = vmul.f32 %v2746, %v876
      %v2832 = vmul.f32 %v2747, %v877
      %v2833 = vmul.f32 %v2748, %v878
      %v2834 = vmul.f32 %v2749, %v879
      %v2835 = vmul.f32 %v2750, %v880
      %v2836 = vmul.f32 %v2751, %v881
      %v2837 = vmul.f32 %v2752, %v882
      %v2838 = vmul.f32 %v2753, %v883
      %v2839 = vmul.f32 %v2754, %v884
      %v2840 = vmul.f32 %v2755, %v885
      %v2841 = vmul.f32 %v2756, %v886
      %v2842 = vmul.f32 %v2757, %v887
      %v2843 = vmul.f32 %v2758, %v888
      %v2844 = vmul.f32 %v2759, %v889
      %v2845 = vmul.f32 %v2760, %v890
      %v2846 = vmul.f32 %v2761, %v891
      %v2847 = vmul.f32 %v2762, %v892
      %v2848 = vmul.f32 %v2763, %v893
      %v2849 = vmul.f32 %v2764, %v894
      %v2850 = vmul.f32 %v2765, %v895
      %v2851 = vmul.f32 %v2766, %v896
      %v2852 = vmul.f32 %v2767, %v897
      %v2853 = vmul.f32 %v2768, %v898
      %v2854 = vmul.f32 %v2769, %v899
      %v2855 = vmul.f32 %v2770, %v900
      %v2856 = vmul.f32 %v2771, %v901
      %v2857 = vmul.f32 %v2772, %v902
      %v2858 = vmul.f32 %v2773, %v903
      %v2859 = vmul.f32 %v2774, %v904
      %v2860 = vsub.f32 %v2775, %v990
      %v2861 = vsub.f32 %v2776, %v991
      %v2862 = vsub.f32 %v2777, %v992
      %v2863 = vsub.f32 %v2778, %v993
      %v2864 = vsub.f32 %v2779, %v994
      %v2865 = vsub.f32 %v2780, %v995
      %v2866 = vsub.f32 %v2781, %v996
      %v2867 = vsub.f32 %v2782, %v997
      %v2868 = vsub.f32 %v2783, %v998
      %v2869 = vsub.f32 %v2784, %v999
      %v2870 = vsub.f32 %v2785, %v1000
      %v2871 = vsub.f32 %v2786, %v1001
      %v2872 = vsub.f32 %v2787, %v1002
      %v2873 = vsub.f32 %v2788, %v1003
      %v2874 = vsub.f32 %v2789, %v1004
      %v2875 = vsub.f32 %v2790, %v1005
      %v2876 = vsub.f32 %v2791, %v1006
      %v2877 = vsub.f32 %v2792, %v1007
      %v2878 = vsub.f32 %v2793, %v1008
      %v2879 = vsub.f32 %v2794, %v1009
      %v2880 = vsub.f32 %v2795, %v1010
      %v2881 = vsub.f32 %v2796, %v1011
      %v2882 = vsub.f32 %v2797, %v1012
      %v2883 = vsub.f32 %v2798, %v1013
      %v2884 = vsub.f32 %v2799, %v1014
      %v2885 = vsub.f32 %v2800, %v1015
      %v2886 = vsub.f32 %v2801, %v1016
      %v2887 = vsub.f32 %v2802, %v1017
      %v2888 = vsub.f32 %v2803, %v1018
      %v2889 = vsub.f32 %v2804, %v1019
      %v2890 = vsub.f32 %v2805, %v1020
      %v2891 = vsub.f32 %v2806, %v1021
      %v2892 = vsub.f32 %v2807, %v1022
      %v2893 = vsub.f32 %v2808, %v1023
      %v2894 = vsub.f32 %v2809, %v1024
      %v2895 = vsub.f32 %v2810, %v1025
      %v2896 = vsub.f32 %v2811, %v1026
      %v2897 = vsub.f32 %v2812, %v1027
      %v2898 = vsub.f32 %v2813, %v1028
      %v2899 = vsub.f32 %v2814, %v1029
      %v2900 = vsub.f32 %v2815, %v1030
      %v2901 = vsub.f32 %v2816, %v1031
      %v2902 = vsub.f32 %v2817, %v1032
      %v2903 = vsub.f32 %v2818, %v1033
      %v2904 = vsub.f32 %v2819, %v1034
      %v2905 = vsub.f32 %v2820, %v1035
      %v2906 = vsub.f32 %v2821, %v1036
      %v2907 = vsub.f32 %v2822, %v1037
      %v2908 = vsub.f32 %v2823, %v1038
      %v2909 = vsub.f32 %v2824, %v1039
      %v2910 = vsub.f32 %v2825, %v1040
      %v2911 = vsub.f32 %v2826, %v1041
      %v2912 = vsub.f32 %v2827, %v1042
      %v2913 = vsub.f32 %v2828, %v1043
      %v2914 = vsub.f32 %v2829, %v1044
      %v2915 = vsub.f32 %v2830, %v1045
      %v2916 = vsub.f32 %v2831, %v1046
      %v2917 = vsub.f32 %v2832, %v1047
      %v2918 = vsub.f32 %v2833, %v1048
      %v2919 = vsub.f32 %v2834, %v1049
      %v2920 = vsub.f32 %v2835, %v1050
      %v2921 = vsub.f32 %v2836, %v1051
      %v2922 = vsub.f32 %v2837, %v1052
      %v2923 = vsub.f32 %v2838, %v1053
      %v2924 = vsub.f32 %v2839, %v1054
      %v2925 = vsub.f32 %v2840, %v1055
      %v2926 = vsub.f32 %v2841, %v1056
      %v2927 = vsub.f32 %v2842, %v1057
      %v2928 = vsub.f32 %v2843, %v1058
      %v2929 = vsub.f32 %v2844, %v1059
      %v2930 = vsub.f32 %v2845, %v1060
      %v2931 = vsub.f32 %v2846, %v1061
      %v2932 = vsub.f32 %v2847, %v1062
      %v2933 = vsub.f32 %v2848, %v1063
      %v2934 = vsub.f32 %v2849, %v1064
      %v2935 = vsub.f32 %v2850, %v1065
      %v2936 = vsub.f32 %v2851, %v1066
      %v2937 = vsub.f32 %v2852, %v1067
      %v2938 = vsub.f32 %v2853, %v1068
      %v2939 = vsub.f32 %v2854, %v1069
      %v2940 = vsub.f32 %v2855, %v1070
      %v2941 = vsub.f32 %v2856, %v1071
      %v2942 = vsub.f32 %v2857, %v1072
      %v2943 = vsub.f32 %v2858, %v1073
      %v2944 = vsub.f32 %v2859, %v1074
      %v2945 = vmul.f32 %v2860, %v2860
      %v2946 = vmul.f32 %v2861, %v2861
      %v2947 = vmul.f32 %v2862, %v2862
      %v2948 = vmul.f32 %v2863, %v2863
      %v2949 = vmul.f32 %v2864, %v2864
      %v2950 = vmul.f32 %v2865, %v2865
      %v2951 = vmul.f32 %v2866, %v2866
      %v2952 = vmul.f32 %v2867, %v2867
      %v2953 = vmul.f32 %v2868, %v2868
      %v2954 = vmul.f32 %v2869, %v2869
      %v2955 = vmul.f32 %v2870, %v2870
      %v2956 = vmul.f32 %v2871, %v2871
      %v2957 = vmul.f32 %v2872, %v2872
      %v2958 = vmul.f32 %v2873, %v2873
      %v2959 = vmul.f32 %v2874, %v2874
      %v2960 = vmul.f32 %v2875, %v2875
      %v2961 = vmul.f32 %v2876, %v2876
      %v2962 = vmul.f32 %v2877, %v2877
      %v2963 = vmul.f32 %v2878, %v2878
      %v2964 = vmul.f32 %v2879, %v2879
      %v2965 = vmul.f32 %v2880, %v2880
      %v2966 = vmul.f32 %v2881, %v2881
      %v2967 = vmul.f32 %v2882, %v2882
      %v2968 = vmul.f32 %v2883, %v2883
      %v2969 = vmul.f32 %v2884, %v2884
      %v2970 = vmul.f32 %v2885, %v2885
      %v2971 = vmul.f32 %v2886, %v2886
      %v2972 = vmul.f32 %v2887, %v2887
      %v2973 = vmul.f32 %v2888, %v2888
      %v2974 = vmul.f32 %v2889, %v2889
      %v2975 = vmul.f32 %v2890, %v2890
      %v2976 = vmul.f32 %v2891, %v2891
      %v2977 = vmul.f32 %v2892, %v2892
      %v2978 = vmul.f32 %v2893, %v2893
      %v2979 = vmul.f32 %v2894, %v2894
      %v2980 = vmul.f32 %v2895, %v2895
      %v2981 = vmul.f32 %v2896, %v2896
      %v2982 = vmul.f32 %v2897, %v2897
      %v2983 = vmul.f32 %v2898, %v2898
      %v2984 = vmul.f32 %v2899, %v2899
      %v2985 = vmul.f32 %v2900, %v2900
      %v2986 = vmul.f32 %v2901, %v2901
      %v2987 = vmul.f32 %v2902, %v2902
      %v2988 = vmul.f32 %v2903, %v2903
      %v2989 = vmul.f32 %v2904, %v2904
      %v2990 = vmul.f32 %v2905, %v2905
      %v2991 = vmul.f32 %v2906, %v2906
      %v2992 = vmul.f32 %v2907, %v2907
      %v2993 = vmul.f32 %v2908, %v2908
      %v2994 = vmul.f32 %v2909, %v2909
      %v2995 = vmul.f32 %v2910, %v2910
      %v2996 = vmul.f32 %v2911, %v2911
      %v2997 = vmul.f32 %v2912, %v2912
      %v2998 = vmul.f32 %v2913, %v2913
      %v2999 = vmul.f32 %v2914, %v2914
      %v3000 = vmul.f32 %v2915, %v2915
      %v3001 = vmul.f32 %v2916, %v2916
      %v3002 = vmul.f32 %v2917, %v2917
      %v3003 = vmul.f32 %v2918, %v2918
      %v3004 = vmul.f32 %v2919, %v2919
      %v3005 = vmul.f32 %v2920, %v2920
      %v3006 = vmul.f32 %v2921, %v2921
      %v3007 = vmul.f32 %v2922, %v2922
      %v3008 = vmul.f32 %v2923, %v2923
      %v3009 = vmul.f32 %v2924, %v2924
      %v3010 = vmul.f32 %v2925, %v2925
      %v3011 = vmul.f32 %v2926, %v2926
      %v3012 = vmul.f32 %v2927, %v2927
      %v3013 = vmul.f32 %v2928, %v2928
      %v3014 = vmul.f32 %v2929, %v2929
      %v3015 = vmul.f32 %v2930, %v2930
      %v3016 = vmul.f32 %v2931, %v2931
      %v3017 = vmul.f32 %v2932, %v2932
      %v3018 = vmul.f32 %v2933, %v2933
      %v3019 = vmul.f32 %v2934, %v2934
      %v3020 = vmul.f32 %v2935, %v2935
      %v3021 = vmul.f32 %v2936, %v2936
      %v3022 = vmul.f32 %v2937, %v2937
      %v3023 = vmul.f32 %v2938, %v2938
      %v3024 = vmul.f32 %v2939, %v2939
      %v3025 = vmul.f32 %v2940, %v2940
      %v3026 = vmul.f32 %v2941, %v2941
      %v3027 = vmul.f32 %v2942, %v2942
      %v3028 = vmul.f32 %v2943, %v2943
      %v3029 = vmul.f32 %v2944, %v2944
      %v3030 = vadd.f32 %v2605, %v2945
      %v3031 = vadd.f32 %v2606, %v2946
      %v3032 = vadd.f32 %v2607, %v2947
      %v3033 = vadd.f32 %v2608, %v2948
      %v3034 = vadd.f32 %v2609, %v2949
      %v3035 = vadd.f32 %v2610, %v2950
      %v3036 = vadd.f32 %v2611, %v2951
      %v3037 = vadd.f32 %v2612, %v2952
      %v3038 = vadd.f32 %v2613, %v2953
      %v3039 = vadd.f32 %v2614, %v2954
      %v3040 = vadd.f32 %v2615, %v2955
      %v3041 = vadd.f32 %v2616, %v2956
      %v3042 = vadd.f32 %v2617, %v2957
      %v3043 = vadd.f32 %v2618, %v2958
      %v3044 = vadd.f32 %v2619, %v2959
      %v3045 = vadd.f32 %v2620, %v2960
      %v3046 = vadd.f32 %v2621, %v2961
      %v3047 = vadd.f32 %v2622, %v2962
      %v3048 = vadd.f32 %v2623, %v2963
      %v3049 = vadd.f32 %v2624, %v2964
      %v3050 = vadd.f32 %v2625, %v2965
      %v3051 = vadd.f32 %v2626, %v2966
      %v3052 = vadd.f32 %v2627, %v2967
      %v3053 = vadd.f32 %v2628, %v2968
      %v3054 = vadd.f32 %v2629, %v2969
      %v3055 = vadd.f32 %v2630, %v2970
      %v3056 = vadd.f32 %v2631, %v2971
      %v3057 = vadd.f32 %v2632, %v2972
      %v3058 = vadd.f32 %v2633, %v2973
      %v3059 = vadd.f32 %v2634, %v2974
      %v3060 = vadd.f32 %v2635, %v2975
      %v3061 = vadd.f32 %v2636, %v2976
      %v3062 = vadd.f32 %v2637, %v2977
      %v3063 = vadd.f32 %v2638, %v2978
      %v3064 = vadd.f32 %v2639, %v2979
      %v3065 = vadd.f32 %v2640, %v2980
      %v3066 = vadd.f32 %v2641, %v2981
      %v3067 = vadd.f32 %v2642, %v2982
      %v3068 = vadd.f32 %v2643, %v2983
      %v3069 = vadd.f32 %v2644, %v2984
      %v3070 = vadd.f32 %v2645, %v2985
      %v3071 = vadd.f32 %v2646, %v2986
      %v3072 = vadd.f32 %v2647, %v2987
      %v3073 = vadd.f32 %v2648, %v2988
      %v3074 = vadd.f32 %v2649, %v2989
      %v3075 = vadd.f32 %v2650, %v2990
      %v3076 = vadd.f32 %v2651, %v2991
      %v3077 = vadd.f32 %v2652, %v2992
      %v3078 = vadd.f32 %v2653, %v2993
      %v3079 = vadd.f32 %v2654, %v2994
      %v3080 = vadd.f32 %v2655, %v2995
      %v3081 = vadd.f32 %v2656, %v2996
      %v3082 = vadd.f32 %v2657, %v2997
      %v3083 = vadd.f32 %v2658, %v2998
      %v3084 = vadd.f32 %v2659, %v2999
      %v3085 = vadd.f32 %v2660, %v3000
      %v3086 = vadd.f32 %v2661, %v3001
      %v3087 = vadd.f32 %v2662, %v3002
      %v3088 = vadd.f32 %v2663, %v3003
      %v3089 = vadd.f32 %v2664, %v3004
      %v3090 = vadd.f32 %v2665, %v3005
      %v3091 = vadd.f32 %v2666, %v3006
      %v3092 = vadd.f32 %v2667, %v3007
      %v3093 = vadd.f32 %v2668, %v3008
      %v3094 = vadd.f32 %v2669, %v3009
      %v3095 = vadd.f32 %v2670, %v3010
      %v3096 = vadd.f32 %v2671, %v3011
      %v3097 = vadd.f32 %v2672, %v3012
      %v3098 = vadd.f32 %v2673, %v3013
      %v3099 = vadd.f32 %v2674, %v3014
      %v3100 = vadd.f32 %v2675, %v3015
      %v3101 = vadd.f32 %v2676, %v3016
      %v3102 = vadd.f32 %v2677, %v3017
      %v3103 = vadd.f32 %v2678, %v3018
      %v3104 = vadd.f32 %v2679, %v3019
      %v3105 = vadd.f32 %v2680, %v3020
      %v3106 = vadd.f32 %v2681, %v3021
      %v3107 = vadd.f32 %v2682, %v3022
      %v3108 = vadd.f32 %v2683, %v3023
      %v3109 = vadd.f32 %v2684, %v3024
      %v3110 = vadd.f32 %v2685, %v3025
      %v3111 = vadd.f32 %v2686, %v3026
      %v3112 = vadd.f32 %v2687, %v3027
      %v3113 = vadd.f32 %v2688, %v3028
      %v3114 = vadd.f32 %v2689, %v3029
      %v3115 = vld [vmem:[%s765] sm:$0xff]
      %v3116 = vld [vmem:[%s765 + $0x8] sm:$0xff]
      %v3117 = vld [vmem:[%s765 + $0x10] sm:$0xff]
      %v3118 = vld [vmem:[%s765 + $0x18] sm:$0xff]
      %v3119 = vld [vmem:[%s765 + $0x20] sm:$0xff]
      %v3120 = vld [vmem:[%s765 + $0x28] sm:$0xff]
      %v3121 = vld [vmem:[%s765 + $0x30] sm:$0xff]
      %v3122 = vld [vmem:[%s765 + $0x38] sm:$0xff]
      %v3123 = vld [vmem:[%s765 + $0x40] sm:$0xff]
      %v3124 = vld [vmem:[%s765 + $0x48] sm:$0xff]
      %v3125 = vld [vmem:[%s765 + $0x50] sm:$0xff]
      %v3126 = vld [vmem:[%s765 + $0x58] sm:$0xff]
      %v3127 = vld [vmem:[%s765 + $0x60] sm:$0xff]
      %v3128 = vld [vmem:[%s765 + $0x68] sm:$0xff]
      %v3129 = vld [vmem:[%s765 + $0x70] sm:$0xff]
      %v3130 = vld [vmem:[%s765 + $0x78] sm:$0xff]
      %v3131 = vld [vmem:[%s765 + $0x80] sm:$0xff]
      %v3132 = vld [vmem:[%s765 + $0x88] sm:$0xff]
      %v3133 = vld [vmem:[%s765 + $0x90] sm:$0xff]
      %v3134 = vld [vmem:[%s765 + $0x98] sm:$0xff]
      %v3135 = vld [vmem:[%s765 + $0xa0] sm:$0xff]
      %v3136 = vld [vmem:[%s765 + $0xa8] sm:$0xff]
      %v3137 = vld [vmem:[%s765 + $0xb0] sm:$0xff]
      %v3138 = vld [vmem:[%s765 + $0xb8] sm:$0xff]
      %v3139 = vld [vmem:[%s765 + $0xc0] sm:$0xff]
      %v3140 = vld [vmem:[%s765 + $0xc8] sm:$0xff]
      %v3141 = vld [vmem:[%s765 + $0xd0] sm:$0xff]
      %v3142 = vld [vmem:[%s765 + $0xd8] sm:$0xff]
      %v3143 = vld [vmem:[%s765 + $0xe0] sm:$0xff]
      %v3144 = vld [vmem:[%s765 + $0xe8] sm:$0xff]
      %v3145 = vld [vmem:[%s765 + $0xf0] sm:$0xff]
      %v3146 = vld [vmem:[%s765 + $0xf8] sm:$0xff]
      %v3147 = vld [vmem:[%s765 + $0x100] sm:$0xff]
      %v3148 = vld [vmem:[%s765 + $0x108] sm:$0xff]
      %v3149 = vld [vmem:[%s765 + $0x110] sm:$0xff]
      %v3150 = vld [vmem:[%s765 + $0x118] sm:$0xff]
      %v3151 = vld [vmem:[%s765 + $0x120] sm:$0xff]
      %v3152 = vld [vmem:[%s765 + $0x128] sm:$0xff]
      %v3153 = vld [vmem:[%s765 + $0x130] sm:$0xff]
      %v3154 = vld [vmem:[%s765 + $0x138] sm:$0xff]
      %v3155 = vld [vmem:[%s765 + $0x140] sm:$0xff]
      %v3156 = vld [vmem:[%s765 + $0x148] sm:$0xff]
      %v3157 = vld [vmem:[%s765 + $0x150] sm:$0xff]
      %v3158 = vld [vmem:[%s765 + $0x158] sm:$0xff]
      %v3159 = vld [vmem:[%s765 + $0x160] sm:$0xff]
      %v3160 = vld [vmem:[%s765 + $0x168] sm:$0xff]
      %v3161 = vld [vmem:[%s765 + $0x170] sm:$0xff]
      %v3162 = vld [vmem:[%s765 + $0x178] sm:$0xff]
      %v3163 = vld [vmem:[%s765 + $0x180] sm:$0xff]
      %v3164 = vld [vmem:[%s765 + $0x188] sm:$0xff]
      %v3165 = vld [vmem:[%s765 + $0x190] sm:$0xff]
      %v3166 = vld [vmem:[%s765 + $0x198] sm:$0xff]
      %v3167 = vld [vmem:[%s765 + $0x1a0] sm:$0xff]
      %v3168 = vld [vmem:[%s765 + $0x1a8] sm:$0xff]
      %v3169 = vld [vmem:[%s765 + $0x1b0] sm:$0xff]
      %v3170 = vld [vmem:[%s765 + $0x1b8] sm:$0xff]
      %v3171 = vld [vmem:[%s765 + $0x1c0] sm:$0xff]
      %v3172 = vld [vmem:[%s765 + $0x1c8] sm:$0xff]
      %v3173 = vld [vmem:[%s765 + $0x1d0] sm:$0xff]
      %v3174 = vld [vmem:[%s765 + $0x1d8] sm:$0xff]
      %v3175 = vld [vmem:[%s765 + $0x1e0] sm:$0xff]
      %v3176 = vld [vmem:[%s765 + $0x1e8] sm:$0xff]
      %v3177 = vld [vmem:[%s765 + $0x1f0] sm:$0xff]
      %v3178 = vld [vmem:[%s765 + $0x1f8] sm:$0xff]
      %v3179 = vld [vmem:[%s765 + $0x200] sm:$0xff]
      %v3180 = vld [vmem:[%s765 + $0x208] sm:$0xff]
      %v3181 = vld [vmem:[%s765 + $0x210] sm:$0xff]
      %v3182 = vld [vmem:[%s765 + $0x218] sm:$0xff]
      %v3183 = vld [vmem:[%s765 + $0x220] sm:$0x3f]
      %v3184 = vld [vmem:[%s765 + $0x228] sm:$0x3f]
      %v3185 = vld [vmem:[%s765 + $0x230] sm:$0x3f]
      %v3186 = vld [vmem:[%s765 + $0x238] sm:$0x3f]
      %v3187 = vld [vmem:[%s765 + $0x240] sm:$0x3f]
      %v3188 = vld [vmem:[%s765 + $0x248] sm:$0x3f]
      %v3189 = vld [vmem:[%s765 + $0x250] sm:$0x3f]
      %v3190 = vld [vmem:[%s765 + $0x258] sm:$0x3f]
      %v3191 = vld [vmem:[%s765 + $0x260] sm:$0x3f]
      %v3192 = vld [vmem:[%s765 + $0x268] sm:$0x3f]
      %v3193 = vld [vmem:[%s765 + $0x270] sm:$0x3f]
      %v3194 = vld [vmem:[%s765 + $0x278] sm:$0x3f]
      %v3195 = vld [vmem:[%s765 + $0x280] sm:$0x3f]
      %v3196 = vld [vmem:[%s765 + $0x288] sm:$0x3f]
      %v3197 = vld [vmem:[%s765 + $0x290] sm:$0x3f]
      %v3198 = vld [vmem:[%s765 + $0x298] sm:$0x3f]
      %v3199 = vld [vmem:[%s765 + $0x2a0] sm:$0x3f]
      %v3200 = vmul.f32 %v3115, %v820
      %v3201 = vmul.f32 %v3116, %v821
      %v3202 = vmul.f32 %v3117, %v822
      %v3203 = vmul.f32 %v3118, %v823
      %v3204 = vmul.f32 %v3119, %v824
      %v3205 = vmul.f32 %v3120, %v825
      %v3206 = vmul.f32 %v3121, %v826
      %v3207 = vmul.f32 %v3122, %v827
      %v3208 = vmul.f32 %v3123, %v828
      %v3209 = vmul.f32 %v3124, %v829
      %v3210 = vmul.f32 %v3125, %v830
      %v3211 = vmul.f32 %v3126, %v831
      %v3212 = vmul.f32 %v3127, %v832
      %v3213 = vmul.f32 %v3128, %v833
      %v3214 = vmul.f32 %v3129, %v834
      %v3215 = vmul.f32 %v3130, %v835
      %v3216 = vmul.f32 %v3131, %v836
      %v3217 = vmul.f32 %v3132, %v837
      %v3218 = vmul.f32 %v3133, %v838
      %v3219 = vmul.f32 %v3134, %v839
      %v3220 = vmul.f32 %v3135, %v840
      %v3221 = vmul.f32 %v3136, %v841
      %v3222 = vmul.f32 %v3137, %v842
      %v3223 = vmul.f32 %v3138, %v843
      %v3224 = vmul.f32 %v3139, %v844
      %v3225 = vmul.f32 %v3140, %v845
      %v3226 = vmul.f32 %v3141, %v846
      %v3227 = vmul.f32 %v3142, %v847
      %v3228 = vmul.f32 %v3143, %v848
      %v3229 = vmul.f32 %v3144, %v849
      %v3230 = vmul.f32 %v3145, %v850
      %v3231 = vmul.f32 %v3146, %v851
      %v3232 = vmul.f32 %v3147, %v852
      %v3233 = vmul.f32 %v3148, %v853
      %v3234 = vmul.f32 %v3149, %v854
      %v3235 = vmul.f32 %v3150, %v855
      %v3236 = vmul.f32 %v3151, %v856
      %v3237 = vmul.f32 %v3152, %v857
      %v3238 = vmul.f32 %v3153, %v858
      %v3239 = vmul.f32 %v3154, %v859
      %v3240 = vmul.f32 %v3155, %v860
      %v3241 = vmul.f32 %v3156, %v861
      %v3242 = vmul.f32 %v3157, %v862
      %v3243 = vmul.f32 %v3158, %v863
      %v3244 = vmul.f32 %v3159, %v864
      %v3245 = vmul.f32 %v3160, %v865
      %v3246 = vmul.f32 %v3161, %v866
      %v3247 = vmul.f32 %v3162, %v867
      %v3248 = vmul.f32 %v3163, %v868
      %v3249 = vmul.f32 %v3164, %v869
      %v3250 = vmul.f32 %v3165, %v870
      %v3251 = vmul.f32 %v3166, %v871
      %v3252 = vmul.f32 %v3167, %v872
      %v3253 = vmul.f32 %v3168, %v873
      %v3254 = vmul.f32 %v3169, %v874
      %v3255 = vmul.f32 %v3170, %v875
      %v3256 = vmul.f32 %v3171, %v876
      %v3257 = vmul.f32 %v3172, %v877
      %v3258 = vmul.f32 %v3173, %v878
      %v3259 = vmul.f32 %v3174, %v879
      %v3260 = vmul.f32 %v3175, %v880
      %v3261 = vmul.f32 %v3176, %v881
      %v3262 = vmul.f32 %v3177, %v882
      %v3263 = vmul.f32 %v3178, %v883
      %v3264 = vmul.f32 %v3179, %v884
      %v3265 = vmul.f32 %v3180, %v885
      %v3266 = vmul.f32 %v3181, %v886
      %v3267 = vmul.f32 %v3182, %v887
      %v3268 = vmul.f32 %v3183, %v888
      %v3269 = vmul.f32 %v3184, %v889
      %v3270 = vmul.f32 %v3185, %v890
      %v3271 = vmul.f32 %v3186, %v891
      %v3272 = vmul.f32 %v3187, %v892
      %v3273 = vmul.f32 %v3188, %v893
      %v3274 = vmul.f32 %v3189, %v894
      %v3275 = vmul.f32 %v3190, %v895
      %v3276 = vmul.f32 %v3191, %v896
      %v3277 = vmul.f32 %v3192, %v897
      %v3278 = vmul.f32 %v3193, %v898
      %v3279 = vmul.f32 %v3194, %v899
      %v3280 = vmul.f32 %v3195, %v900
      %v3281 = vmul.f32 %v3196, %v901
      %v3282 = vmul.f32 %v3197, %v902
      %v3283 = vmul.f32 %v3198, %v903
      %v3284 = vmul.f32 %v3199, %v904
      %v3285 = vsub.f32 %v3200, %v990
      %v3286 = vsub.f32 %v3201, %v991
      %v3287 = vsub.f32 %v3202, %v992
      %v3288 = vsub.f32 %v3203, %v993
      %v3289 = vsub.f32 %v3204, %v994
      %v3290 = vsub.f32 %v3205, %v995
      %v3291 = vsub.f32 %v3206, %v996
      %v3292 = vsub.f32 %v3207, %v997
      %v3293 = vsub.f32 %v3208, %v998
      %v3294 = vsub.f32 %v3209, %v999
      %v3295 = vsub.f32 %v3210, %v1000
      %v3296 = vsub.f32 %v3211, %v1001
      %v3297 = vsub.f32 %v3212, %v1002
      %v3298 = vsub.f32 %v3213, %v1003
      %v3299 = vsub.f32 %v3214, %v1004
      %v3300 = vsub.f32 %v3215, %v1005
      %v3301 = vsub.f32 %v3216, %v1006
      %v3302 = vsub.f32 %v3217, %v1007
      %v3303 = vsub.f32 %v3218, %v1008
      %v3304 = vsub.f32 %v3219, %v1009
      %v3305 = vsub.f32 %v3220, %v1010
      %v3306 = vsub.f32 %v3221, %v1011
      %v3307 = vsub.f32 %v3222, %v1012
      %v3308 = vsub.f32 %v3223, %v1013
      %v3309 = vsub.f32 %v3224, %v1014
      %v3310 = vsub.f32 %v3225, %v1015
      %v3311 = vsub.f32 %v3226, %v1016
      %v3312 = vsub.f32 %v3227, %v1017
      %v3313 = vsub.f32 %v3228, %v1018
      %v3314 = vsub.f32 %v3229, %v1019
      %v3315 = vsub.f32 %v3230, %v1020
      %v3316 = vsub.f32 %v3231, %v1021
      %v3317 = vsub.f32 %v3232, %v1022
      %v3318 = vsub.f32 %v3233, %v1023
      %v3319 = vsub.f32 %v3234, %v1024
      %v3320 = vsub.f32 %v3235, %v1025
      %v3321 = vsub.f32 %v3236, %v1026
      %v3322 = vsub.f32 %v3237, %v1027
      %v3323 = vsub.f32 %v3238, %v1028
      %v3324 = vsub.f32 %v3239, %v1029
      %v3325 = vsub.f32 %v3240, %v1030
      %v3326 = vsub.f32 %v3241, %v1031
      %v3327 = vsub.f32 %v3242, %v1032
      %v3328 = vsub.f32 %v3243, %v1033
      %v3329 = vsub.f32 %v3244, %v1034
      %v3330 = vsub.f32 %v3245, %v1035
      %v3331 = vsub.f32 %v3246, %v1036
      %v3332 = vsub.f32 %v3247, %v1037
      %v3333 = vsub.f32 %v3248, %v1038
      %v3334 = vsub.f32 %v3249, %v1039
      %v3335 = vsub.f32 %v3250, %v1040
      %v3336 = vsub.f32 %v3251, %v1041
      %v3337 = vsub.f32 %v3252, %v1042
      %v3338 = vsub.f32 %v3253, %v1043
      %v3339 = vsub.f32 %v3254, %v1044
      %v3340 = vsub.f32 %v3255, %v1045
      %v3341 = vsub.f32 %v3256, %v1046
      %v3342 = vsub.f32 %v3257, %v1047
      %v3343 = vsub.f32 %v3258, %v1048
      %v3344 = vsub.f32 %v3259, %v1049
      %v3345 = vsub.f32 %v3260, %v1050
      %v3346 = vsub.f32 %v3261, %v1051
      %v3347 = vsub.f32 %v3262, %v1052
      %v3348 = vsub.f32 %v3263, %v1053
      %v3349 = vsub.f32 %v3264, %v1054
      %v3350 = vsub.f32 %v3265, %v1055
      %v3351 = vsub.f32 %v3266, %v1056
      %v3352 = vsub.f32 %v3267, %v1057
      %v3353 = vsub.f32 %v3268, %v1058
      %v3354 = vsub.f32 %v3269, %v1059
      %v3355 = vsub.f32 %v3270, %v1060
      %v3356 = vsub.f32 %v3271, %v1061
      %v3357 = vsub.f32 %v3272, %v1062
      %v3358 = vsub.f32 %v3273, %v1063
      %v3359 = vsub.f32 %v3274, %v1064
      %v3360 = vsub.f32 %v3275, %v1065
      %v3361 = vsub.f32 %v3276, %v1066
      %v3362 = vsub.f32 %v3277, %v1067
      %v3363 = vsub.f32 %v3278, %v1068
      %v3364 = vsub.f32 %v3279, %v1069
      %v3365 = vsub.f32 %v3280, %v1070
      %v3366 = vsub.f32 %v3281, %v1071
      %v3367 = vsub.f32 %v3282, %v1072
      %v3368 = vsub.f32 %v3283, %v1073
      %v3369 = vsub.f32 %v3284, %v1074
      %v3370 = vmul.f32 %v3285, %v3285
      %v3371 = vmul.f32 %v3286, %v3286
      %v3372 = vmul.f32 %v3287, %v3287
      %v3373 = vmul.f32 %v3288, %v3288
      %v3374 = vmul.f32 %v3289, %v3289
      %v3375 = vmul.f32 %v3290, %v3290
      %v3376 = vmul.f32 %v3291, %v3291
      %v3377 = vmul.f32 %v3292, %v3292
      %v3378 = vmul.f32 %v3293, %v3293
      %v3379 = vmul.f32 %v3294, %v3294
      %v3380 = vmul.f32 %v3295, %v3295
      %v3381 = vmul.f32 %v3296, %v3296
      %v3382 = vmul.f32 %v3297, %v3297
      %v3383 = vmul.f32 %v3298, %v3298
      %v3384 = vmul.f32 %v3299, %v3299
      %v3385 = vmul.f32 %v3300, %v3300
      %v3386 = vmul.f32 %v3301, %v3301
      %v3387 = vmul.f32 %v3302, %v3302
      %v3388 = vmul.f32 %v3303, %v3303
      %v3389 = vmul.f32 %v3304, %v3304
      %v3390 = vmul.f32 %v3305, %v3305
      %v3391 = vmul.f32 %v3306, %v3306
      %v3392 = vmul.f32 %v3307, %v3307
      %v3393 = vmul.f32 %v3308, %v3308
      %v3394 = vmul.f32 %v3309, %v3309
      %v3395 = vmul.f32 %v3310, %v3310
      %v3396 = vmul.f32 %v3311, %v3311
      %v3397 = vmul.f32 %v3312, %v3312
      %v3398 = vmul.f32 %v3313, %v3313
      %v3399 = vmul.f32 %v3314, %v3314
      %v3400 = vmul.f32 %v3315, %v3315
      %v3401 = vmul.f32 %v3316, %v3316
      %v3402 = vmul.f32 %v3317, %v3317
      %v3403 = vmul.f32 %v3318, %v3318
      %v3404 = vmul.f32 %v3319, %v3319
      %v3405 = vmul.f32 %v3320, %v3320
      %v3406 = vmul.f32 %v3321, %v3321
      %v3407 = vmul.f32 %v3322, %v3322
      %v3408 = vmul.f32 %v3323, %v3323
      %v3409 = vmul.f32 %v3324, %v3324
      %v3410 = vmul.f32 %v3325, %v3325
      %v3411 = vmul.f32 %v3326, %v3326
      %v3412 = vmul.f32 %v3327, %v3327
      %v3413 = vmul.f32 %v3328, %v3328
      %v3414 = vmul.f32 %v3329, %v3329
      %v3415 = vmul.f32 %v3330, %v3330
      %v3416 = vmul.f32 %v3331, %v3331
      %v3417 = vmul.f32 %v3332, %v3332
      %v3418 = vmul.f32 %v3333, %v3333
      %v3419 = vmul.f32 %v3334, %v3334
      %v3420 = vmul.f32 %v3335, %v3335
      %v3421 = vmul.f32 %v3336, %v3336
      %v3422 = vmul.f32 %v3337, %v3337
      %v3423 = vmul.f32 %v3338, %v3338
      %v3424 = vmul.f32 %v3339, %v3339
      %v3425 = vmul.f32 %v3340, %v3340
      %v3426 = vmul.f32 %v3341, %v3341
      %v3427 = vmul.f32 %v3342, %v3342
      %v3428 = vmul.f32 %v3343, %v3343
      %v3429 = vmul.f32 %v3344, %v3344
      %v3430 = vmul.f32 %v3345, %v3345
      %v3431 = vmul.f32 %v3346, %v3346
      %v3432 = vmul.f32 %v3347, %v3347
      %v3433 = vmul.f32 %v3348, %v3348
      %v3434 = vmul.f32 %v3349, %v3349
      %v3435 = vmul.f32 %v3350, %v3350
      %v3436 = vmul.f32 %v3351, %v3351
      %v3437 = vmul.f32 %v3352, %v3352
      %v3438 = vmul.f32 %v3353, %v3353
      %v3439 = vmul.f32 %v3354, %v3354
      %v3440 = vmul.f32 %v3355, %v3355
      %v3441 = vmul.f32 %v3356, %v3356
      %v3442 = vmul.f32 %v3357, %v3357
      %v3443 = vmul.f32 %v3358, %v3358
      %v3444 = vmul.f32 %v3359, %v3359
      %v3445 = vmul.f32 %v3360, %v3360
      %v3446 = vmul.f32 %v3361, %v3361
      %v3447 = vmul.f32 %v3362, %v3362
      %v3448 = vmul.f32 %v3363, %v3363
      %v3449 = vmul.f32 %v3364, %v3364
      %v3450 = vmul.f32 %v3365, %v3365
      %v3451 = vmul.f32 %v3366, %v3366
      %v3452 = vmul.f32 %v3367, %v3367
      %v3453 = vmul.f32 %v3368, %v3368
      %v3454 = vmul.f32 %v3369, %v3369
      %v3455 = vadd.f32 %v3030, %v3370
      %v3456 = vadd.f32 %v3031, %v3371
      %v3457 = vadd.f32 %v3032, %v3372
      %v3458 = vadd.f32 %v3033, %v3373
      %v3459 = vadd.f32 %v3034, %v3374
      %v3460 = vadd.f32 %v3035, %v3375
      %v3461 = vadd.f32 %v3036, %v3376
      %v3462 = vadd.f32 %v3037, %v3377
      %v3463 = vadd.f32 %v3038, %v3378
      %v3464 = vadd.f32 %v3039, %v3379
      %v3465 = vadd.f32 %v3040, %v3380
      %v3466 = vadd.f32 %v3041, %v3381
      %v3467 = vadd.f32 %v3042, %v3382
      %v3468 = vadd.f32 %v3043, %v3383
      %v3469 = vadd.f32 %v3044, %v3384
      %v3470 = vadd.f32 %v3045, %v3385
      %v3471 = vadd.f32 %v3046, %v3386
      %v3472 = vadd.f32 %v3047, %v3387
      %v3473 = vadd.f32 %v3048, %v3388
      %v3474 = vadd.f32 %v3049, %v3389
      %v3475 = vadd.f32 %v3050, %v3390
      %v3476 = vadd.f32 %v3051, %v3391
      %v3477 = vadd.f32 %v3052, %v3392
      %v3478 = vadd.f32 %v3053, %v3393
      %v3479 = vadd.f32 %v3054, %v3394
      %v3480 = vadd.f32 %v3055, %v3395
      %v3481 = vadd.f32 %v3056, %v3396
      %v3482 = vadd.f32 %v3057, %v3397
      %v3483 = vadd.f32 %v3058, %v3398
      %v3484 = vadd.f32 %v3059, %v3399
      %v3485 = vadd.f32 %v3060, %v3400
      %v3486 = vadd.f32 %v3061, %v3401
      %v3487 = vadd.f32 %v3062, %v3402
      %v3488 = vadd.f32 %v3063, %v3403
      %v3489 = vadd.f32 %v3064, %v3404
      %v3490 = vadd.f32 %v3065, %v3405
      %v3491 = vadd.f32 %v3066, %v3406
      %v3492 = vadd.f32 %v3067, %v3407
      %v3493 = vadd.f32 %v3068, %v3408
      %v3494 = vadd.f32 %v3069, %v3409
      %v3495 = vadd.f32 %v3070, %v3410
      %v3496 = vadd.f32 %v3071, %v3411
      %v3497 = vadd.f32 %v3072, %v3412
      %v3498 = vadd.f32 %v3073, %v3413
      %v3499 = vadd.f32 %v3074, %v3414
      %v3500 = vadd.f32 %v3075, %v3415
      %v3501 = vadd.f32 %v3076, %v3416
      %v3502 = vadd.f32 %v3077, %v3417
      %v3503 = vadd.f32 %v3078, %v3418
      %v3504 = vadd.f32 %v3079, %v3419
      %v3505 = vadd.f32 %v3080, %v3420
      %v3506 = vadd.f32 %v3081, %v3421
      %v3507 = vadd.f32 %v3082, %v3422
      %v3508 = vadd.f32 %v3083, %v3423
      %v3509 = vadd.f32 %v3084, %v3424
      %v3510 = vadd.f32 %v3085, %v3425
      %v3511 = vadd.f32 %v3086, %v3426
      %v3512 = vadd.f32 %v3087, %v3427
      %v3513 = vadd.f32 %v3088, %v3428
      %v3514 = vadd.f32 %v3089, %v3429
      %v3515 = vadd.f32 %v3090, %v3430
      %v3516 = vadd.f32 %v3091, %v3431
      %v3517 = vadd.f32 %v3092, %v3432
      %v3518 = vadd.f32 %v3093, %v3433
      %v3519 = vadd.f32 %v3094, %v3434
      %v3520 = vadd.f32 %v3095, %v3435
      %v3521 = vadd.f32 %v3096, %v3436
      %v3522 = vadd.f32 %v3097, %v3437
      %v3523 = vadd.f32 %v3098, %v3438
      %v3524 = vadd.f32 %v3099, %v3439
      %v3525 = vadd.f32 %v3100, %v3440
      %v3526 = vadd.f32 %v3101, %v3441
      %v3527 = vadd.f32 %v3102, %v3442
      %v3528 = vadd.f32 %v3103, %v3443
      %v3529 = vadd.f32 %v3104, %v3444
      %v3530 = vadd.f32 %v3105, %v3445
      %v3531 = vadd.f32 %v3106, %v3446
      %v3532 = vadd.f32 %v3107, %v3447
      %v3533 = vadd.f32 %v3108, %v3448
      %v3534 = vadd.f32 %v3109, %v3449
      %v3535 = vadd.f32 %v3110, %v3450
      %v3536 = vadd.f32 %v3111, %v3451
      %v3537 = vadd.f32 %v3112, %v3452
      %v3538 = vadd.f32 %v3113, %v3453
      %v3539 = vadd.f32 %v3114, %v3454
      %v3540 = vadd.f32 %v3455, %v3456
      %v3541 = vadd.f32 %v3540, %v3457
      %v3542 = vadd.f32 %v3541, %v3458
      %v3543 = vadd.f32 %v3542, %v3459
      %v3544 = vadd.f32 %v3543, %v3460
      %v3545 = vadd.f32 %v3544, %v3461
      %v3546 = vadd.f32 %v3545, %v3462
      %v3547 = vadd.f32 %v3546, %v3463
      %v3548 = vadd.f32 %v3547, %v3464
      %v3549 = vadd.f32 %v3548, %v3465
      %v3550 = vadd.f32 %v3549, %v3466
      %v3551 = vadd.f32 %v3550, %v3467
      %v3552 = vadd.f32 %v3551, %v3468
      %v3553 = vadd.f32 %v3552, %v3469
      %v3554 = vadd.f32 %v3553, %v3470
      %vm3555 = vcmask 556032
      %v3556 = vsel %vm3555, %v3471, 0.0
      %v3557 = vadd.f32 %v3554, %v3556
      %v3558 = vadd.f32 %v3557, %v3472
      %v3559 = vadd.f32 %v3558, %v3473
      %v3560 = vadd.f32 %v3559, %v3474
      %v3561 = vadd.f32 %v3560, %v3475
      %v3562 = vadd.f32 %v3561, %v3476
      %v3563 = vadd.f32 %v3562, %v3477
      %v3564 = vadd.f32 %v3563, %v3478
      %v3565 = vadd.f32 %v3564, %v3479
      %v3566 = vadd.f32 %v3565, %v3480
      %v3567 = vadd.f32 %v3566, %v3481
      %v3568 = vadd.f32 %v3567, %v3482
      %v3569 = vadd.f32 %v3568, %v3483
      %v3570 = vadd.f32 %v3569, %v3484
      %v3571 = vadd.f32 %v3570, %v3485
      %v3572 = vadd.f32 %v3571, %v3486
      %v3573 = vadd.f32 %v3572, %v3487
      %v3574 = vsel %vm3555, %v3488, 0.0
      %v3575 = vadd.f32 %v3573, %v3574
      %v3576 = vadd.f32 %v3575, %v3489
      %v3577 = vadd.f32 %v3576, %v3490
      %v3578 = vadd.f32 %v3577, %v3491
      %v3579 = vadd.f32 %v3578, %v3492
      %v3580 = vadd.f32 %v3579, %v3493
      %v3581 = vadd.f32 %v3580, %v3494
      %v3582 = vadd.f32 %v3581, %v3495
      %v3583 = vadd.f32 %v3582, %v3496
      %v3584 = vadd.f32 %v3583, %v3497
      %v3585 = vadd.f32 %v3584, %v3498
      %v3586 = vadd.f32 %v3585, %v3499
      %v3587 = vadd.f32 %v3586, %v3500
      %v3588 = vadd.f32 %v3587, %v3501
      %v3589 = vadd.f32 %v3588, %v3502
      %v3590 = vadd.f32 %v3589, %v3503
      %v3591 = vadd.f32 %v3590, %v3504
      %v3592 = vsel %vm3555, %v3505, 0.0
      %v3593 = vadd.f32 %v3591, %v3592
      %v3594 = vadd.f32 %v3593, %v3506
      %v3595 = vadd.f32 %v3594, %v3507
      %v3596 = vadd.f32 %v3595, %v3508
      %v3597 = vadd.f32 %v3596, %v3509
      %v3598 = vadd.f32 %v3597, %v3510
      %v3599 = vadd.f32 %v3598, %v3511
      %v3600 = vadd.f32 %v3599, %v3512
      %v3601 = vadd.f32 %v3600, %v3513
      %v3602 = vadd.f32 %v3601, %v3514
      %v3603 = vadd.f32 %v3602, %v3515
      %v3604 = vadd.f32 %v3603, %v3516
      %v3605 = vadd.f32 %v3604, %v3517
      %v3606 = vadd.f32 %v3605, %v3518
      %v3607 = vadd.f32 %v3606, %v3519
      %v3608 = vadd.f32 %v3607, %v3520
      %v3609 = vadd.f32 %v3608, %v3521
      %v3610 = vsel %vm3555, %v3522, 0.0
      %v3611 = vadd.f32 %v3609, %v3610
      %vm3612 = vcmask 1045504
      %v3613 = vsel %vm3612, %v3523, 0.0
      %v3614 = vadd.f32 %v3611, %v3613
      %v3615 = vsel %vm3612, %v3524, 0.0
      %v3616 = vadd.f32 %v3614, %v3615
      %v3617 = vsel %vm3612, %v3525, 0.0
      %v3618 = vadd.f32 %v3616, %v3617
      %v3619 = vsel %vm3612, %v3526, 0.0
      %v3620 = vadd.f32 %v3618, %v3619
      %v3621 = vsel %vm3612, %v3527, 0.0
      %v3622 = vadd.f32 %v3620, %v3621
      %v3623 = vsel %vm3612, %v3528, 0.0
      %v3624 = vadd.f32 %v3622, %v3623
      %v3625 = vsel %vm3612, %v3529, 0.0
      %v3626 = vadd.f32 %v3624, %v3625
      %v3627 = vsel %vm3612, %v3530, 0.0
      %v3628 = vadd.f32 %v3626, %v3627
      %v3629 = vsel %vm3612, %v3531, 0.0
      %v3630 = vadd.f32 %v3628, %v3629
      %v3631 = vsel %vm3612, %v3532, 0.0
      %v3632 = vadd.f32 %v3630, %v3631
      %v3633 = vsel %vm3612, %v3533, 0.0
      %v3634 = vadd.f32 %v3632, %v3633
      %v3635 = vsel %vm3612, %v3534, 0.0
      %v3636 = vadd.f32 %v3634, %v3635
      %v3637 = vsel %vm3612, %v3535, 0.0
      %v3638 = vadd.f32 %v3636, %v3637
      %v3639 = vsel %vm3612, %v3536, 0.0
      %v3640 = vadd.f32 %v3638, %v3639
      %v3641 = vsel %vm3612, %v3537, 0.0
      %v3642 = vadd.f32 %v3640, %v3641
      %v3643 = vsel %vm3612, %v3538, 0.0
      %v3644 = vadd.f32 %v3642, %v3643
      %vm3645 = vcmask 553984
      %v3646 = vsel %vm3645, %v3539, 0.0
      %v3647 = vadd.f32 %v3644, %v3646
      %3648 = vadd.xlane.f32.xlu0 %v3647
      %v3649 = vpop.xlane.xlu0 %3648
      %v3650 = vrot.slane %v3649, 4
      %v3651 = vadd.f32 %v3649, %v3650
      %v3652 = vrot.slane %v3651, 2
      %v3653 = vadd.f32 %v3651, %v3652
      %v3654 = vrot.slane %v3653, 1
      %v3655 = vadd.f32 %v3653, %v3654
      %s3656 = vtos %v3655
      %v3657 = vld [vmem:[%s815] sm:$0xff]
      %v3658 = vld [vmem:[%s815 + $0x8] sm:$0xff]
      %v3659 = vld [vmem:[%s815 + $0x10] sm:$0xff]
      %v3660 = vld [vmem:[%s815 + $0x18] sm:$0xff]
      %v3661 = vld [vmem:[%s815 + $0x20] sm:$0xff]
      %v3662 = vld [vmem:[%s815 + $0x28] sm:$0xff]
      %v3663 = vld [vmem:[%s815 + $0x30] sm:$0xff]
      %v3664 = vld [vmem:[%s815 + $0x38] sm:$0xff]
      %v3665 = vld [vmem:[%s815 + $0x40] sm:$0xff]
      %v3666 = vld [vmem:[%s815 + $0x48] sm:$0xff]
      %v3667 = vld [vmem:[%s815 + $0x50] sm:$0xff]
      %v3668 = vld [vmem:[%s815 + $0x58] sm:$0xff]
      %v3669 = vld [vmem:[%s815 + $0x60] sm:$0xff]
      %v3670 = vld [vmem:[%s815 + $0x68] sm:$0xff]
      %v3671 = vld [vmem:[%s815 + $0x70] sm:$0xff]
      %v3672 = vld [vmem:[%s815 + $0x78] sm:$0xff]
      %v3673 = vld [vmem:[%s815 + $0x80] sm:$0xff]
      %v3674 = vld [vmem:[%s815 + $0x88] sm:$0xff]
      %v3675 = vld [vmem:[%s815 + $0x90] sm:$0xff]
      %v3676 = vld [vmem:[%s815 + $0x98] sm:$0xff]
      %v3677 = vld [vmem:[%s815 + $0xa0] sm:$0xff]
      %v3678 = vld [vmem:[%s815 + $0xa8] sm:$0xff]
      %v3679 = vld [vmem:[%s815 + $0xb0] sm:$0xff]
      %v3680 = vld [vmem:[%s815 + $0xb8] sm:$0xff]
      %v3681 = vld [vmem:[%s815 + $0xc0] sm:$0xff]
      %v3682 = vld [vmem:[%s815 + $0xc8] sm:$0xff]
      %v3683 = vld [vmem:[%s815 + $0xd0] sm:$0xff]
      %v3684 = vld [vmem:[%s815 + $0xd8] sm:$0xff]
      %v3685 = vld [vmem:[%s815 + $0xe0] sm:$0xff]
      %v3686 = vld [vmem:[%s815 + $0xe8] sm:$0xff]
      %v3687 = vld [vmem:[%s815 + $0xf0] sm:$0xff]
      %v3688 = vld [vmem:[%s815 + $0xf8] sm:$0xff]
      %v3689 = vld [vmem:[%s815 + $0x100] sm:$0xff]
      %v3690 = vld [vmem:[%s815 + $0x108] sm:$0xff]
      %v3691 = vld [vmem:[%s815 + $0x110] sm:$0x7]
      %v3692 = vld [vmem:[%s815 + $0x118] sm:$0x7]
      %v3693 = vld [vmem:[%s815 + $0x120] sm:$0x7]
      %v3694 = vld [vmem:[%s815 + $0x128] sm:$0x7]
      %v3695 = vld [vmem:[%s815 + $0x130] sm:$0x7]
      %v3696 = vld [vmem:[%s815 + $0x138] sm:$0x7]
      %v3697 = vld [vmem:[%s815 + $0x140] sm:$0x7]
      %v3698 = vld [vmem:[%s815 + $0x148] sm:$0x7]
      %v3699 = vld [vmem:[%s815 + $0x150] sm:$0x7]
      %v3700 = vld [vmem:[%s815 + $0x158] sm:$0x7]
      %v3701 = vld [vmem:[%s815 + $0x160] sm:$0x7]
      %v3702 = vld [vmem:[%s815 + $0x168] sm:$0x7]
      %v3703 = vld [vmem:[%s815 + $0x170] sm:$0x7]
      %v3704 = vld [vmem:[%s815 + $0x178] sm:$0x7]
      %v3705 = vld [vmem:[%s815 + $0x180] sm:$0x7]
      %v3706 = vld [vmem:[%s815 + $0x188] sm:$0x7]
      %v3707 = vld [vmem:[%s815 + $0x190] sm:$0x7]
      %v3708 = vld [vmem:[%s810] sm:$0xff]
      %v3709 = vld [vmem:[%s810 + $0x8] sm:$0xff]
      %v3710 = vld [vmem:[%s810 + $0x10] sm:$0xff]
      %v3711 = vld [vmem:[%s810 + $0x18] sm:$0xff]
      %v3712 = vld [vmem:[%s810 + $0x20] sm:$0xff]
      %v3713 = vld [vmem:[%s810 + $0x28] sm:$0xff]
      %v3714 = vld [vmem:[%s810 + $0x30] sm:$0xff]
      %v3715 = vld [vmem:[%s810 + $0x38] sm:$0xff]
      %v3716 = vld [vmem:[%s810 + $0x40] sm:$0xff]
      %v3717 = vld [vmem:[%s810 + $0x48] sm:$0xff]
      %v3718 = vld [vmem:[%s810 + $0x50] sm:$0xff]
      %v3719 = vld [vmem:[%s810 + $0x58] sm:$0xff]
      %v3720 = vld [vmem:[%s810 + $0x60] sm:$0xff]
      %v3721 = vld [vmem:[%s810 + $0x68] sm:$0xff]
      %v3722 = vld [vmem:[%s810 + $0x70] sm:$0xff]
      %v3723 = vld [vmem:[%s810 + $0x78] sm:$0xff]
      %v3724 = vld [vmem:[%s810 + $0x80] sm:$0xff]
      %v3725 = vld [vmem:[%s810 + $0x88] sm:$0xff]
      %v3726 = vld [vmem:[%s810 + $0x90] sm:$0xff]
      %v3727 = vld [vmem:[%s810 + $0x98] sm:$0xff]
      %v3728 = vld [vmem:[%s810 + $0xa0] sm:$0xff]
      %v3729 = vld [vmem:[%s810 + $0xa8] sm:$0xff]
      %v3730 = vld [vmem:[%s810 + $0xb0] sm:$0xff]
      %v3731 = vld [vmem:[%s810 + $0xb8] sm:$0xff]
      %v3732 = vld [vmem:[%s810 + $0xc0] sm:$0xff]
      %v3733 = vld [vmem:[%s810 + $0xc8] sm:$0xff]
      %v3734 = vld [vmem:[%s810 + $0xd0] sm:$0xff]
      %v3735 = vld [vmem:[%s810 + $0xd8] sm:$0xff]
      %v3736 = vld [vmem:[%s810 + $0xe0] sm:$0xff]
      %v3737 = vld [vmem:[%s810 + $0xe8] sm:$0xff]
      %v3738 = vld [vmem:[%s810 + $0xf0] sm:$0xff]
      %v3739 = vld [vmem:[%s810 + $0xf8] sm:$0xff]
      %v3740 = vld [vmem:[%s810 + $0x100] sm:$0xff]
      %v3741 = vld [vmem:[%s810 + $0x108] sm:$0xff]
      %v3742 = vld [vmem:[%s810 + $0x110] sm:$0x7]
      %v3743 = vld [vmem:[%s810 + $0x118] sm:$0x7]
      %v3744 = vld [vmem:[%s810 + $0x120] sm:$0x7]
      %v3745 = vld [vmem:[%s810 + $0x128] sm:$0x7]
      %v3746 = vld [vmem:[%s810 + $0x130] sm:$0x7]
      %v3747 = vld [vmem:[%s810 + $0x138] sm:$0x7]
      %v3748 = vld [vmem:[%s810 + $0x140] sm:$0x7]
      %v3749 = vld [vmem:[%s810 + $0x148] sm:$0x7]
      %v3750 = vld [vmem:[%s810 + $0x150] sm:$0x7]
      %v3751 = vld [vmem:[%s810 + $0x158] sm:$0x7]
      %v3752 = vld [vmem:[%s810 + $0x160] sm:$0x7]
      %v3753 = vld [vmem:[%s810 + $0x168] sm:$0x7]
      %v3754 = vld [vmem:[%s810 + $0x170] sm:$0x7]
      %v3755 = vld [vmem:[%s810 + $0x178] sm:$0x7]
      %v3756 = vld [vmem:[%s810 + $0x180] sm:$0x7]
      %v3757 = vld [vmem:[%s810 + $0x188] sm:$0x7]
      %v3758 = vld [vmem:[%s810 + $0x190] sm:$0x7]
      %v3759 = vmul.f32 %v3708, %v3657
      %v3760 = vmul.f32 %v3709, %v3658
      %v3761 = vmul.f32 %v3710, %v3659
      %v3762 = vmul.f32 %v3711, %v3660
      %v3763 = vmul.f32 %v3712, %v3661
      %v3764 = vmul.f32 %v3713, %v3662
      %v3765 = vmul.f32 %v3714, %v3663
      %v3766 = vmul.f32 %v3715, %v3664
      %v3767 = vmul.f32 %v3716, %v3665
      %v3768 = vmul.f32 %v3717, %v3666
      %v3769 = vmul.f32 %v3718, %v3667
      %v3770 = vmul.f32 %v3719, %v3668
      %v3771 = vmul.f32 %v3720, %v3669
      %v3772 = vmul.f32 %v3721, %v3670
      %v3773 = vmul.f32 %v3722, %v3671
      %v3774 = vmul.f32 %v3723, %v3672
      %v3775 = vmul.f32 %v3724, %v3673
      %v3776 = vmul.f32 %v3725, %v3674
      %v3777 = vmul.f32 %v3726, %v3675
      %v3778 = vmul.f32 %v3727, %v3676
      %v3779 = vmul.f32 %v3728, %v3677
      %v3780 = vmul.f32 %v3729, %v3678
      %v3781 = vmul.f32 %v3730, %v3679
      %v3782 = vmul.f32 %v3731, %v3680
      %v3783 = vmul.f32 %v3732, %v3681
      %v3784 = vmul.f32 %v3733, %v3682
      %v3785 = vmul.f32 %v3734, %v3683
      %v3786 = vmul.f32 %v3735, %v3684
      %v3787 = vmul.f32 %v3736, %v3685
      %v3788 = vmul.f32 %v3737, %v3686
      %v3789 = vmul.f32 %v3738, %v3687
      %v3790 = vmul.f32 %v3739, %v3688
      %v3791 = vmul.f32 %v3740, %v3689
      %v3792 = vmul.f32 %v3741, %v3690
      %v3793 = vmul.f32 %v3742, %v3691
      %v3794 = vmul.f32 %v3743, %v3692
      %v3795 = vmul.f32 %v3744, %v3693
      %v3796 = vmul.f32 %v3745, %v3694
      %v3797 = vmul.f32 %v3746, %v3695
      %v3798 = vmul.f32 %v3747, %v3696
      %v3799 = vmul.f32 %v3748, %v3697
      %v3800 = vmul.f32 %v3749, %v3698
      %v3801 = vmul.f32 %v3750, %v3699
      %v3802 = vmul.f32 %v3751, %v3700
      %v3803 = vmul.f32 %v3752, %v3701
      %v3804 = vmul.f32 %v3753, %v3702
      %v3805 = vmul.f32 %v3754, %v3703
      %v3806 = vmul.f32 %v3755, %v3704
      %v3807 = vmul.f32 %v3756, %v3705
      %v3808 = vmul.f32 %v3757, %v3706
      %v3809 = vmul.f32 %v3758, %v3707
      %v3810 = vld [vmem:[%s770] sm:$0xff]
      %v3811 = vld [vmem:[%s770 + $0x8] sm:$0xff]
      %v3812 = vld [vmem:[%s770 + $0x10] sm:$0xff]
      %v3813 = vld [vmem:[%s770 + $0x18] sm:$0xff]
      %v3814 = vld [vmem:[%s770 + $0x20] sm:$0xff]
      %v3815 = vld [vmem:[%s770 + $0x28] sm:$0xff]
      %v3816 = vld [vmem:[%s770 + $0x30] sm:$0xff]
      %v3817 = vld [vmem:[%s770 + $0x38] sm:$0xff]
      %v3818 = vld [vmem:[%s770 + $0x40] sm:$0xff]
      %v3819 = vld [vmem:[%s770 + $0x48] sm:$0xff]
      %v3820 = vld [vmem:[%s770 + $0x50] sm:$0xff]
      %v3821 = vld [vmem:[%s770 + $0x58] sm:$0xff]
      %v3822 = vld [vmem:[%s770 + $0x60] sm:$0xff]
      %v3823 = vld [vmem:[%s770 + $0x68] sm:$0xff]
      %v3824 = vld [vmem:[%s770 + $0x70] sm:$0xff]
      %v3825 = vld [vmem:[%s770 + $0x78] sm:$0xff]
      %v3826 = vld [vmem:[%s770 + $0x80] sm:$0xff]
      %v3827 = vld [vmem:[%s770 + $0x88] sm:$0xff]
      %v3828 = vld [vmem:[%s770 + $0x90] sm:$0xff]
      %v3829 = vld [vmem:[%s770 + $0x98] sm:$0xff]
      %v3830 = vld [vmem:[%s770 + $0xa0] sm:$0xff]
      %v3831 = vld [vmem:[%s770 + $0xa8] sm:$0xff]
      %v3832 = vld [vmem:[%s770 + $0xb0] sm:$0xff]
      %v3833 = vld [vmem:[%s770 + $0xb8] sm:$0xff]
      %v3834 = vld [vmem:[%s770 + $0xc0] sm:$0xff]
      %v3835 = vld [vmem:[%s770 + $0xc8] sm:$0xff]
      %v3836 = vld [vmem:[%s770 + $0xd0] sm:$0xff]
      %v3837 = vld [vmem:[%s770 + $0xd8] sm:$0xff]
      %v3838 = vld [vmem:[%s770 + $0xe0] sm:$0xff]
      %v3839 = vld [vmem:[%s770 + $0xe8] sm:$0xff]
      %v3840 = vld [vmem:[%s770 + $0xf0] sm:$0xff]
      %v3841 = vld [vmem:[%s770 + $0xf8] sm:$0xff]
      %v3842 = vld [vmem:[%s770 + $0x100] sm:$0xff]
      %v3843 = vld [vmem:[%s770 + $0x108] sm:$0xff]
      %v3844 = vld [vmem:[%s770 + $0x110] sm:$0x7]
      %v3845 = vld [vmem:[%s770 + $0x118] sm:$0x7]
      %v3846 = vld [vmem:[%s770 + $0x120] sm:$0x7]
      %v3847 = vld [vmem:[%s770 + $0x128] sm:$0x7]
      %v3848 = vld [vmem:[%s770 + $0x130] sm:$0x7]
      %v3849 = vld [vmem:[%s770 + $0x138] sm:$0x7]
      %v3850 = vld [vmem:[%s770 + $0x140] sm:$0x7]
      %v3851 = vld [vmem:[%s770 + $0x148] sm:$0x7]
      %v3852 = vld [vmem:[%s770 + $0x150] sm:$0x7]
      %v3853 = vld [vmem:[%s770 + $0x158] sm:$0x7]
      %v3854 = vld [vmem:[%s770 + $0x160] sm:$0x7]
      %v3855 = vld [vmem:[%s770 + $0x168] sm:$0x7]
      %v3856 = vld [vmem:[%s770 + $0x170] sm:$0x7]
      %v3857 = vld [vmem:[%s770 + $0x178] sm:$0x7]
      %v3858 = vld [vmem:[%s770 + $0x180] sm:$0x7]
      %v3859 = vld [vmem:[%s770 + $0x188] sm:$0x7]
      %v3860 = vld [vmem:[%s770 + $0x190] sm:$0x7]
      %v3861 = vmul.f32 %v3810, %v3657
      %v3862 = vmul.f32 %v3811, %v3658
      %v3863 = vmul.f32 %v3812, %v3659
      %v3864 = vmul.f32 %v3813, %v3660
      %v3865 = vmul.f32 %v3814, %v3661
      %v3866 = vmul.f32 %v3815, %v3662
      %v3867 = vmul.f32 %v3816, %v3663
      %v3868 = vmul.f32 %v3817, %v3664
      %v3869 = vmul.f32 %v3818, %v3665
      %v3870 = vmul.f32 %v3819, %v3666
      %v3871 = vmul.f32 %v3820, %v3667
      %v3872 = vmul.f32 %v3821, %v3668
      %v3873 = vmul.f32 %v3822, %v3669
      %v3874 = vmul.f32 %v3823, %v3670
      %v3875 = vmul.f32 %v3824, %v3671
      %v3876 = vmul.f32 %v3825, %v3672
      %v3877 = vmul.f32 %v3826, %v3673
      %v3878 = vmul.f32 %v3827, %v3674
      %v3879 = vmul.f32 %v3828, %v3675
      %v3880 = vmul.f32 %v3829, %v3676
      %v3881 = vmul.f32 %v3830, %v3677
      %v3882 = vmul.f32 %v3831, %v3678
      %v3883 = vmul.f32 %v3832, %v3679
      %v3884 = vmul.f32 %v3833, %v3680
      %v3885 = vmul.f32 %v3834, %v3681
      %v3886 = vmul.f32 %v3835, %v3682
      %v3887 = vmul.f32 %v3836, %v3683
      %v3888 = vmul.f32 %v3837, %v3684
      %v3889 = vmul.f32 %v3838, %v3685
      %v3890 = vmul.f32 %v3839, %v3686
      %v3891 = vmul.f32 %v3840, %v3687
      %v3892 = vmul.f32 %v3841, %v3688
      %v3893 = vmul.f32 %v3842, %v3689
      %v3894 = vmul.f32 %v3843, %v3690
      %v3895 = vmul.f32 %v3844, %v3691
      %v3896 = vmul.f32 %v3845, %v3692
      %v3897 = vmul.f32 %v3846, %v3693
      %v3898 = vmul.f32 %v3847, %v3694
      %v3899 = vmul.f32 %v3848, %v3695
      %v3900 = vmul.f32 %v3849, %v3696
      %v3901 = vmul.f32 %v3850, %v3697
      %v3902 = vmul.f32 %v3851, %v3698
      %v3903 = vmul.f32 %v3852, %v3699
      %v3904 = vmul.f32 %v3853, %v3700
      %v3905 = vmul.f32 %v3854, %v3701
      %v3906 = vmul.f32 %v3855, %v3702
      %v3907 = vmul.f32 %v3856, %v3703
      %v3908 = vmul.f32 %v3857, %v3704
      %v3909 = vmul.f32 %v3858, %v3705
      %v3910 = vmul.f32 %v3859, %v3706
      %v3911 = vmul.f32 %v3860, %v3707
      %v3912 = vsub.f32 %v3861, %v3759
      %v3913 = vsub.f32 %v3862, %v3760
      %v3914 = vsub.f32 %v3863, %v3761
      %v3915 = vsub.f32 %v3864, %v3762
      %v3916 = vsub.f32 %v3865, %v3763
      %v3917 = vsub.f32 %v3866, %v3764
      %v3918 = vsub.f32 %v3867, %v3765
      %v3919 = vsub.f32 %v3868, %v3766
      %v3920 = vsub.f32 %v3869, %v3767
      %v3921 = vsub.f32 %v3870, %v3768
      %v3922 = vsub.f32 %v3871, %v3769
      %v3923 = vsub.f32 %v3872, %v3770
      %v3924 = vsub.f32 %v3873, %v3771
      %v3925 = vsub.f32 %v3874, %v3772
      %v3926 = vsub.f32 %v3875, %v3773
      %v3927 = vsub.f32 %v3876, %v3774
      %v3928 = vsub.f32 %v3877, %v3775
      %v3929 = vsub.f32 %v3878, %v3776
      %v3930 = vsub.f32 %v3879, %v3777
      %v3931 = vsub.f32 %v3880, %v3778
      %v3932 = vsub.f32 %v3881, %v3779
      %v3933 = vsub.f32 %v3882, %v3780
      %v3934 = vsub.f32 %v3883, %v3781
      %v3935 = vsub.f32 %v3884, %v3782
      %v3936 = vsub.f32 %v3885, %v3783
      %v3937 = vsub.f32 %v3886, %v3784
      %v3938 = vsub.f32 %v3887, %v3785
      %v3939 = vsub.f32 %v3888, %v3786
      %v3940 = vsub.f32 %v3889, %v3787
      %v3941 = vsub.f32 %v3890, %v3788
      %v3942 = vsub.f32 %v3891, %v3789
      %v3943 = vsub.f32 %v3892, %v3790
      %v3944 = vsub.f32 %v3893, %v3791
      %v3945 = vsub.f32 %v3894, %v3792
      %v3946 = vsub.f32 %v3895, %v3793
      %v3947 = vsub.f32 %v3896, %v3794
      %v3948 = vsub.f32 %v3897, %v3795
      %v3949 = vsub.f32 %v3898, %v3796
      %v3950 = vsub.f32 %v3899, %v3797
      %v3951 = vsub.f32 %v3900, %v3798
      %v3952 = vsub.f32 %v3901, %v3799
      %v3953 = vsub.f32 %v3902, %v3800
      %v3954 = vsub.f32 %v3903, %v3801
      %v3955 = vsub.f32 %v3904, %v3802
      %v3956 = vsub.f32 %v3905, %v3803
      %v3957 = vsub.f32 %v3906, %v3804
      %v3958 = vsub.f32 %v3907, %v3805
      %v3959 = vsub.f32 %v3908, %v3806
      %v3960 = vsub.f32 %v3909, %v3807
      %v3961 = vsub.f32 %v3910, %v3808
      %v3962 = vsub.f32 %v3911, %v3809
      %v3963 = vmul.f32 %v3912, %v3912
      %v3964 = vmul.f32 %v3913, %v3913
      %v3965 = vmul.f32 %v3914, %v3914
      %v3966 = vmul.f32 %v3915, %v3915
      %v3967 = vmul.f32 %v3916, %v3916
      %v3968 = vmul.f32 %v3917, %v3917
      %v3969 = vmul.f32 %v3918, %v3918
      %v3970 = vmul.f32 %v3919, %v3919
      %v3971 = vmul.f32 %v3920, %v3920
      %v3972 = vmul.f32 %v3921, %v3921
      %v3973 = vmul.f32 %v3922, %v3922
      %v3974 = vmul.f32 %v3923, %v3923
      %v3975 = vmul.f32 %v3924, %v3924
      %v3976 = vmul.f32 %v3925, %v3925
      %v3977 = vmul.f32 %v3926, %v3926
      %v3978 = vmul.f32 %v3927, %v3927
      %v3979 = vmul.f32 %v3928, %v3928
      %v3980 = vmul.f32 %v3929, %v3929
      %v3981 = vmul.f32 %v3930, %v3930
      %v3982 = vmul.f32 %v3931, %v3931
      %v3983 = vmul.f32 %v3932, %v3932
      %v3984 = vmul.f32 %v3933, %v3933
      %v3985 = vmul.f32 %v3934, %v3934
      %v3986 = vmul.f32 %v3935, %v3935
      %v3987 = vmul.f32 %v3936, %v3936
      %v3988 = vmul.f32 %v3937, %v3937
      %v3989 = vmul.f32 %v3938, %v3938
      %v3990 = vmul.f32 %v3939, %v3939
      %v3991 = vmul.f32 %v3940, %v3940
      %v3992 = vmul.f32 %v3941, %v3941
      %v3993 = vmul.f32 %v3942, %v3942
      %v3994 = vmul.f32 %v3943, %v3943
      %v3995 = vmul.f32 %v3944, %v3944
      %v3996 = vmul.f32 %v3945, %v3945
      %v3997 = vmul.f32 %v3946, %v3946
      %v3998 = vmul.f32 %v3947, %v3947
      %v3999 = vmul.f32 %v3948, %v3948
      %v4000 = vmul.f32 %v3949, %v3949
      %v4001 = vmul.f32 %v3950, %v3950
      %v4002 = vmul.f32 %v3951, %v3951
      %v4003 = vmul.f32 %v3952, %v3952
      %v4004 = vmul.f32 %v3953, %v3953
      %v4005 = vmul.f32 %v3954, %v3954
      %v4006 = vmul.f32 %v3955, %v3955
      %v4007 = vmul.f32 %v3956, %v3956
      %v4008 = vmul.f32 %v3957, %v3957
      %v4009 = vmul.f32 %v3958, %v3958
      %v4010 = vmul.f32 %v3959, %v3959
      %v4011 = vmul.f32 %v3960, %v3960
      %v4012 = vmul.f32 %v3961, %v3961
      %v4013 = vmul.f32 %v3962, %v3962
      %v4014 = vld [vmem:[%s775] sm:$0xff]
      %v4015 = vld [vmem:[%s775 + $0x8] sm:$0xff]
      %v4016 = vld [vmem:[%s775 + $0x10] sm:$0xff]
      %v4017 = vld [vmem:[%s775 + $0x18] sm:$0xff]
      %v4018 = vld [vmem:[%s775 + $0x20] sm:$0xff]
      %v4019 = vld [vmem:[%s775 + $0x28] sm:$0xff]
      %v4020 = vld [vmem:[%s775 + $0x30] sm:$0xff]
      %v4021 = vld [vmem:[%s775 + $0x38] sm:$0xff]
      %v4022 = vld [vmem:[%s775 + $0x40] sm:$0xff]
      %v4023 = vld [vmem:[%s775 + $0x48] sm:$0xff]
      %v4024 = vld [vmem:[%s775 + $0x50] sm:$0xff]
      %v4025 = vld [vmem:[%s775 + $0x58] sm:$0xff]
      %v4026 = vld [vmem:[%s775 + $0x60] sm:$0xff]
      %v4027 = vld [vmem:[%s775 + $0x68] sm:$0xff]
      %v4028 = vld [vmem:[%s775 + $0x70] sm:$0xff]
      %v4029 = vld [vmem:[%s775 + $0x78] sm:$0xff]
      %v4030 = vld [vmem:[%s775 + $0x80] sm:$0xff]
      %v4031 = vld [vmem:[%s775 + $0x88] sm:$0xff]
      %v4032 = vld [vmem:[%s775 + $0x90] sm:$0xff]
      %v4033 = vld [vmem:[%s775 + $0x98] sm:$0xff]
      %v4034 = vld [vmem:[%s775 + $0xa0] sm:$0xff]
      %v4035 = vld [vmem:[%s775 + $0xa8] sm:$0xff]
      %v4036 = vld [vmem:[%s775 + $0xb0] sm:$0xff]
      %v4037 = vld [vmem:[%s775 + $0xb8] sm:$0xff]
      %v4038 = vld [vmem:[%s775 + $0xc0] sm:$0xff]
      %v4039 = vld [vmem:[%s775 + $0xc8] sm:$0xff]
      %v4040 = vld [vmem:[%s775 + $0xd0] sm:$0xff]
      %v4041 = vld [vmem:[%s775 + $0xd8] sm:$0xff]
      %v4042 = vld [vmem:[%s775 + $0xe0] sm:$0xff]
      %v4043 = vld [vmem:[%s775 + $0xe8] sm:$0xff]
      %v4044 = vld [vmem:[%s775 + $0xf0] sm:$0xff]
      %v4045 = vld [vmem:[%s775 + $0xf8] sm:$0xff]
      %v4046 = vld [vmem:[%s775 + $0x100] sm:$0xff]
      %v4047 = vld [vmem:[%s775 + $0x108] sm:$0xff]
      %v4048 = vld [vmem:[%s775 + $0x110] sm:$0x7]
      %v4049 = vld [vmem:[%s775 + $0x118] sm:$0x7]
      %v4050 = vld [vmem:[%s775 + $0x120] sm:$0x7]
      %v4051 = vld [vmem:[%s775 + $0x128] sm:$0x7]
      %v4052 = vld [vmem:[%s775 + $0x130] sm:$0x7]
      %v4053 = vld [vmem:[%s775 + $0x138] sm:$0x7]
      %v4054 = vld [vmem:[%s775 + $0x140] sm:$0x7]
      %v4055 = vld [vmem:[%s775 + $0x148] sm:$0x7]
      %v4056 = vld [vmem:[%s775 + $0x150] sm:$0x7]
      %v4057 = vld [vmem:[%s775 + $0x158] sm:$0x7]
      %v4058 = vld [vmem:[%s775 + $0x160] sm:$0x7]
      %v4059 = vld [vmem:[%s775 + $0x168] sm:$0x7]
      %v4060 = vld [vmem:[%s775 + $0x170] sm:$0x7]
      %v4061 = vld [vmem:[%s775 + $0x178] sm:$0x7]
      %v4062 = vld [vmem:[%s775 + $0x180] sm:$0x7]
      %v4063 = vld [vmem:[%s775 + $0x188] sm:$0x7]
      %v4064 = vld [vmem:[%s775 + $0x190] sm:$0x7]
      %v4065 = vmul.f32 %v4014, %v3657
      %v4066 = vmul.f32 %v4015, %v3658
      %v4067 = vmul.f32 %v4016, %v3659
      %v4068 = vmul.f32 %v4017, %v3660
      %v4069 = vmul.f32 %v4018, %v3661
      %v4070 = vmul.f32 %v4019, %v3662
      %v4071 = vmul.f32 %v4020, %v3663
      %v4072 = vmul.f32 %v4021, %v3664
      %v4073 = vmul.f32 %v4022, %v3665
      %v4074 = vmul.f32 %v4023, %v3666
      %v4075 = vmul.f32 %v4024, %v3667
      %v4076 = vmul.f32 %v4025, %v3668
      %v4077 = vmul.f32 %v4026, %v3669
      %v4078 = vmul.f32 %v4027, %v3670
      %v4079 = vmul.f32 %v4028, %v3671
      %v4080 = vmul.f32 %v4029, %v3672
      %v4081 = vmul.f32 %v4030, %v3673
      %v4082 = vmul.f32 %v4031, %v3674
      %v4083 = vmul.f32 %v4032, %v3675
      %v4084 = vmul.f32 %v4033, %v3676
      %v4085 = vmul.f32 %v4034, %v3677
      %v4086 = vmul.f32 %v4035, %v3678
      %v4087 = vmul.f32 %v4036, %v3679
      %v4088 = vmul.f32 %v4037, %v3680
      %v4089 = vmul.f32 %v4038, %v3681
      %v4090 = vmul.f32 %v4039, %v3682
      %v4091 = vmul.f32 %v4040, %v3683
      %v4092 = vmul.f32 %v4041, %v3684
      %v4093 = vmul.f32 %v4042, %v3685
      %v4094 = vmul.f32 %v4043, %v3686
      %v4095 = vmul.f32 %v4044, %v3687
      %v4096 = vmul.f32 %v4045, %v3688
      %v4097 = vmul.f32 %v4046, %v3689
      %v4098 = vmul.f32 %v4047, %v3690
      %v4099 = vmul.f32 %v4048, %v3691
      %v4100 = vmul.f32 %v4049, %v3692
      %v4101 = vmul.f32 %v4050, %v3693
      %v4102 = vmul.f32 %v4051, %v3694
      %v4103 = vmul.f32 %v4052, %v3695
      %v4104 = vmul.f32 %v4053, %v3696
      %v4105 = vmul.f32 %v4054, %v3697
      %v4106 = vmul.f32 %v4055, %v3698
      %v4107 = vmul.f32 %v4056, %v3699
      %v4108 = vmul.f32 %v4057, %v3700
      %v4109 = vmul.f32 %v4058, %v3701
      %v4110 = vmul.f32 %v4059, %v3702
      %v4111 = vmul.f32 %v4060, %v3703
      %v4112 = vmul.f32 %v4061, %v3704
      %v4113 = vmul.f32 %v4062, %v3705
      %v4114 = vmul.f32 %v4063, %v3706
      %v4115 = vmul.f32 %v4064, %v3707
      %v4116 = vsub.f32 %v4065, %v3759
      %v4117 = vsub.f32 %v4066, %v3760
      %v4118 = vsub.f32 %v4067, %v3761
      %v4119 = vsub.f32 %v4068, %v3762
      %v4120 = vsub.f32 %v4069, %v3763
      %v4121 = vsub.f32 %v4070, %v3764
      %v4122 = vsub.f32 %v4071, %v3765
      %v4123 = vsub.f32 %v4072, %v3766
      %v4124 = vsub.f32 %v4073, %v3767
      %v4125 = vsub.f32 %v4074, %v3768
      %v4126 = vsub.f32 %v4075, %v3769
      %v4127 = vsub.f32 %v4076, %v3770
      %v4128 = vsub.f32 %v4077, %v3771
      %v4129 = vsub.f32 %v4078, %v3772
      %v4130 = vsub.f32 %v4079, %v3773
      %v4131 = vsub.f32 %v4080, %v3774
      %v4132 = vsub.f32 %v4081, %v3775
      %v4133 = vsub.f32 %v4082, %v3776
      %v4134 = vsub.f32 %v4083, %v3777
      %v4135 = vsub.f32 %v4084, %v3778
      %v4136 = vsub.f32 %v4085, %v3779
      %v4137 = vsub.f32 %v4086, %v3780
      %v4138 = vsub.f32 %v4087, %v3781
      %v4139 = vsub.f32 %v4088, %v3782
      %v4140 = vsub.f32 %v4089, %v3783
      %v4141 = vsub.f32 %v4090, %v3784
      %v4142 = vsub.f32 %v4091, %v3785
      %v4143 = vsub.f32 %v4092, %v3786
      %v4144 = vsub.f32 %v4093, %v3787
      %v4145 = vsub.f32 %v4094, %v3788
      %v4146 = vsub.f32 %v4095, %v3789
      %v4147 = vsub.f32 %v4096, %v3790
      %v4148 = vsub.f32 %v4097, %v3791
      %v4149 = vsub.f32 %v4098, %v3792
      %v4150 = vsub.f32 %v4099, %v3793
      %v4151 = vsub.f32 %v4100, %v3794
      %v4152 = vsub.f32 %v4101, %v3795
      %v4153 = vsub.f32 %v4102, %v3796
      %v4154 = vsub.f32 %v4103, %v3797
      %v4155 = vsub.f32 %v4104, %v3798
      %v4156 = vsub.f32 %v4105, %v3799
      %v4157 = vsub.f32 %v4106, %v3800
      %v4158 = vsub.f32 %v4107, %v3801
      %v4159 = vsub.f32 %v4108, %v3802
      %v4160 = vsub.f32 %v4109, %v3803
      %v4161 = vsub.f32 %v4110, %v3804
      %v4162 = vsub.f32 %v4111, %v3805
      %v4163 = vsub.f32 %v4112, %v3806
      %v4164 = vsub.f32 %v4113, %v3807
      %v4165 = vsub.f32 %v4114, %v3808
      %v4166 = vsub.f32 %v4115, %v3809
      %v4167 = vmul.f32 %v4116, %v4116
      %v4168 = vmul.f32 %v4117, %v4117
      %v4169 = vmul.f32 %v4118, %v4118
      %v4170 = vmul.f32 %v4119, %v4119
      %v4171 = vmul.f32 %v4120, %v4120
      %v4172 = vmul.f32 %v4121, %v4121
      %v4173 = vmul.f32 %v4122, %v4122
      %v4174 = vmul.f32 %v4123, %v4123
      %v4175 = vmul.f32 %v4124, %v4124
      %v4176 = vmul.f32 %v4125, %v4125
      %v4177 = vmul.f32 %v4126, %v4126
      %v4178 = vmul.f32 %v4127, %v4127
      %v4179 = vmul.f32 %v4128, %v4128
      %v4180 = vmul.f32 %v4129, %v4129
      %v4181 = vmul.f32 %v4130, %v4130
      %v4182 = vmul.f32 %v4131, %v4131
      %v4183 = vmul.f32 %v4132, %v4132
      %v4184 = vmul.f32 %v4133, %v4133
      %v4185 = vmul.f32 %v4134, %v4134
      %v4186 = vmul.f32 %v4135, %v4135
      %v4187 = vmul.f32 %v4136, %v4136
      %v4188 = vmul.f32 %v4137, %v4137
      %v4189 = vmul.f32 %v4138, %v4138
      %v4190 = vmul.f32 %v4139, %v4139
      %v4191 = vmul.f32 %v4140, %v4140
      %v4192 = vmul.f32 %v4141, %v4141
      %v4193 = vmul.f32 %v4142, %v4142
      %v4194 = vmul.f32 %v4143, %v4143
      %v4195 = vmul.f32 %v4144, %v4144
      %v4196 = vmul.f32 %v4145, %v4145
      %v4197 = vmul.f32 %v4146, %v4146
      %v4198 = vmul.f32 %v4147, %v4147
      %v4199 = vmul.f32 %v4148, %v4148
      %v4200 = vmul.f32 %v4149, %v4149
      %v4201 = vmul.f32 %v4150, %v4150
      %v4202 = vmul.f32 %v4151, %v4151
      %v4203 = vmul.f32 %v4152, %v4152
      %v4204 = vmul.f32 %v4153, %v4153
      %v4205 = vmul.f32 %v4154, %v4154
      %v4206 = vmul.f32 %v4155, %v4155
      %v4207 = vmul.f32 %v4156, %v4156
      %v4208 = vmul.f32 %v4157, %v4157
      %v4209 = vmul.f32 %v4158, %v4158
      %v4210 = vmul.f32 %v4159, %v4159
      %v4211 = vmul.f32 %v4160, %v4160
      %v4212 = vmul.f32 %v4161, %v4161
      %v4213 = vmul.f32 %v4162, %v4162
      %v4214 = vmul.f32 %v4163, %v4163
      %v4215 = vmul.f32 %v4164, %v4164
      %v4216 = vmul.f32 %v4165, %v4165
      %v4217 = vmul.f32 %v4166, %v4166
      %v4218 = vadd.f32 %v3963, %v4167
      %v4219 = vadd.f32 %v3964, %v4168
      %v4220 = vadd.f32 %v3965, %v4169
      %v4221 = vadd.f32 %v3966, %v4170
      %v4222 = vadd.f32 %v3967, %v4171
      %v4223 = vadd.f32 %v3968, %v4172
      %v4224 = vadd.f32 %v3969, %v4173
      %v4225 = vadd.f32 %v3970, %v4174
      %v4226 = vadd.f32 %v3971, %v4175
      %v4227 = vadd.f32 %v3972, %v4176
      %v4228 = vadd.f32 %v3973, %v4177
      %v4229 = vadd.f32 %v3974, %v4178
      %v4230 = vadd.f32 %v3975, %v4179
      %v4231 = vadd.f32 %v3976, %v4180
      %v4232 = vadd.f32 %v3977, %v4181
      %v4233 = vadd.f32 %v3978, %v4182
      %v4234 = vadd.f32 %v3979, %v4183
      %v4235 = vadd.f32 %v3980, %v4184
      %v4236 = vadd.f32 %v3981, %v4185
      %v4237 = vadd.f32 %v3982, %v4186
      %v4238 = vadd.f32 %v3983, %v4187
      %v4239 = vadd.f32 %v3984, %v4188
      %v4240 = vadd.f32 %v3985, %v4189
      %v4241 = vadd.f32 %v3986, %v4190
      %v4242 = vadd.f32 %v3987, %v4191
      %v4243 = vadd.f32 %v3988, %v4192
      %v4244 = vadd.f32 %v3989, %v4193
      %v4245 = vadd.f32 %v3990, %v4194
      %v4246 = vadd.f32 %v3991, %v4195
      %v4247 = vadd.f32 %v3992, %v4196
      %v4248 = vadd.f32 %v3993, %v4197
      %v4249 = vadd.f32 %v3994, %v4198
      %v4250 = vadd.f32 %v3995, %v4199
      %v4251 = vadd.f32 %v3996, %v4200
      %v4252 = vadd.f32 %v3997, %v4201
      %v4253 = vadd.f32 %v3998, %v4202
      %v4254 = vadd.f32 %v3999, %v4203
      %v4255 = vadd.f32 %v4000, %v4204
      %v4256 = vadd.f32 %v4001, %v4205
      %v4257 = vadd.f32 %v4002, %v4206
      %v4258 = vadd.f32 %v4003, %v4207
      %v4259 = vadd.f32 %v4004, %v4208
      %v4260 = vadd.f32 %v4005, %v4209
      %v4261 = vadd.f32 %v4006, %v4210
      %v4262 = vadd.f32 %v4007, %v4211
      %v4263 = vadd.f32 %v4008, %v4212
      %v4264 = vadd.f32 %v4009, %v4213
      %v4265 = vadd.f32 %v4010, %v4214
      %v4266 = vadd.f32 %v4011, %v4215
      %v4267 = vadd.f32 %v4012, %v4216
      %v4268 = vadd.f32 %v4013, %v4217
      %v4269 = vld [vmem:[%s780] sm:$0xff]
      %v4270 = vld [vmem:[%s780 + $0x8] sm:$0xff]
      %v4271 = vld [vmem:[%s780 + $0x10] sm:$0xff]
      %v4272 = vld [vmem:[%s780 + $0x18] sm:$0xff]
      %v4273 = vld [vmem:[%s780 + $0x20] sm:$0xff]
      %v4274 = vld [vmem:[%s780 + $0x28] sm:$0xff]
      %v4275 = vld [vmem:[%s780 + $0x30] sm:$0xff]
      %v4276 = vld [vmem:[%s780 + $0x38] sm:$0xff]
      %v4277 = vld [vmem:[%s780 + $0x40] sm:$0xff]
      %v4278 = vld [vmem:[%s780 + $0x48] sm:$0xff]
      %v4279 = vld [vmem:[%s780 + $0x50] sm:$0xff]
      %v4280 = vld [vmem:[%s780 + $0x58] sm:$0xff]
      %v4281 = vld [vmem:[%s780 + $0x60] sm:$0xff]
      %v4282 = vld [vmem:[%s780 + $0x68] sm:$0xff]
      %v4283 = vld [vmem:[%s780 + $0x70] sm:$0xff]
      %v4284 = vld [vmem:[%s780 + $0x78] sm:$0xff]
      %v4285 = vld [vmem:[%s780 + $0x80] sm:$0xff]
      %v4286 = vld [vmem:[%s780 + $0x88] sm:$0xff]
      %v4287 = vld [vmem:[%s780 + $0x90] sm:$0xff]
      %v4288 = vld [vmem:[%s780 + $0x98] sm:$0xff]
      %v4289 = vld [vmem:[%s780 + $0xa0] sm:$0xff]
      %v4290 = vld [vmem:[%s780 + $0xa8] sm:$0xff]
      %v4291 = vld [vmem:[%s780 + $0xb0] sm:$0xff]
      %v4292 = vld [vmem:[%s780 + $0xb8] sm:$0xff]
      %v4293 = vld [vmem:[%s780 + $0xc0] sm:$0xff]
      %v4294 = vld [vmem:[%s780 + $0xc8] sm:$0xff]
      %v4295 = vld [vmem:[%s780 + $0xd0] sm:$0xff]
      %v4296 = vld [vmem:[%s780 + $0xd8] sm:$0xff]
      %v4297 = vld [vmem:[%s780 + $0xe0] sm:$0xff]
      %v4298 = vld [vmem:[%s780 + $0xe8] sm:$0xff]
      %v4299 = vld [vmem:[%s780 + $0xf0] sm:$0xff]
      %v4300 = vld [vmem:[%s780 + $0xf8] sm:$0xff]
      %v4301 = vld [vmem:[%s780 + $0x100] sm:$0xff]
      %v4302 = vld [vmem:[%s780 + $0x108] sm:$0xff]
      %v4303 = vld [vmem:[%s780 + $0x110] sm:$0x7]
      %v4304 = vld [vmem:[%s780 + $0x118] sm:$0x7]
      %v4305 = vld [vmem:[%s780 + $0x120] sm:$0x7]
      %v4306 = vld [vmem:[%s780 + $0x128] sm:$0x7]
      %v4307 = vld [vmem:[%s780 + $0x130] sm:$0x7]
      %v4308 = vld [vmem:[%s780 + $0x138] sm:$0x7]
      %v4309 = vld [vmem:[%s780 + $0x140] sm:$0x7]
      %v4310 = vld [vmem:[%s780 + $0x148] sm:$0x7]
      %v4311 = vld [vmem:[%s780 + $0x150] sm:$0x7]
      %v4312 = vld [vmem:[%s780 + $0x158] sm:$0x7]
      %v4313 = vld [vmem:[%s780 + $0x160] sm:$0x7]
      %v4314 = vld [vmem:[%s780 + $0x168] sm:$0x7]
      %v4315 = vld [vmem:[%s780 + $0x170] sm:$0x7]
      %v4316 = vld [vmem:[%s780 + $0x178] sm:$0x7]
      %v4317 = vld [vmem:[%s780 + $0x180] sm:$0x7]
      %v4318 = vld [vmem:[%s780 + $0x188] sm:$0x7]
      %v4319 = vld [vmem:[%s780 + $0x190] sm:$0x7]
      %v4320 = vmul.f32 %v4269, %v3657
      %v4321 = vmul.f32 %v4270, %v3658
      %v4322 = vmul.f32 %v4271, %v3659
      %v4323 = vmul.f32 %v4272, %v3660
      %v4324 = vmul.f32 %v4273, %v3661
      %v4325 = vmul.f32 %v4274, %v3662
      %v4326 = vmul.f32 %v4275, %v3663
      %v4327 = vmul.f32 %v4276, %v3664
      %v4328 = vmul.f32 %v4277, %v3665
      %v4329 = vmul.f32 %v4278, %v3666
      %v4330 = vmul.f32 %v4279, %v3667
      %v4331 = vmul.f32 %v4280, %v3668
      %v4332 = vmul.f32 %v4281, %v3669
      %v4333 = vmul.f32 %v4282, %v3670
      %v4334 = vmul.f32 %v4283, %v3671
      %v4335 = vmul.f32 %v4284, %v3672
      %v4336 = vmul.f32 %v4285, %v3673
      %v4337 = vmul.f32 %v4286, %v3674
      %v4338 = vmul.f32 %v4287, %v3675
      %v4339 = vmul.f32 %v4288, %v3676
      %v4340 = vmul.f32 %v4289, %v3677
      %v4341 = vmul.f32 %v4290, %v3678
      %v4342 = vmul.f32 %v4291, %v3679
      %v4343 = vmul.f32 %v4292, %v3680
      %v4344 = vmul.f32 %v4293, %v3681
      %v4345 = vmul.f32 %v4294, %v3682
      %v4346 = vmul.f32 %v4295, %v3683
      %v4347 = vmul.f32 %v4296, %v3684
      %v4348 = vmul.f32 %v4297, %v3685
      %v4349 = vmul.f32 %v4298, %v3686
      %v4350 = vmul.f32 %v4299, %v3687
      %v4351 = vmul.f32 %v4300, %v3688
      %v4352 = vmul.f32 %v4301, %v3689
      %v4353 = vmul.f32 %v4302, %v3690
      %v4354 = vmul.f32 %v4303, %v3691
      %v4355 = vmul.f32 %v4304, %v3692
      %v4356 = vmul.f32 %v4305, %v3693
      %v4357 = vmul.f32 %v4306, %v3694
      %v4358 = vmul.f32 %v4307, %v3695
      %v4359 = vmul.f32 %v4308, %v3696
      %v4360 = vmul.f32 %v4309, %v3697
      %v4361 = vmul.f32 %v4310, %v3698
      %v4362 = vmul.f32 %v4311, %v3699
      %v4363 = vmul.f32 %v4312, %v3700
      %v4364 = vmul.f32 %v4313, %v3701
      %v4365 = vmul.f32 %v4314, %v3702
      %v4366 = vmul.f32 %v4315, %v3703
      %v4367 = vmul.f32 %v4316, %v3704
      %v4368 = vmul.f32 %v4317, %v3705
      %v4369 = vmul.f32 %v4318, %v3706
      %v4370 = vmul.f32 %v4319, %v3707
      %v4371 = vsub.f32 %v4320, %v3759
      %v4372 = vsub.f32 %v4321, %v3760
      %v4373 = vsub.f32 %v4322, %v3761
      %v4374 = vsub.f32 %v4323, %v3762
      %v4375 = vsub.f32 %v4324, %v3763
      %v4376 = vsub.f32 %v4325, %v3764
      %v4377 = vsub.f32 %v4326, %v3765
      %v4378 = vsub.f32 %v4327, %v3766
      %v4379 = vsub.f32 %v4328, %v3767
      %v4380 = vsub.f32 %v4329, %v3768
      %v4381 = vsub.f32 %v4330, %v3769
      %v4382 = vsub.f32 %v4331, %v3770
      %v4383 = vsub.f32 %v4332, %v3771
      %v4384 = vsub.f32 %v4333, %v3772
      %v4385 = vsub.f32 %v4334, %v3773
      %v4386 = vsub.f32 %v4335, %v3774
      %v4387 = vsub.f32 %v4336, %v3775
      %v4388 = vsub.f32 %v4337, %v3776
      %v4389 = vsub.f32 %v4338, %v3777
      %v4390 = vsub.f32 %v4339, %v3778
      %v4391 = vsub.f32 %v4340, %v3779
      %v4392 = vsub.f32 %v4341, %v3780
      %v4393 = vsub.f32 %v4342, %v3781
      %v4394 = vsub.f32 %v4343, %v3782
      %v4395 = vsub.f32 %v4344, %v3783
      %v4396 = vsub.f32 %v4345, %v3784
      %v4397 = vsub.f32 %v4346, %v3785
      %v4398 = vsub.f32 %v4347, %v3786
      %v4399 = vsub.f32 %v4348, %v3787
      %v4400 = vsub.f32 %v4349, %v3788
      %v4401 = vsub.f32 %v4350, %v3789
      %v4402 = vsub.f32 %v4351, %v3790
      %v4403 = vsub.f32 %v4352, %v3791
      %v4404 = vsub.f32 %v4353, %v3792
      %v4405 = vsub.f32 %v4354, %v3793
      %v4406 = vsub.f32 %v4355, %v3794
      %v4407 = vsub.f32 %v4356, %v3795
      %v4408 = vsub.f32 %v4357, %v3796
      %v4409 = vsub.f32 %v4358, %v3797
      %v4410 = vsub.f32 %v4359, %v3798
      %v4411 = vsub.f32 %v4360, %v3799
      %v4412 = vsub.f32 %v4361, %v3800
      %v4413 = vsub.f32 %v4362, %v3801
      %v4414 = vsub.f32 %v4363, %v3802
      %v4415 = vsub.f32 %v4364, %v3803
      %v4416 = vsub.f32 %v4365, %v3804
      %v4417 = vsub.f32 %v4366, %v3805
      %v4418 = vsub.f32 %v4367, %v3806
      %v4419 = vsub.f32 %v4368, %v3807
      %v4420 = vsub.f32 %v4369, %v3808
      %v4421 = vsub.f32 %v4370, %v3809
      %v4422 = vmul.f32 %v4371, %v4371
      %v4423 = vmul.f32 %v4372, %v4372
      %v4424 = vmul.f32 %v4373, %v4373
      %v4425 = vmul.f32 %v4374, %v4374
      %v4426 = vmul.f32 %v4375, %v4375
      %v4427 = vmul.f32 %v4376, %v4376
      %v4428 = vmul.f32 %v4377, %v4377
      %v4429 = vmul.f32 %v4378, %v4378
      %v4430 = vmul.f32 %v4379, %v4379
      %v4431 = vmul.f32 %v4380, %v4380
      %v4432 = vmul.f32 %v4381, %v4381
      %v4433 = vmul.f32 %v4382, %v4382
      %v4434 = vmul.f32 %v4383, %v4383
      %v4435 = vmul.f32 %v4384, %v4384
      %v4436 = vmul.f32 %v4385, %v4385
      %v4437 = vmul.f32 %v4386, %v4386
      %v4438 = vmul.f32 %v4387, %v4387
      %v4439 = vmul.f32 %v4388, %v4388
      %v4440 = vmul.f32 %v4389, %v4389
      %v4441 = vmul.f32 %v4390, %v4390
      %v4442 = vmul.f32 %v4391, %v4391
      %v4443 = vmul.f32 %v4392, %v4392
      %v4444 = vmul.f32 %v4393, %v4393
      %v4445 = vmul.f32 %v4394, %v4394
      %v4446 = vmul.f32 %v4395, %v4395
      %v4447 = vmul.f32 %v4396, %v4396
      %v4448 = vmul.f32 %v4397, %v4397
      %v4449 = vmul.f32 %v4398, %v4398
      %v4450 = vmul.f32 %v4399, %v4399
      %v4451 = vmul.f32 %v4400, %v4400
      %v4452 = vmul.f32 %v4401, %v4401
      %v4453 = vmul.f32 %v4402, %v4402
      %v4454 = vmul.f32 %v4403, %v4403
      %v4455 = vmul.f32 %v4404, %v4404
      %v4456 = vmul.f32 %v4405, %v4405
      %v4457 = vmul.f32 %v4406, %v4406
      %v4458 = vmul.f32 %v4407, %v4407
      %v4459 = vmul.f32 %v4408, %v4408
      %v4460 = vmul.f32 %v4409, %v4409
      %v4461 = vmul.f32 %v4410, %v4410
      %v4462 = vmul.f32 %v4411, %v4411
      %v4463 = vmul.f32 %v4412, %v4412
      %v4464 = vmul.f32 %v4413, %v4413
      %v4465 = vmul.f32 %v4414, %v4414
      %v4466 = vmul.f32 %v4415, %v4415
      %v4467 = vmul.f32 %v4416, %v4416
      %v4468 = vmul.f32 %v4417, %v4417
      %v4469 = vmul.f32 %v4418, %v4418
      %v4470 = vmul.f32 %v4419, %v4419
      %v4471 = vmul.f32 %v4420, %v4420
      %v4472 = vmul.f32 %v4421, %v4421
      %v4473 = vadd.f32 %v4218, %v4422
      %v4474 = vadd.f32 %v4219, %v4423
      %v4475 = vadd.f32 %v4220, %v4424
      %v4476 = vadd.f32 %v4221, %v4425
      %v4477 = vadd.f32 %v4222, %v4426
      %v4478 = vadd.f32 %v4223, %v4427
      %v4479 = vadd.f32 %v4224, %v4428
      %v4480 = vadd.f32 %v4225, %v4429
      %v4481 = vadd.f32 %v4226, %v4430
      %v4482 = vadd.f32 %v4227, %v4431
      %v4483 = vadd.f32 %v4228, %v4432
      %v4484 = vadd.f32 %v4229, %v4433
      %v4485 = vadd.f32 %v4230, %v4434
      %v4486 = vadd.f32 %v4231, %v4435
      %v4487 = vadd.f32 %v4232, %v4436
      %v4488 = vadd.f32 %v4233, %v4437
      %v4489 = vadd.f32 %v4234, %v4438
      %v4490 = vadd.f32 %v4235, %v4439
      %v4491 = vadd.f32 %v4236, %v4440
      %v4492 = vadd.f32 %v4237, %v4441
      %v4493 = vadd.f32 %v4238, %v4442
      %v4494 = vadd.f32 %v4239, %v4443
      %v4495 = vadd.f32 %v4240, %v4444
      %v4496 = vadd.f32 %v4241, %v4445
      %v4497 = vadd.f32 %v4242, %v4446
      %v4498 = vadd.f32 %v4243, %v4447
      %v4499 = vadd.f32 %v4244, %v4448
      %v4500 = vadd.f32 %v4245, %v4449
      %v4501 = vadd.f32 %v4246, %v4450
      %v4502 = vadd.f32 %v4247, %v4451
      %v4503 = vadd.f32 %v4248, %v4452
      %v4504 = vadd.f32 %v4249, %v4453
      %v4505 = vadd.f32 %v4250, %v4454
      %v4506 = vadd.f32 %v4251, %v4455
      %v4507 = vadd.f32 %v4252, %v4456
      %v4508 = vadd.f32 %v4253, %v4457
      %v4509 = vadd.f32 %v4254, %v4458
      %v4510 = vadd.f32 %v4255, %v4459
      %v4511 = vadd.f32 %v4256, %v4460
      %v4512 = vadd.f32 %v4257, %v4461
      %v4513 = vadd.f32 %v4258, %v4462
      %v4514 = vadd.f32 %v4259, %v4463
      %v4515 = vadd.f32 %v4260, %v4464
      %v4516 = vadd.f32 %v4261, %v4465
      %v4517 = vadd.f32 %v4262, %v4466
      %v4518 = vadd.f32 %v4263, %v4467
      %v4519 = vadd.f32 %v4264, %v4468
      %v4520 = vadd.f32 %v4265, %v4469
      %v4521 = vadd.f32 %v4266, %v4470
      %v4522 = vadd.f32 %v4267, %v4471
      %v4523 = vadd.f32 %v4268, %v4472
      %v4524 = vld [vmem:[%s785] sm:$0xff]
      %v4525 = vld [vmem:[%s785 + $0x8] sm:$0xff]
      %v4526 = vld [vmem:[%s785 + $0x10] sm:$0xff]
      %v4527 = vld [vmem:[%s785 + $0x18] sm:$0xff]
      %v4528 = vld [vmem:[%s785 + $0x20] sm:$0xff]
      %v4529 = vld [vmem:[%s785 + $0x28] sm:$0xff]
      %v4530 = vld [vmem:[%s785 + $0x30] sm:$0xff]
      %v4531 = vld [vmem:[%s785 + $0x38] sm:$0xff]
      %v4532 = vld [vmem:[%s785 + $0x40] sm:$0xff]
      %v4533 = vld [vmem:[%s785 + $0x48] sm:$0xff]
      %v4534 = vld [vmem:[%s785 + $0x50] sm:$0xff]
      %v4535 = vld [vmem:[%s785 + $0x58] sm:$0xff]
      %v4536 = vld [vmem:[%s785 + $0x60] sm:$0xff]
      %v4537 = vld [vmem:[%s785 + $0x68] sm:$0xff]
      %v4538 = vld [vmem:[%s785 + $0x70] sm:$0xff]
      %v4539 = vld [vmem:[%s785 + $0x78] sm:$0xff]
      %v4540 = vld [vmem:[%s785 + $0x80] sm:$0xff]
      %v4541 = vld [vmem:[%s785 + $0x88] sm:$0xff]
      %v4542 = vld [vmem:[%s785 + $0x90] sm:$0xff]
      %v4543 = vld [vmem:[%s785 + $0x98] sm:$0xff]
      %v4544 = vld [vmem:[%s785 + $0xa0] sm:$0xff]
      %v4545 = vld [vmem:[%s785 + $0xa8] sm:$0xff]
      %v4546 = vld [vmem:[%s785 + $0xb0] sm:$0xff]
      %v4547 = vld [vmem:[%s785 + $0xb8] sm:$0xff]
      %v4548 = vld [vmem:[%s785 + $0xc0] sm:$0xff]
      %v4549 = vld [vmem:[%s785 + $0xc8] sm:$0xff]
      %v4550 = vld [vmem:[%s785 + $0xd0] sm:$0xff]
      %v4551 = vld [vmem:[%s785 + $0xd8] sm:$0xff]
      %v4552 = vld [vmem:[%s785 + $0xe0] sm:$0xff]
      %v4553 = vld [vmem:[%s785 + $0xe8] sm:$0xff]
      %v4554 = vld [vmem:[%s785 + $0xf0] sm:$0xff]
      %v4555 = vld [vmem:[%s785 + $0xf8] sm:$0xff]
      %v4556 = vld [vmem:[%s785 + $0x100] sm:$0xff]
      %v4557 = vld [vmem:[%s785 + $0x108] sm:$0xff]
      %v4558 = vld [vmem:[%s785 + $0x110] sm:$0x7]
      %v4559 = vld [vmem:[%s785 + $0x118] sm:$0x7]
      %v4560 = vld [vmem:[%s785 + $0x120] sm:$0x7]
      %v4561 = vld [vmem:[%s785 + $0x128] sm:$0x7]
      %v4562 = vld [vmem:[%s785 + $0x130] sm:$0x7]
      %v4563 = vld [vmem:[%s785 + $0x138] sm:$0x7]
      %v4564 = vld [vmem:[%s785 + $0x140] sm:$0x7]
      %v4565 = vld [vmem:[%s785 + $0x148] sm:$0x7]
      %v4566 = vld [vmem:[%s785 + $0x150] sm:$0x7]
      %v4567 = vld [vmem:[%s785 + $0x158] sm:$0x7]
      %v4568 = vld [vmem:[%s785 + $0x160] sm:$0x7]
      %v4569 = vld [vmem:[%s785 + $0x168] sm:$0x7]
      %v4570 = vld [vmem:[%s785 + $0x170] sm:$0x7]
      %v4571 = vld [vmem:[%s785 + $0x178] sm:$0x7]
      %v4572 = vld [vmem:[%s785 + $0x180] sm:$0x7]
      %v4573 = vld [vmem:[%s785 + $0x188] sm:$0x7]
      %v4574 = vld [vmem:[%s785 + $0x190] sm:$0x7]
      %v4575 = vmul.f32 %v4524, %v3657
      %v4576 = vmul.f32 %v4525, %v3658
      %v4577 = vmul.f32 %v4526, %v3659
      %v4578 = vmul.f32 %v4527, %v3660
      %v4579 = vmul.f32 %v4528, %v3661
      %v4580 = vmul.f32 %v4529, %v3662
      %v4581 = vmul.f32 %v4530, %v3663
      %v4582 = vmul.f32 %v4531, %v3664
      %v4583 = vmul.f32 %v4532, %v3665
      %v4584 = vmul.f32 %v4533, %v3666
      %v4585 = vmul.f32 %v4534, %v3667
      %v4586 = vmul.f32 %v4535, %v3668
      %v4587 = vmul.f32 %v4536, %v3669
      %v4588 = vmul.f32 %v4537, %v3670
      %v4589 = vmul.f32 %v4538, %v3671
      %v4590 = vmul.f32 %v4539, %v3672
      %v4591 = vmul.f32 %v4540, %v3673
      %v4592 = vmul.f32 %v4541, %v3674
      %v4593 = vmul.f32 %v4542, %v3675
      %v4594 = vmul.f32 %v4543, %v3676
      %v4595 = vmul.f32 %v4544, %v3677
      %v4596 = vmul.f32 %v4545, %v3678
      %v4597 = vmul.f32 %v4546, %v3679
      %v4598 = vmul.f32 %v4547, %v3680
      %v4599 = vmul.f32 %v4548, %v3681
      %v4600 = vmul.f32 %v4549, %v3682
      %v4601 = vmul.f32 %v4550, %v3683
      %v4602 = vmul.f32 %v4551, %v3684
      %v4603 = vmul.f32 %v4552, %v3685
      %v4604 = vmul.f32 %v4553, %v3686
      %v4605 = vmul.f32 %v4554, %v3687
      %v4606 = vmul.f32 %v4555, %v3688
      %v4607 = vmul.f32 %v4556, %v3689
      %v4608 = vmul.f32 %v4557, %v3690
      %v4609 = vmul.f32 %v4558, %v3691
      %v4610 = vmul.f32 %v4559, %v3692
      %v4611 = vmul.f32 %v4560, %v3693
      %v4612 = vmul.f32 %v4561, %v3694
      %v4613 = vmul.f32 %v4562, %v3695
      %v4614 = vmul.f32 %v4563, %v3696
      %v4615 = vmul.f32 %v4564, %v3697
      %v4616 = vmul.f32 %v4565, %v3698
      %v4617 = vmul.f32 %v4566, %v3699
      %v4618 = vmul.f32 %v4567, %v3700
      %v4619 = vmul.f32 %v4568, %v3701
      %v4620 = vmul.f32 %v4569, %v3702
      %v4621 = vmul.f32 %v4570, %v3703
      %v4622 = vmul.f32 %v4571, %v3704
      %v4623 = vmul.f32 %v4572, %v3705
      %v4624 = vmul.f32 %v4573, %v3706
      %v4625 = vmul.f32 %v4574, %v3707
      %v4626 = vsub.f32 %v4575, %v3759
      %v4627 = vsub.f32 %v4576, %v3760
      %v4628 = vsub.f32 %v4577, %v3761
      %v4629 = vsub.f32 %v4578, %v3762
      %v4630 = vsub.f32 %v4579, %v3763
      %v4631 = vsub.f32 %v4580, %v3764
      %v4632 = vsub.f32 %v4581, %v3765
      %v4633 = vsub.f32 %v4582, %v3766
      %v4634 = vsub.f32 %v4583, %v3767
      %v4635 = vsub.f32 %v4584, %v3768
      %v4636 = vsub.f32 %v4585, %v3769
      %v4637 = vsub.f32 %v4586, %v3770
      %v4638 = vsub.f32 %v4587, %v3771
      %v4639 = vsub.f32 %v4588, %v3772
      %v4640 = vsub.f32 %v4589, %v3773
      %v4641 = vsub.f32 %v4590, %v3774
      %v4642 = vsub.f32 %v4591, %v3775
      %v4643 = vsub.f32 %v4592, %v3776
      %v4644 = vsub.f32 %v4593, %v3777
      %v4645 = vsub.f32 %v4594, %v3778
      %v4646 = vsub.f32 %v4595, %v3779
      %v4647 = vsub.f32 %v4596, %v3780
      %v4648 = vsub.f32 %v4597, %v3781
      %v4649 = vsub.f32 %v4598, %v3782
      %v4650 = vsub.f32 %v4599, %v3783
      %v4651 = vsub.f32 %v4600, %v3784
      %v4652 = vsub.f32 %v4601, %v3785
      %v4653 = vsub.f32 %v4602, %v3786
      %v4654 = vsub.f32 %v4603, %v3787
      %v4655 = vsub.f32 %v4604, %v3788
      %v4656 = vsub.f32 %v4605, %v3789
      %v4657 = vsub.f32 %v4606, %v3790
      %v4658 = vsub.f32 %v4607, %v3791
      %v4659 = vsub.f32 %v4608, %v3792
      %v4660 = vsub.f32 %v4609, %v3793
      %v4661 = vsub.f32 %v4610, %v3794
      %v4662 = vsub.f32 %v4611, %v3795
      %v4663 = vsub.f32 %v4612, %v3796
      %v4664 = vsub.f32 %v4613, %v3797
      %v4665 = vsub.f32 %v4614, %v3798
      %v4666 = vsub.f32 %v4615, %v3799
      %v4667 = vsub.f32 %v4616, %v3800
      %v4668 = vsub.f32 %v4617, %v3801
      %v4669 = vsub.f32 %v4618, %v3802
      %v4670 = vsub.f32 %v4619, %v3803
      %v4671 = vsub.f32 %v4620, %v3804
      %v4672 = vsub.f32 %v4621, %v3805
      %v4673 = vsub.f32 %v4622, %v3806
      %v4674 = vsub.f32 %v4623, %v3807
      %v4675 = vsub.f32 %v4624, %v3808
      %v4676 = vsub.f32 %v4625, %v3809
      %v4677 = vmul.f32 %v4626, %v4626
      %v4678 = vmul.f32 %v4627, %v4627
      %v4679 = vmul.f32 %v4628, %v4628
      %v4680 = vmul.f32 %v4629, %v4629
      %v4681 = vmul.f32 %v4630, %v4630
      %v4682 = vmul.f32 %v4631, %v4631
      %v4683 = vmul.f32 %v4632, %v4632
      %v4684 = vmul.f32 %v4633, %v4633
      %v4685 = vmul.f32 %v4634, %v4634
      %v4686 = vmul.f32 %v4635, %v4635
      %v4687 = vmul.f32 %v4636, %v4636
      %v4688 = vmul.f32 %v4637, %v4637
      %v4689 = vmul.f32 %v4638, %v4638
      %v4690 = vmul.f32 %v4639, %v4639
      %v4691 = vmul.f32 %v4640, %v4640
      %v4692 = vmul.f32 %v4641, %v4641
      %v4693 = vmul.f32 %v4642, %v4642
      %v4694 = vmul.f32 %v4643, %v4643
      %v4695 = vmul.f32 %v4644, %v4644
      %v4696 = vmul.f32 %v4645, %v4645
      %v4697 = vmul.f32 %v4646, %v4646
      %v4698 = vmul.f32 %v4647, %v4647
      %v4699 = vmul.f32 %v4648, %v4648
      %v4700 = vmul.f32 %v4649, %v4649
      %v4701 = vmul.f32 %v4650, %v4650
      %v4702 = vmul.f32 %v4651, %v4651
      %v4703 = vmul.f32 %v4652, %v4652
      %v4704 = vmul.f32 %v4653, %v4653
      %v4705 = vmul.f32 %v4654, %v4654
      %v4706 = vmul.f32 %v4655, %v4655
      %v4707 = vmul.f32 %v4656, %v4656
      %v4708 = vmul.f32 %v4657, %v4657
      %v4709 = vmul.f32 %v4658, %v4658
      %v4710 = vmul.f32 %v4659, %v4659
      %v4711 = vmul.f32 %v4660, %v4660
      %v4712 = vmul.f32 %v4661, %v4661
      %v4713 = vmul.f32 %v4662, %v4662
      %v4714 = vmul.f32 %v4663, %v4663
      %v4715 = vmul.f32 %v4664, %v4664
      %v4716 = vmul.f32 %v4665, %v4665
      %v4717 = vmul.f32 %v4666, %v4666
      %v4718 = vmul.f32 %v4667, %v4667
      %v4719 = vmul.f32 %v4668, %v4668
      %v4720 = vmul.f32 %v4669, %v4669
      %v4721 = vmul.f32 %v4670, %v4670
      %v4722 = vmul.f32 %v4671, %v4671
      %v4723 = vmul.f32 %v4672, %v4672
      %v4724 = vmul.f32 %v4673, %v4673
      %v4725 = vmul.f32 %v4674, %v4674
      %v4726 = vmul.f32 %v4675, %v4675
      %v4727 = vmul.f32 %v4676, %v4676
      %v4728 = vadd.f32 %v4473, %v4677
      %v4729 = vadd.f32 %v4474, %v4678
      %v4730 = vadd.f32 %v4475, %v4679
      %v4731 = vadd.f32 %v4476, %v4680
      %v4732 = vadd.f32 %v4477, %v4681
      %v4733 = vadd.f32 %v4478, %v4682
      %v4734 = vadd.f32 %v4479, %v4683
      %v4735 = vadd.f32 %v4480, %v4684
      %v4736 = vadd.f32 %v4481, %v4685
      %v4737 = vadd.f32 %v4482, %v4686
      %v4738 = vadd.f32 %v4483, %v4687
      %v4739 = vadd.f32 %v4484, %v4688
      %v4740 = vadd.f32 %v4485, %v4689
      %v4741 = vadd.f32 %v4486, %v4690
      %v4742 = vadd.f32 %v4487, %v4691
      %v4743 = vadd.f32 %v4488, %v4692
      %v4744 = vadd.f32 %v4489, %v4693
      %v4745 = vadd.f32 %v4490, %v4694
      %v4746 = vadd.f32 %v4491, %v4695
      %v4747 = vadd.f32 %v4492, %v4696
      %v4748 = vadd.f32 %v4493, %v4697
      %v4749 = vadd.f32 %v4494, %v4698
      %v4750 = vadd.f32 %v4495, %v4699
      %v4751 = vadd.f32 %v4496, %v4700
      %v4752 = vadd.f32 %v4497, %v4701
      %v4753 = vadd.f32 %v4498, %v4702
      %v4754 = vadd.f32 %v4499, %v4703
      %v4755 = vadd.f32 %v4500, %v4704
      %v4756 = vadd.f32 %v4501, %v4705
      %v4757 = vadd.f32 %v4502, %v4706
      %v4758 = vadd.f32 %v4503, %v4707
      %v4759 = vadd.f32 %v4504, %v4708
      %v4760 = vadd.f32 %v4505, %v4709
      %v4761 = vadd.f32 %v4506, %v4710
      %v4762 = vadd.f32 %v4507, %v4711
      %v4763 = vadd.f32 %v4508, %v4712
      %v4764 = vadd.f32 %v4509, %v4713
      %v4765 = vadd.f32 %v4510, %v4714
      %v4766 = vadd.f32 %v4511, %v4715
      %v4767 = vadd.f32 %v4512, %v4716
      %v4768 = vadd.f32 %v4513, %v4717
      %v4769 = vadd.f32 %v4514, %v4718
      %v4770 = vadd.f32 %v4515, %v4719
      %v4771 = vadd.f32 %v4516, %v4720
      %v4772 = vadd.f32 %v4517, %v4721
      %v4773 = vadd.f32 %v4518, %v4722
      %v4774 = vadd.f32 %v4519, %v4723
      %v4775 = vadd.f32 %v4520, %v4724
      %v4776 = vadd.f32 %v4521, %v4725
      %v4777 = vadd.f32 %v4522, %v4726
      %v4778 = vadd.f32 %v4523, %v4727
      %v4779 = vld [vmem:[%s790] sm:$0xff]
      %v4780 = vld [vmem:[%s790 + $0x8] sm:$0xff]
      %v4781 = vld [vmem:[%s790 + $0x10] sm:$0xff]
      %v4782 = vld [vmem:[%s790 + $0x18] sm:$0xff]
      %v4783 = vld [vmem:[%s790 + $0x20] sm:$0xff]
      %v4784 = vld [vmem:[%s790 + $0x28] sm:$0xff]
      %v4785 = vld [vmem:[%s790 + $0x30] sm:$0xff]
      %v4786 = vld [vmem:[%s790 + $0x38] sm:$0xff]
      %v4787 = vld [vmem:[%s790 + $0x40] sm:$0xff]
      %v4788 = vld [vmem:[%s790 + $0x48] sm:$0xff]
      %v4789 = vld [vmem:[%s790 + $0x50] sm:$0xff]
      %v4790 = vld [vmem:[%s790 + $0x58] sm:$0xff]
      %v4791 = vld [vmem:[%s790 + $0x60] sm:$0xff]
      %v4792 = vld [vmem:[%s790 + $0x68] sm:$0xff]
      %v4793 = vld [vmem:[%s790 + $0x70] sm:$0xff]
      %v4794 = vld [vmem:[%s790 + $0x78] sm:$0xff]
      %v4795 = vld [vmem:[%s790 + $0x80] sm:$0xff]
      %v4796 = vld [vmem:[%s790 + $0x88] sm:$0xff]
      %v4797 = vld [vmem:[%s790 + $0x90] sm:$0xff]
      %v4798 = vld [vmem:[%s790 + $0x98] sm:$0xff]
      %v4799 = vld [vmem:[%s790 + $0xa0] sm:$0xff]
      %v4800 = vld [vmem:[%s790 + $0xa8] sm:$0xff]
      %v4801 = vld [vmem:[%s790 + $0xb0] sm:$0xff]
      %v4802 = vld [vmem:[%s790 + $0xb8] sm:$0xff]
      %v4803 = vld [vmem:[%s790 + $0xc0] sm:$0xff]
      %v4804 = vld [vmem:[%s790 + $0xc8] sm:$0xff]
      %v4805 = vld [vmem:[%s790 + $0xd0] sm:$0xff]
      %v4806 = vld [vmem:[%s790 + $0xd8] sm:$0xff]
      %v4807 = vld [vmem:[%s790 + $0xe0] sm:$0xff]
      %v4808 = vld [vmem:[%s790 + $0xe8] sm:$0xff]
      %v4809 = vld [vmem:[%s790 + $0xf0] sm:$0xff]
      %v4810 = vld [vmem:[%s790 + $0xf8] sm:$0xff]
      %v4811 = vld [vmem:[%s790 + $0x100] sm:$0xff]
      %v4812 = vld [vmem:[%s790 + $0x108] sm:$0xff]
      %v4813 = vld [vmem:[%s790 + $0x110] sm:$0x7]
      %v4814 = vld [vmem:[%s790 + $0x118] sm:$0x7]
      %v4815 = vld [vmem:[%s790 + $0x120] sm:$0x7]
      %v4816 = vld [vmem:[%s790 + $0x128] sm:$0x7]
      %v4817 = vld [vmem:[%s790 + $0x130] sm:$0x7]
      %v4818 = vld [vmem:[%s790 + $0x138] sm:$0x7]
      %v4819 = vld [vmem:[%s790 + $0x140] sm:$0x7]
      %v4820 = vld [vmem:[%s790 + $0x148] sm:$0x7]
      %v4821 = vld [vmem:[%s790 + $0x150] sm:$0x7]
      %v4822 = vld [vmem:[%s790 + $0x158] sm:$0x7]
      %v4823 = vld [vmem:[%s790 + $0x160] sm:$0x7]
      %v4824 = vld [vmem:[%s790 + $0x168] sm:$0x7]
      %v4825 = vld [vmem:[%s790 + $0x170] sm:$0x7]
      %v4826 = vld [vmem:[%s790 + $0x178] sm:$0x7]
      %v4827 = vld [vmem:[%s790 + $0x180] sm:$0x7]
      %v4828 = vld [vmem:[%s790 + $0x188] sm:$0x7]
      %v4829 = vld [vmem:[%s790 + $0x190] sm:$0x7]
      %v4830 = vmul.f32 %v4779, %v3657
      %v4831 = vmul.f32 %v4780, %v3658
      %v4832 = vmul.f32 %v4781, %v3659
      %v4833 = vmul.f32 %v4782, %v3660
      %v4834 = vmul.f32 %v4783, %v3661
      %v4835 = vmul.f32 %v4784, %v3662
      %v4836 = vmul.f32 %v4785, %v3663
      %v4837 = vmul.f32 %v4786, %v3664
      %v4838 = vmul.f32 %v4787, %v3665
      %v4839 = vmul.f32 %v4788, %v3666
      %v4840 = vmul.f32 %v4789, %v3667
      %v4841 = vmul.f32 %v4790, %v3668
      %v4842 = vmul.f32 %v4791, %v3669
      %v4843 = vmul.f32 %v4792, %v3670
      %v4844 = vmul.f32 %v4793, %v3671
      %v4845 = vmul.f32 %v4794, %v3672
      %v4846 = vmul.f32 %v4795, %v3673
      %v4847 = vmul.f32 %v4796, %v3674
      %v4848 = vmul.f32 %v4797, %v3675
      %v4849 = vmul.f32 %v4798, %v3676
      %v4850 = vmul.f32 %v4799, %v3677
      %v4851 = vmul.f32 %v4800, %v3678
      %v4852 = vmul.f32 %v4801, %v3679
      %v4853 = vmul.f32 %v4802, %v3680
      %v4854 = vmul.f32 %v4803, %v3681
      %v4855 = vmul.f32 %v4804, %v3682
      %v4856 = vmul.f32 %v4805, %v3683
      %v4857 = vmul.f32 %v4806, %v3684
      %v4858 = vmul.f32 %v4807, %v3685
      %v4859 = vmul.f32 %v4808, %v3686
      %v4860 = vmul.f32 %v4809, %v3687
      %v4861 = vmul.f32 %v4810, %v3688
      %v4862 = vmul.f32 %v4811, %v3689
      %v4863 = vmul.f32 %v4812, %v3690
      %v4864 = vmul.f32 %v4813, %v3691
      %v4865 = vmul.f32 %v4814, %v3692
      %v4866 = vmul.f32 %v4815, %v3693
      %v4867 = vmul.f32 %v4816, %v3694
      %v4868 = vmul.f32 %v4817, %v3695
      %v4869 = vmul.f32 %v4818, %v3696
      %v4870 = vmul.f32 %v4819, %v3697
      %v4871 = vmul.f32 %v4820, %v3698
      %v4872 = vmul.f32 %v4821, %v3699
      %v4873 = vmul.f32 %v4822, %v3700
      %v4874 = vmul.f32 %v4823, %v3701
      %v4875 = vmul.f32 %v4824, %v3702
      %v4876 = vmul.f32 %v4825, %v3703
      %v4877 = vmul.f32 %v4826, %v3704
      %v4878 = vmul.f32 %v4827, %v3705
      %v4879 = vmul.f32 %v4828, %v3706
      %v4880 = vmul.f32 %v4829, %v3707
      %v4881 = vsub.f32 %v4830, %v3759
      %v4882 = vsub.f32 %v4831, %v3760
      %v4883 = vsub.f32 %v4832, %v3761
      %v4884 = vsub.f32 %v4833, %v3762
      %v4885 = vsub.f32 %v4834, %v3763
      %v4886 = vsub.f32 %v4835, %v3764
      %v4887 = vsub.f32 %v4836, %v3765
      %v4888 = vsub.f32 %v4837, %v3766
      %v4889 = vsub.f32 %v4838, %v3767
      %v4890 = vsub.f32 %v4839, %v3768
      %v4891 = vsub.f32 %v4840, %v3769
      %v4892 = vsub.f32 %v4841, %v3770
      %v4893 = vsub.f32 %v4842, %v3771
      %v4894 = vsub.f32 %v4843, %v3772
      %v4895 = vsub.f32 %v4844, %v3773
      %v4896 = vsub.f32 %v4845, %v3774
      %v4897 = vsub.f32 %v4846, %v3775
      %v4898 = vsub.f32 %v4847, %v3776
      %v4899 = vsub.f32 %v4848, %v3777
      %v4900 = vsub.f32 %v4849, %v3778
      %v4901 = vsub.f32 %v4850, %v3779
      %v4902 = vsub.f32 %v4851, %v3780
      %v4903 = vsub.f32 %v4852, %v3781
      %v4904 = vsub.f32 %v4853, %v3782
      %v4905 = vsub.f32 %v4854, %v3783
      %v4906 = vsub.f32 %v4855, %v3784
      %v4907 = vsub.f32 %v4856, %v3785
      %v4908 = vsub.f32 %v4857, %v3786
      %v4909 = vsub.f32 %v4858, %v3787
      %v4910 = vsub.f32 %v4859, %v3788
      %v4911 = vsub.f32 %v4860, %v3789
      %v4912 = vsub.f32 %v4861, %v3790
      %v4913 = vsub.f32 %v4862, %v3791
      %v4914 = vsub.f32 %v4863, %v3792
      %v4915 = vsub.f32 %v4864, %v3793
      %v4916 = vsub.f32 %v4865, %v3794
      %v4917 = vsub.f32 %v4866, %v3795
      %v4918 = vsub.f32 %v4867, %v3796
      %v4919 = vsub.f32 %v4868, %v3797
      %v4920 = vsub.f32 %v4869, %v3798
      %v4921 = vsub.f32 %v4870, %v3799
      %v4922 = vsub.f32 %v4871, %v3800
      %v4923 = vsub.f32 %v4872, %v3801
      %v4924 = vsub.f32 %v4873, %v3802
      %v4925 = vsub.f32 %v4874, %v3803
      %v4926 = vsub.f32 %v4875, %v3804
      %v4927 = vsub.f32 %v4876, %v3805
      %v4928 = vsub.f32 %v4877, %v3806
      %v4929 = vsub.f32 %v4878, %v3807
      %v4930 = vsub.f32 %v4879, %v3808
      %v4931 = vsub.f32 %v4880, %v3809
      %v4932 = vmul.f32 %v4881, %v4881
      %v4933 = vmul.f32 %v4882, %v4882
      %v4934 = vmul.f32 %v4883, %v4883
      %v4935 = vmul.f32 %v4884, %v4884
      %v4936 = vmul.f32 %v4885, %v4885
      %v4937 = vmul.f32 %v4886, %v4886
      %v4938 = vmul.f32 %v4887, %v4887
      %v4939 = vmul.f32 %v4888, %v4888
      %v4940 = vmul.f32 %v4889, %v4889
      %v4941 = vmul.f32 %v4890, %v4890
      %v4942 = vmul.f32 %v4891, %v4891
      %v4943 = vmul.f32 %v4892, %v4892
      %v4944 = vmul.f32 %v4893, %v4893
      %v4945 = vmul.f32 %v4894, %v4894
      %v4946 = vmul.f32 %v4895, %v4895
      %v4947 = vmul.f32 %v4896, %v4896
      %v4948 = vmul.f32 %v4897, %v4897
      %v4949 = vmul.f32 %v4898, %v4898
      %v4950 = vmul.f32 %v4899, %v4899
      %v4951 = vmul.f32 %v4900, %v4900
      %v4952 = vmul.f32 %v4901, %v4901
      %v4953 = vmul.f32 %v4902, %v4902
      %v4954 = vmul.f32 %v4903, %v4903
      %v4955 = vmul.f32 %v4904, %v4904
      %v4956 = vmul.f32 %v4905, %v4905
      %v4957 = vmul.f32 %v4906, %v4906
      %v4958 = vmul.f32 %v4907, %v4907
      %v4959 = vmul.f32 %v4908, %v4908
      %v4960 = vmul.f32 %v4909, %v4909
      %v4961 = vmul.f32 %v4910, %v4910
      %v4962 = vmul.f32 %v4911, %v4911
      %v4963 = vmul.f32 %v4912, %v4912
      %v4964 = vmul.f32 %v4913, %v4913
      %v4965 = vmul.f32 %v4914, %v4914
      %v4966 = vmul.f32 %v4915, %v4915
      %v4967 = vmul.f32 %v4916, %v4916
      %v4968 = vmul.f32 %v4917, %v4917
      %v4969 = vmul.f32 %v4918, %v4918
      %v4970 = vmul.f32 %v4919, %v4919
      %v4971 = vmul.f32 %v4920, %v4920
      %v4972 = vmul.f32 %v4921, %v4921
      %v4973 = vmul.f32 %v4922, %v4922
      %v4974 = vmul.f32 %v4923, %v4923
      %v4975 = vmul.f32 %v4924, %v4924
      %v4976 = vmul.f32 %v4925, %v4925
      %v4977 = vmul.f32 %v4926, %v4926
      %v4978 = vmul.f32 %v4927, %v4927
      %v4979 = vmul.f32 %v4928, %v4928
      %v4980 = vmul.f32 %v4929, %v4929
      %v4981 = vmul.f32 %v4930, %v4930
      %v4982 = vmul.f32 %v4931, %v4931
      %v4983 = vadd.f32 %v4728, %v4932
      %v4984 = vadd.f32 %v4729, %v4933
      %v4985 = vadd.f32 %v4730, %v4934
      %v4986 = vadd.f32 %v4731, %v4935
      %v4987 = vadd.f32 %v4732, %v4936
      %v4988 = vadd.f32 %v4733, %v4937
      %v4989 = vadd.f32 %v4734, %v4938
      %v4990 = vadd.f32 %v4735, %v4939
      %v4991 = vadd.f32 %v4736, %v4940
      %v4992 = vadd.f32 %v4737, %v4941
      %v4993 = vadd.f32 %v4738, %v4942
      %v4994 = vadd.f32 %v4739, %v4943
      %v4995 = vadd.f32 %v4740, %v4944
      %v4996 = vadd.f32 %v4741, %v4945
      %v4997 = vadd.f32 %v4742, %v4946
      %v4998 = vadd.f32 %v4743, %v4947
      %v4999 = vadd.f32 %v4744, %v4948
      %v5000 = vadd.f32 %v4745, %v4949
      %v5001 = vadd.f32 %v4746, %v4950
      %v5002 = vadd.f32 %v4747, %v4951
      %v5003 = vadd.f32 %v4748, %v4952
      %v5004 = vadd.f32 %v4749, %v4953
      %v5005 = vadd.f32 %v4750, %v4954
      %v5006 = vadd.f32 %v4751, %v4955
      %v5007 = vadd.f32 %v4752, %v4956
      %v5008 = vadd.f32 %v4753, %v4957
      %v5009 = vadd.f32 %v4754, %v4958
      %v5010 = vadd.f32 %v4755, %v4959
      %v5011 = vadd.f32 %v4756, %v4960
      %v5012 = vadd.f32 %v4757, %v4961
      %v5013 = vadd.f32 %v4758, %v4962
      %v5014 = vadd.f32 %v4759, %v4963
      %v5015 = vadd.f32 %v4760, %v4964
      %v5016 = vadd.f32 %v4761, %v4965
      %v5017 = vadd.f32 %v4762, %v4966
      %v5018 = vadd.f32 %v4763, %v4967
      %v5019 = vadd.f32 %v4764, %v4968
      %v5020 = vadd.f32 %v4765, %v4969
      %v5021 = vadd.f32 %v4766, %v4970
      %v5022 = vadd.f32 %v4767, %v4971
      %v5023 = vadd.f32 %v4768, %v4972
      %v5024 = vadd.f32 %v4769, %v4973
      %v5025 = vadd.f32 %v4770, %v4974
      %v5026 = vadd.f32 %v4771, %v4975
      %v5027 = vadd.f32 %v4772, %v4976
      %v5028 = vadd.f32 %v4773, %v4977
      %v5029 = vadd.f32 %v4774, %v4978
      %v5030 = vadd.f32 %v4775, %v4979
      %v5031 = vadd.f32 %v4776, %v4980
      %v5032 = vadd.f32 %v4777, %v4981
      %v5033 = vadd.f32 %v4778, %v4982
      %v5034 = vld [vmem:[%s795] sm:$0xff]
      %v5035 = vld [vmem:[%s795 + $0x8] sm:$0xff]
      %v5036 = vld [vmem:[%s795 + $0x10] sm:$0xff]
      %v5037 = vld [vmem:[%s795 + $0x18] sm:$0xff]
      %v5038 = vld [vmem:[%s795 + $0x20] sm:$0xff]
      %v5039 = vld [vmem:[%s795 + $0x28] sm:$0xff]
      %v5040 = vld [vmem:[%s795 + $0x30] sm:$0xff]
      %v5041 = vld [vmem:[%s795 + $0x38] sm:$0xff]
      %v5042 = vld [vmem:[%s795 + $0x40] sm:$0xff]
      %v5043 = vld [vmem:[%s795 + $0x48] sm:$0xff]
      %v5044 = vld [vmem:[%s795 + $0x50] sm:$0xff]
      %v5045 = vld [vmem:[%s795 + $0x58] sm:$0xff]
      %v5046 = vld [vmem:[%s795 + $0x60] sm:$0xff]
      %v5047 = vld [vmem:[%s795 + $0x68] sm:$0xff]
      %v5048 = vld [vmem:[%s795 + $0x70] sm:$0xff]
      %v5049 = vld [vmem:[%s795 + $0x78] sm:$0xff]
      %v5050 = vld [vmem:[%s795 + $0x80] sm:$0xff]
      %v5051 = vld [vmem:[%s795 + $0x88] sm:$0xff]
      %v5052 = vld [vmem:[%s795 + $0x90] sm:$0xff]
      %v5053 = vld [vmem:[%s795 + $0x98] sm:$0xff]
      %v5054 = vld [vmem:[%s795 + $0xa0] sm:$0xff]
      %v5055 = vld [vmem:[%s795 + $0xa8] sm:$0xff]
      %v5056 = vld [vmem:[%s795 + $0xb0] sm:$0xff]
      %v5057 = vld [vmem:[%s795 + $0xb8] sm:$0xff]
      %v5058 = vld [vmem:[%s795 + $0xc0] sm:$0xff]
      %v5059 = vld [vmem:[%s795 + $0xc8] sm:$0xff]
      %v5060 = vld [vmem:[%s795 + $0xd0] sm:$0xff]
      %v5061 = vld [vmem:[%s795 + $0xd8] sm:$0xff]
      %v5062 = vld [vmem:[%s795 + $0xe0] sm:$0xff]
      %v5063 = vld [vmem:[%s795 + $0xe8] sm:$0xff]
      %v5064 = vld [vmem:[%s795 + $0xf0] sm:$0xff]
      %v5065 = vld [vmem:[%s795 + $0xf8] sm:$0xff]
      %v5066 = vld [vmem:[%s795 + $0x100] sm:$0xff]
      %v5067 = vld [vmem:[%s795 + $0x108] sm:$0xff]
      %v5068 = vld [vmem:[%s795 + $0x110] sm:$0x7]
      %v5069 = vld [vmem:[%s795 + $0x118] sm:$0x7]
      %v5070 = vld [vmem:[%s795 + $0x120] sm:$0x7]
      %v5071 = vld [vmem:[%s795 + $0x128] sm:$0x7]
      %v5072 = vld [vmem:[%s795 + $0x130] sm:$0x7]
      %v5073 = vld [vmem:[%s795 + $0x138] sm:$0x7]
      %v5074 = vld [vmem:[%s795 + $0x140] sm:$0x7]
      %v5075 = vld [vmem:[%s795 + $0x148] sm:$0x7]
      %v5076 = vld [vmem:[%s795 + $0x150] sm:$0x7]
      %v5077 = vld [vmem:[%s795 + $0x158] sm:$0x7]
      %v5078 = vld [vmem:[%s795 + $0x160] sm:$0x7]
      %v5079 = vld [vmem:[%s795 + $0x168] sm:$0x7]
      %v5080 = vld [vmem:[%s795 + $0x170] sm:$0x7]
      %v5081 = vld [vmem:[%s795 + $0x178] sm:$0x7]
      %v5082 = vld [vmem:[%s795 + $0x180] sm:$0x7]
      %v5083 = vld [vmem:[%s795 + $0x188] sm:$0x7]
      %v5084 = vld [vmem:[%s795 + $0x190] sm:$0x7]
      %v5085 = vmul.f32 %v5034, %v3657
      %v5086 = vmul.f32 %v5035, %v3658
      %v5087 = vmul.f32 %v5036, %v3659
      %v5088 = vmul.f32 %v5037, %v3660
      %v5089 = vmul.f32 %v5038, %v3661
      %v5090 = vmul.f32 %v5039, %v3662
      %v5091 = vmul.f32 %v5040, %v3663
      %v5092 = vmul.f32 %v5041, %v3664
      %v5093 = vmul.f32 %v5042, %v3665
      %v5094 = vmul.f32 %v5043, %v3666
      %v5095 = vmul.f32 %v5044, %v3667
      %v5096 = vmul.f32 %v5045, %v3668
      %v5097 = vmul.f32 %v5046, %v3669
      %v5098 = vmul.f32 %v5047, %v3670
      %v5099 = vmul.f32 %v5048, %v3671
      %v5100 = vmul.f32 %v5049, %v3672
      %v5101 = vmul.f32 %v5050, %v3673
      %v5102 = vmul.f32 %v5051, %v3674
      %v5103 = vmul.f32 %v5052, %v3675
      %v5104 = vmul.f32 %v5053, %v3676
      %v5105 = vmul.f32 %v5054, %v3677
      %v5106 = vmul.f32 %v5055, %v3678
      %v5107 = vmul.f32 %v5056, %v3679
      %v5108 = vmul.f32 %v5057, %v3680
      %v5109 = vmul.f32 %v5058, %v3681
      %v5110 = vmul.f32 %v5059, %v3682
      %v5111 = vmul.f32 %v5060, %v3683
      %v5112 = vmul.f32 %v5061, %v3684
      %v5113 = vmul.f32 %v5062, %v3685
      %v5114 = vmul.f32 %v5063, %v3686
      %v5115 = vmul.f32 %v5064, %v3687
      %v5116 = vmul.f32 %v5065, %v3688
      %v5117 = vmul.f32 %v5066, %v3689
      %v5118 = vmul.f32 %v5067, %v3690
      %v5119 = vmul.f32 %v5068, %v3691
      %v5120 = vmul.f32 %v5069, %v3692
      %v5121 = vmul.f32 %v5070, %v3693
      %v5122 = vmul.f32 %v5071, %v3694
      %v5123 = vmul.f32 %v5072, %v3695
      %v5124 = vmul.f32 %v5073, %v3696
      %v5125 = vmul.f32 %v5074, %v3697
      %v5126 = vmul.f32 %v5075, %v3698
      %v5127 = vmul.f32 %v5076, %v3699
      %v5128 = vmul.f32 %v5077, %v3700
      %v5129 = vmul.f32 %v5078, %v3701
      %v5130 = vmul.f32 %v5079, %v3702
      %v5131 = vmul.f32 %v5080, %v3703
      %v5132 = vmul.f32 %v5081, %v3704
      %v5133 = vmul.f32 %v5082, %v3705
      %v5134 = vmul.f32 %v5083, %v3706
      %v5135 = vmul.f32 %v5084, %v3707
      %v5136 = vsub.f32 %v5085, %v3759
      %v5137 = vsub.f32 %v5086, %v3760
      %v5138 = vsub.f32 %v5087, %v3761
      %v5139 = vsub.f32 %v5088, %v3762
      %v5140 = vsub.f32 %v5089, %v3763
      %v5141 = vsub.f32 %v5090, %v3764
      %v5142 = vsub.f32 %v5091, %v3765
      %v5143 = vsub.f32 %v5092, %v3766
      %v5144 = vsub.f32 %v5093, %v3767
      %v5145 = vsub.f32 %v5094, %v3768
      %v5146 = vsub.f32 %v5095, %v3769
      %v5147 = vsub.f32 %v5096, %v3770
      %v5148 = vsub.f32 %v5097, %v3771
      %v5149 = vsub.f32 %v5098, %v3772
      %v5150 = vsub.f32 %v5099, %v3773
      %v5151 = vsub.f32 %v5100, %v3774
      %v5152 = vsub.f32 %v5101, %v3775
      %v5153 = vsub.f32 %v5102, %v3776
      %v5154 = vsub.f32 %v5103, %v3777
      %v5155 = vsub.f32 %v5104, %v3778
      %v5156 = vsub.f32 %v5105, %v3779
      %v5157 = vsub.f32 %v5106, %v3780
      %v5158 = vsub.f32 %v5107, %v3781
      %v5159 = vsub.f32 %v5108, %v3782
      %v5160 = vsub.f32 %v5109, %v3783
      %v5161 = vsub.f32 %v5110, %v3784
      %v5162 = vsub.f32 %v5111, %v3785
      %v5163 = vsub.f32 %v5112, %v3786
      %v5164 = vsub.f32 %v5113, %v3787
      %v5165 = vsub.f32 %v5114, %v3788
      %v5166 = vsub.f32 %v5115, %v3789
      %v5167 = vsub.f32 %v5116, %v3790
      %v5168 = vsub.f32 %v5117, %v3791
      %v5169 = vsub.f32 %v5118, %v3792
      %v5170 = vsub.f32 %v5119, %v3793
      %v5171 = vsub.f32 %v5120, %v3794
      %v5172 = vsub.f32 %v5121, %v3795
      %v5173 = vsub.f32 %v5122, %v3796
      %v5174 = vsub.f32 %v5123, %v3797
      %v5175 = vsub.f32 %v5124, %v3798
      %v5176 = vsub.f32 %v5125, %v3799
      %v5177 = vsub.f32 %v5126, %v3800
      %v5178 = vsub.f32 %v5127, %v3801
      %v5179 = vsub.f32 %v5128, %v3802
      %v5180 = vsub.f32 %v5129, %v3803
      %v5181 = vsub.f32 %v5130, %v3804
      %v5182 = vsub.f32 %v5131, %v3805
      %v5183 = vsub.f32 %v5132, %v3806
      %v5184 = vsub.f32 %v5133, %v3807
      %v5185 = vsub.f32 %v5134, %v3808
      %v5186 = vsub.f32 %v5135, %v3809
      %v5187 = vmul.f32 %v5136, %v5136
      %v5188 = vmul.f32 %v5137, %v5137
      %v5189 = vmul.f32 %v5138, %v5138
      %v5190 = vmul.f32 %v5139, %v5139
      %v5191 = vmul.f32 %v5140, %v5140
      %v5192 = vmul.f32 %v5141, %v5141
      %v5193 = vmul.f32 %v5142, %v5142
      %v5194 = vmul.f32 %v5143, %v5143
      %v5195 = vmul.f32 %v5144, %v5144
      %v5196 = vmul.f32 %v5145, %v5145
      %v5197 = vmul.f32 %v5146, %v5146
      %v5198 = vmul.f32 %v5147, %v5147
      %v5199 = vmul.f32 %v5148, %v5148
      %v5200 = vmul.f32 %v5149, %v5149
      %v5201 = vmul.f32 %v5150, %v5150
      %v5202 = vmul.f32 %v5151, %v5151
      %v5203 = vmul.f32 %v5152, %v5152
      %v5204 = vmul.f32 %v5153, %v5153
      %v5205 = vmul.f32 %v5154, %v5154
      %v5206 = vmul.f32 %v5155, %v5155
      %v5207 = vmul.f32 %v5156, %v5156
      %v5208 = vmul.f32 %v5157, %v5157
      %v5209 = vmul.f32 %v5158, %v5158
      %v5210 = vmul.f32 %v5159, %v5159
      %v5211 = vmul.f32 %v5160, %v5160
      %v5212 = vmul.f32 %v5161, %v5161
      %v5213 = vmul.f32 %v5162, %v5162
      %v5214 = vmul.f32 %v5163, %v5163
      %v5215 = vmul.f32 %v5164, %v5164
      %v5216 = vmul.f32 %v5165, %v5165
      %v5217 = vmul.f32 %v5166, %v5166
      %v5218 = vmul.f32 %v5167, %v5167
      %v5219 = vmul.f32 %v5168, %v5168
      %v5220 = vmul.f32 %v5169, %v5169
      %v5221 = vmul.f32 %v5170, %v5170
      %v5222 = vmul.f32 %v5171, %v5171
      %v5223 = vmul.f32 %v5172, %v5172
      %v5224 = vmul.f32 %v5173, %v5173
      %v5225 = vmul.f32 %v5174, %v5174
      %v5226 = vmul.f32 %v5175, %v5175
      %v5227 = vmul.f32 %v5176, %v5176
      %v5228 = vmul.f32 %v5177, %v5177
      %v5229 = vmul.f32 %v5178, %v5178
      %v5230 = vmul.f32 %v5179, %v5179
      %v5231 = vmul.f32 %v5180, %v5180
      %v5232 = vmul.f32 %v5181, %v5181
      %v5233 = vmul.f32 %v5182, %v5182
      %v5234 = vmul.f32 %v5183, %v5183
      %v5235 = vmul.f32 %v5184, %v5184
      %v5236 = vmul.f32 %v5185, %v5185
      %v5237 = vmul.f32 %v5186, %v5186
      %v5238 = vadd.f32 %v4983, %v5187
      %v5239 = vadd.f32 %v4984, %v5188
      %v5240 = vadd.f32 %v4985, %v5189
      %v5241 = vadd.f32 %v4986, %v5190
      %v5242 = vadd.f32 %v4987, %v5191
      %v5243 = vadd.f32 %v4988, %v5192
      %v5244 = vadd.f32 %v4989, %v5193
      %v5245 = vadd.f32 %v4990, %v5194
      %v5246 = vadd.f32 %v4991, %v5195
      %v5247 = vadd.f32 %v4992, %v5196
      %v5248 = vadd.f32 %v4993, %v5197
      %v5249 = vadd.f32 %v4994, %v5198
      %v5250 = vadd.f32 %v4995, %v5199
      %v5251 = vadd.f32 %v4996, %v5200
      %v5252 = vadd.f32 %v4997, %v5201
      %v5253 = vadd.f32 %v4998, %v5202
      %v5254 = vadd.f32 %v4999, %v5203
      %v5255 = vadd.f32 %v5000, %v5204
      %v5256 = vadd.f32 %v5001, %v5205
      %v5257 = vadd.f32 %v5002, %v5206
      %v5258 = vadd.f32 %v5003, %v5207
      %v5259 = vadd.f32 %v5004, %v5208
      %v5260 = vadd.f32 %v5005, %v5209
      %v5261 = vadd.f32 %v5006, %v5210
      %v5262 = vadd.f32 %v5007, %v5211
      %v5263 = vadd.f32 %v5008, %v5212
      %v5264 = vadd.f32 %v5009, %v5213
      %v5265 = vadd.f32 %v5010, %v5214
      %v5266 = vadd.f32 %v5011, %v5215
      %v5267 = vadd.f32 %v5012, %v5216
      %v5268 = vadd.f32 %v5013, %v5217
      %v5269 = vadd.f32 %v5014, %v5218
      %v5270 = vadd.f32 %v5015, %v5219
      %v5271 = vadd.f32 %v5016, %v5220
      %v5272 = vadd.f32 %v5017, %v5221
      %v5273 = vadd.f32 %v5018, %v5222
      %v5274 = vadd.f32 %v5019, %v5223
      %v5275 = vadd.f32 %v5020, %v5224
      %v5276 = vadd.f32 %v5021, %v5225
      %v5277 = vadd.f32 %v5022, %v5226
      %v5278 = vadd.f32 %v5023, %v5227
      %v5279 = vadd.f32 %v5024, %v5228
      %v5280 = vadd.f32 %v5025, %v5229
      %v5281 = vadd.f32 %v5026, %v5230
      %v5282 = vadd.f32 %v5027, %v5231
      %v5283 = vadd.f32 %v5028, %v5232
      %v5284 = vadd.f32 %v5029, %v5233
      %v5285 = vadd.f32 %v5030, %v5234
      %v5286 = vadd.f32 %v5031, %v5235
      %v5287 = vadd.f32 %v5032, %v5236
      %v5288 = vadd.f32 %v5033, %v5237
      %v5289 = vadd.f32 %v5238, %v5239
      %v5290 = vadd.f32 %v5289, %v5240
      %v5291 = vadd.f32 %v5290, %v5241
      %v5292 = vadd.f32 %v5291, %v5242
      %v5293 = vadd.f32 %v5292, %v5243
      %v5294 = vadd.f32 %v5293, %v5244
      %v5295 = vadd.f32 %v5294, %v5245
      %v5296 = vadd.f32 %v5295, %v5246
      %v5297 = vadd.f32 %v5296, %v5247
      %v5298 = vadd.f32 %v5297, %v5248
      %v5299 = vadd.f32 %v5298, %v5249
      %v5300 = vadd.f32 %v5299, %v5250
      %v5301 = vadd.f32 %v5300, %v5251
      %v5302 = vadd.f32 %v5301, %v5252
      %v5303 = vadd.f32 %v5302, %v5253
      %v5304 = vsel %vm3555, %v5254, 0.0
      %v5305 = vadd.f32 %v5303, %v5304
      %v5306 = vadd.f32 %v5305, %v5255
      %v5307 = vadd.f32 %v5306, %v5256
      %v5308 = vadd.f32 %v5307, %v5257
      %v5309 = vadd.f32 %v5308, %v5258
      %v5310 = vadd.f32 %v5309, %v5259
      %v5311 = vadd.f32 %v5310, %v5260
      %v5312 = vadd.f32 %v5311, %v5261
      %v5313 = vadd.f32 %v5312, %v5262
      %v5314 = vadd.f32 %v5313, %v5263
      %v5315 = vadd.f32 %v5314, %v5264
      %v5316 = vadd.f32 %v5315, %v5265
      %v5317 = vadd.f32 %v5316, %v5266
      %v5318 = vadd.f32 %v5317, %v5267
      %v5319 = vadd.f32 %v5318, %v5268
      %v5320 = vadd.f32 %v5319, %v5269
      %v5321 = vadd.f32 %v5320, %v5270
      %v5322 = vsel %vm3555, %v5271, 0.0
      %v5323 = vadd.f32 %v5321, %v5322
      %vm5324 = vcmask 1042432
      %v5325 = vsel %vm5324, %v5272, 0.0
      %v5326 = vadd.f32 %v5323, %v5325
      %v5327 = vsel %vm5324, %v5273, 0.0
      %v5328 = vadd.f32 %v5326, %v5327
      %v5329 = vsel %vm5324, %v5274, 0.0
      %v5330 = vadd.f32 %v5328, %v5329
      %v5331 = vsel %vm5324, %v5275, 0.0
      %v5332 = vadd.f32 %v5330, %v5331
      %v5333 = vsel %vm5324, %v5276, 0.0
      %v5334 = vadd.f32 %v5332, %v5333
      %v5335 = vsel %vm5324, %v5277, 0.0
      %v5336 = vadd.f32 %v5334, %v5335
      %v5337 = vsel %vm5324, %v5278, 0.0
      %v5338 = vadd.f32 %v5336, %v5337
      %v5339 = vsel %vm5324, %v5279, 0.0
      %v5340 = vadd.f32 %v5338, %v5339
      %v5341 = vsel %vm5324, %v5280, 0.0
      %v5342 = vadd.f32 %v5340, %v5341
      %v5343 = vsel %vm5324, %v5281, 0.0
      %v5344 = vadd.f32 %v5342, %v5343
      %v5345 = vsel %vm5324, %v5282, 0.0
      %v5346 = vadd.f32 %v5344, %v5345
      %v5347 = vsel %vm5324, %v5283, 0.0
      %v5348 = vadd.f32 %v5346, %v5347
      %v5349 = vsel %vm5324, %v5284, 0.0
      %v5350 = vadd.f32 %v5348, %v5349
      %v5351 = vsel %vm5324, %v5285, 0.0
      %v5352 = vadd.f32 %v5350, %v5351
      %v5353 = vsel %vm5324, %v5286, 0.0
      %v5354 = vadd.f32 %v5352, %v5353
      %v5355 = vsel %vm5324, %v5287, 0.0
      %v5356 = vadd.f32 %v5354, %v5355
      %vm5357 = vcmask 550912
      %v5358 = vsel %vm5357, %v5288, 0.0
      %v5359 = vadd.f32 %v5356, %v5358
      %5360 = vadd.xlane.f32.xlu0 %v5359
      %v5361 = vpop.xlane.xlu0 %5360
      %v5362 = vrot.slane %v5361, 4
      %v5363 = vadd.f32 %v5361, %v5362
      %v5364 = vrot.slane %v5363, 2
      %v5365 = vadd.f32 %v5363, %v5364
      %v5366 = vrot.slane %v5365, 1
      %v5367 = vadd.f32 %v5365, %v5366
      %s5368 = vtos %v5367
      %v5369 = vlaneseq
      %v5370 = vshrl.u32 %v5369, 7
      %v5371 = vlaneseq
      %v5372 = vand.u32 %v5371, 127
      %vm5373 = vcmp.eq.s32.totalorder %v5370, 0
      %vm5374 = vcmp.eq.s32.totalorder %v5372, 0
      %vm5375 = vmand %vm5373, %vm5374
      %v5376 = vstv %s3656
      %v5377 = vsel %vm5375, %v5376, 0.0
      %vm5378 = vcmp.eq.s32.totalorder %v5372, 1
      %vm5379 = vmand %vm5373, %vm5378
      %v5380 = vstv %s5368
      %v5381 = vsel %vm5379, %v5380, %v5377
      %5382 = vst [vmem:[%s819] sm:$0xff] %v5381
      %p5383 = scmp.lt.s32.totalorder %s27, 1
      %s5384 = scalar_select %p5383, %s27, 1
      %s5385 = smul.addr %s5384, 8
      %s5386 = scalar_lea.vmem %s16, %s5385
      // Predicated region
      $region85: #{openpose_loss.1} parent=83 // pred_check
        %p5387 = pneg %p461
      $region86: #{openpose_loss.1} parent=83 // pred_check_branch
        %5389 = sbr.rel (%p5387) target = $region88
      $region87: #{openpose_loss.1} parent=83 // pred_region
        _
      $region88: #{openpose_loss.1} parent=83 // pred_fallthru
        _
    $region84: #{openpose_loss.1} parent=5 // pred_fallthru
      _
    %p5390 = scmp.le.s32.totalorder 2, %s22
    // Predicated region
    $region89: #{openpose_loss.1} parent=5 // pred_check
      %p5391 = pneg %p5390
    $region90: #{openpose_loss.1} parent=5 // pred_check_branch
      %5393 = sbr.rel (%p5391) target = $region92
    $region91: #{openpose_loss.1} parent=5 // pred_region
      %s5394 = ssub.s32 %s22, 2
      // Predicated region
      $region93: #{openpose_loss.1} parent=91 // pred_check
        %p5395 = pneg %p467
      $region94: #{openpose_loss.1} parent=91 // pred_check_branch
        %5397 = sbr.rel (%p5395) target = $region96
      $region95: #{openpose_loss.1} parent=91 // pred_region
        %p5398 = scmp.lt.s32.totalorder %s28, 1
        %s5399 = scalar_select %p5398, %s28, 1
        %s5400 = smul.addr %s5399, 8
        %s5401 = scalar_lea.vmem %s16, %s5400
      $region96: #{openpose_loss.1} parent=91 // pred_fallthru
        _
    $region92: #{openpose_loss.1} parent=5 // pred_fallthru
      _
  $region6: #{openpose_loss.1} parent=0 // loop_footer
    %s26 = sadd.s32 1, %s22
  $region7: #{openpose_loss.1} parent=0 // loop_footer_branch
    %21 = sbr.rel target = $region3
  $region8: #{openpose_loss.1} parent=0 // loop_exit
    _

</llo_original>
